<compile_context>
chip_gen: v6e
topology: v6e:2x2x1
jax: 0.10.0
libtpu: 0.0.40
codegen_flags: <defaults>
</compile_context>

<pallas_src>
import functools

import jax
import jax.numpy as jnp
from jax import lax
from jax.experimental import pallas as pl
from jax.experimental.pallas import tpu as pltpu

CPAD = 128  # padded channel width -> lane-dense NHWC activations (C on the lane axis)


def _round_up(x, m):
    return (x + m - 1) // m * m


# ---------------------------------------------------------------------------
# Batched, M-tiled GEMM kernel with fused bias + ReLU.
#   a: (G, M, K) bf16,  w: (G, K, N) bf16,  bias: (N,) f32  ->  (G, M, N) bf16
# Grid = (G, M/TM); both axes parallel (v7x megacore).  K kept as a single block
# (K <= 512 here); N = CPAD = 128 so output stores are full-lane.
# ---------------------------------------------------------------------------
def _gemm_bias_relu_kernel(a_ref, w_ref, b_ref, o_ref, *, relu):
    acc = jnp.dot(a_ref[0], w_ref[0], preferred_element_type=jnp.float32)
    acc = acc + b_ref[...]                       # f32 epilogue
    if relu:
        acc = jnp.maximum(acc, 0.0)
    o_ref[0] = acc.astype(o_ref.dtype)


def batched_gemm_bias_relu(a, w, bias, *, relu=True, tm=256):
    G, M, K = a.shape
    N = w.shape[-1]
    tm = min(tm, _round_up(M, 8))
    Mp = _round_up(M, tm)
    if Mp != M:
        a = jnp.pad(a, ((0, 0), (0, Mp - M), (0, 0)))
    a = a.astype(jnp.bfloat16)
    w = w.astype(jnp.bfloat16)
    bias2 = bias.reshape(1, N).astype(jnp.float32)

    flops = int(2 * G * Mp * K * N)
    bytes_accessed = int(G * Mp * K * 2 + G * K * N * 2 + N * 4 + G * Mp * N * 2)

    out = pl.pallas_call(
        functools.partial(_gemm_bias_relu_kernel, relu=relu),
        out_shape=jax.ShapeDtypeStruct((G, Mp, N), jnp.bfloat16),
        grid=(G, Mp // tm),
        in_specs=[
            pl.BlockSpec((1, tm, K), lambda g, i: (g, i, 0)),
            pl.BlockSpec((1, K, N), lambda g, i: (g, 0, 0)),
            pl.BlockSpec((1, N), lambda g, i: (0, 0)),
        ],
        out_specs=pl.BlockSpec((1, tm, N), lambda g, i: (g, i, 0)),
        compiler_params=pltpu.CompilerParams(
            dimension_semantics=("parallel", "parallel")),
        cost_estimate=pl.CostEstimate(
            flops=flops, transcendentals=0, bytes_accessed=bytes_accessed),
    )(a, w, bias2)
    if Mp != M:
        out = out[:, :M, :]
    return out


# ---------------------------------------------------------------------------
# Heatmap head kernel (final 1x1 conv fused): per batch b
#   hm(K,HW) = Wfin(Kp,C) @ feat(HW,C)^T + bias     (bf16 MXU, f32 acc)
#   softmax over HW, re-norm, maxvals, hm_x/hm_y marginals (MXU), soft-argmax coords.
# HW = 256 sits on the lane axis -> dense vregs, single-pass lane reductions.
# ---------------------------------------------------------------------------
def _head_kernel(feat_ref, wt_ref, bias_ref, sx_ref, sy_ref,
                 hm_ref, norm_ref, hmx_ref, hmy_ref, jts_ref, maxv_ref,
                 *, num_joints, H, W):
    feat = feat_ref[0]                                       # (HW, CPAD) bf16
    # fused final 1x1 conv: joints on sublanes, H*W on the lane axis
    hm = lax.dot_general(wt_ref[...], feat, (((1,), (1,)), ((), ())),
                         preferred_element_type=jnp.float32)  # (KJP, HW) f32
    hm = hm + bias_ref[...]                                   # (KJP, 1) broadcast
    hm_ref[0] = hm[:num_joints].astype(hm_ref.dtype)

    # softmax over H*W (norm_type='softmax', eval)
    m = jnp.max(hm, axis=-1, keepdims=True)
    e = jnp.exp(hm - m)
    s = jnp.sum(e, axis=-1, keepdims=True)
    soft = e * pl.reciprocal(s, approx=True)                  # EUP reciprocal

    maxv = jnp.max(soft, axis=-1, keepdims=True)              # (KJP, 1)
    s2 = jnp.sum(soft, axis=-1, keepdims=True)
    norm = soft * pl.reciprocal(s2, approx=True)              # torch re-normalization
    norm_ref[0] = norm[:num_joints].astype(norm_ref.dtype)

    # marginals via tiny MXU matmuls (avoids narrow-lane XLU reductions over W/H)
    hm_x = jnp.dot(norm, sx_ref[...], preferred_element_type=jnp.float32)  # (KJP, W)
    hm_y = jnp.dot(norm, sy_ref[...], preferred_element_type=jnp.float32)  # (KJP, H)
    hmx_ref[0] = hm_x[:num_joints]
    hmy_ref[0] = hm_y[:num_joints]

    # soft-argmax (eval branch): fold 1/W, 1/H into the arange weights
    wx = lax.broadcasted_iota(jnp.int32, hm_x.shape, 1).astype(jnp.float32) * (1.0 / W)
    wy = lax.broadcasted_iota(jnp.int32, hm_y.shape, 1).astype(jnp.float32) * (1.0 / H)
    coord_x = jnp.sum(hm_x * wx, axis=-1, keepdims=True) - 0.5
    coord_y = jnp.sum(hm_y * wy, axis=-1, keepdims=True) - 0.5
    jts = jnp.concatenate([coord_x, coord_y], axis=-1)        # (KJP, 2)
    jts_ref[0] = jts[:num_joints]
    maxv_ref[0] = maxv[:num_joints]


def heatmap_head(feat, final_w, final_b, num_joints, H, W):
    B, Hf, Wf, C = feat.shape
    assert (Hf, Wf, C) == (H, W, CPAD)
    HW = H * W
    KJP = _round_up(num_joints, 8)                            # sublane-padded joints

    feat2 = feat.reshape(B, HW, CPAD)                         # contiguous, free
    cin_real = final_w.shape[1]
    wt = jnp.zeros((KJP, CPAD), jnp.float32)
    wt = wt.at[:num_joints, :cin_real].set(final_w.reshape(num_joints, cin_real))
    wt = wt.astype(jnp.bfloat16)
    bias = jnp.zeros((KJP, 1), jnp.float32).at[:num_joints, 0].set(final_b)

    p = jnp.arange(HW, dtype=jnp.int32)
    sx = (p[:, None] % W == jnp.arange(W, dtype=jnp.int32)[None, :]).astype(jnp.float32)
    sy = (p[:, None] // W == jnp.arange(H, dtype=jnp.int32)[None, :]).astype(jnp.float32)

    flops = int(B * (2 * KJP * CPAD * HW + 4 * KJP * HW * W))
    bytes_accessed = int(B * HW * CPAD * 2 + 2 * B * num_joints * HW * 4)

    hm, norm, hm_x, hm_y, jts, maxv = pl.pallas_call(
        functools.partial(_head_kernel, num_joints=num_joints, H=H, W=W),
        out_shape=(
            jax.ShapeDtypeStruct((B, num_joints, HW), jnp.float32),  # heatmap
            jax.ShapeDtypeStruct((B, num_joints, HW), jnp.float32),  # norm_heatmap
            jax.ShapeDtypeStruct((B, num_joints, W), jnp.float32),   # hm_x
            jax.ShapeDtypeStruct((B, num_joints, H), jnp.float32),   # hm_y
            jax.ShapeDtypeStruct((B, num_joints, 2), jnp.float32),   # pred_jts
            jax.ShapeDtypeStruct((B, num_joints, 1), jnp.float32),   # maxvals
        ),
        grid=(B,),
        in_specs=[
            pl.BlockSpec((1, HW, CPAD), lambda b: (b, 0, 0)),
            pl.BlockSpec((KJP, CPAD), lambda b: (0, 0)),
            pl.BlockSpec((KJP, 1), lambda b: (0, 0)),
            pl.BlockSpec((HW, W), lambda b: (0, 0)),
            pl.BlockSpec((HW, H), lambda b: (0, 0)),
        ],
        out_specs=(
            pl.BlockSpec((1, num_joints, HW), lambda b: (b, 0, 0)),
            pl.BlockSpec((1, num_joints, HW), lambda b: (b, 0, 0)),
            pl.BlockSpec((1, num_joints, W), lambda b: (b, 0, 0)),
            pl.BlockSpec((1, num_joints, H), lambda b: (b, 0, 0)),
            pl.BlockSpec((1, num_joints, 2), lambda b: (b, 0, 0)),
            pl.BlockSpec((1, num_joints, 1), lambda b: (b, 0, 0)),
        ),
        compiler_params=pltpu.CompilerParams(dimension_semantics=("parallel",)),
        cost_estimate=pl.CostEstimate(
            flops=flops, transcendentals=int(B * KJP * HW),
            bytes_accessed=bytes_accessed),
    )(feat2, wt, bias, sx, sy)

    return (hm.reshape(B, num_joints, H, W),
            norm.reshape(B, num_joints, H, W),
            hm_x, hm_y, jts, maxv)


# ---------------------------------------------------------------------------
# Glue (plain JAX): NHWC im2col, BN folding, 4-phase deconv decomposition.
# ---------------------------------------------------------------------------
def stem_conv(x_nhwc, w, b, patch=8):
    # TODO(synk): deterministic patch-embed stand-in for the ResNet 'preact' backbone.
    B, Hin, Win, C = x_nhwc.shape
    K = patch * patch * C
    fc = w.shape[1]
    assert fc <= CPAD
    Hf, Wf = Hin // patch, Win // patch
    p = x_nhwc.reshape(B, Hf, patch, Wf, patch, C)
    p = p.transpose(0, 1, 3, 2, 4, 5).reshape(B * Hf * Wf, K)
    w_pad = jnp.zeros((K, CPAD), jnp.float32).at[:, :fc].set(w)
    b_pad = jnp.zeros((CPAD,), jnp.float32).at[:fc].set(b)
    y = batched_gemm_bias_relu(p[None], w_pad[None], b_pad, relu=True)
    return y[0].reshape(B, Hf, Wf, CPAD)                      # bf16, NHWC, C padded


def conv_transpose2x_bn_relu(feat, w, bn_gamma, bn_beta, bn_mean, bn_var, eps=1e-5):
    # ConvTranspose2d(cin, cout, k=4, s=2, p=1, bias=False) + BN(eval, folded) + ReLU.
    # 4-phase decomposition: each output parity (ry, rx) is a 2x2 conv on the input,
    # so K = 4*C instead of the 16*C zero-inflated im2col.
    B, Hin, Win, C = feat.shape                               # C == CPAD
    cin_real, cout_real = w.shape[0], w.shape[1]
    assert cin_real <= CPAD and cout_real <= CPAD

    scale = bn_gamma / jnp.sqrt(bn_var + eps)                 # (cout,)
    shift = bn_beta - bn_mean * scale
    w_fold = w * scale[None, :, None, None]                   # (cin, cout, 4, 4)
    wf = w_fold[:, :, ::-1, ::-1]                             # spatially flipped

    # phase weight matrices: tap(dy,dx) = wf[:, :, ry+2dy, rx+2dx]
    wmats = []
    for ry in (0, 1):
        for rx in (0, 1):
            wp = wf[:, :, ry::2, rx::2].transpose(2, 3, 0, 1)  # (dy, dx, cin, cout)
            wp_pad = jnp.zeros((2, 2, CPAD, CPAD), jnp.float32)
            wp_pad = wp_pad.at[:, :, :cin_real, :cout_real].set(wp)
            wmats.append(wp_pad.reshape(4 * CPAD, CPAD))
    w_all = jnp.stack(wmats, axis=0)                          # (4, 4*CPAD, CPAD)
    bias_pad = jnp.zeros((CPAD,), jnp.float32).at[:cout_real].set(shift)

    # im2col per phase on the pad-1 input; K-order (dy, dx, c) matches the weights
    xp = jnp.pad(feat, ((0, 0), (1, 1), (1, 1), (0, 0)))
    a_phases = []
    for ry in (0, 1):
        for rx in (0, 1):
            taps = [xp[:, ry + dy:ry + dy + Hin, rx + dx:rx + dx + Win, :]
                    for dy in (0, 1) for dx in (0, 1)]
            ap = jnp.stack(taps, axis=3)                      # (B, Hin, Win, 4, CPAD)
            a_phases.append(ap.reshape(B * Hin * Win, 4 * CPAD))
    a_all = jnp.stack(a_phases, axis=0)                       # (4, B*H*W, 4*CPAD)

    y = batched_gemm_bias_relu(a_all, w_all, bias_pad, relu=True)  # (4, B*H*W, CPAD)
    y = y.reshape(2, 2, B, Hin, Win, CPAD)                    # (ry, rx, b, py, px, c)
    y = y.transpose(2, 3, 0, 4, 1, 5).reshape(B, 2 * Hin, 2 * Win, CPAD)
    return y


# ---------------------------------------------------------------------------
# Parameter init (real/unpadded shapes, PyTorch conventions) and forward pass.
# ---------------------------------------------------------------------------
def init_params(key, feature_channel=64, deconv_dim=(32, 32), num_joints=4, patch=8):
    ks = jax.random.split(key, 4 + 5 * len(deconv_dim) + 2)
    p = {}
    p["stem_w"] = 0.05 * jax.random.normal(ks[0], (3 * patch * patch, feature_channel), jnp.float32)
    p["stem_b"] = 0.05 * jax.random.normal(ks[1], (feature_channel,), jnp.float32)
    cin = feature_channel
    for i, cout in enumerate(deconv_dim):
        base = 2 + 5 * i
        p[f"deconv{i}_w"] = 0.05 * jax.random.normal(ks[base + 0], (cin, cout, 4, 4), jnp.float32)
        p[f"bn{i}_gamma"] = 1.0 + 0.05 * jax.random.normal(ks[base + 1], (cout,), jnp.float32)
        p[f"bn{i}_beta"] = 0.05 * jax.random.normal(ks[base + 2], (cout,), jnp.float32)
        p[f"bn{i}_mean"] = 0.05 * jax.random.normal(ks[base + 3], (cout,), jnp.float32)
        p[f"bn{i}_var"] = jax.random.uniform(ks[base + 4], (cout,), jnp.float32, 0.5, 1.5)
        cin = cout
    p["final_w"] = 0.05 * jax.random.normal(ks[-2], (num_joints, cin, 1, 1), jnp.float32)
    p["final_b"] = 0.05 * jax.random.normal(ks[-1], (num_joints,), jnp.float32)
    return p


def simple_landmark_forward(x_nchw, params, deconv_dim=(32, 32), num_joints=4,
                            heatmap_size=(16, 16)):
    # single relayout at the boundary; everything downstream stays NHWC
    x = jnp.transpose(x_nchw, (0, 2, 3, 1)).astype(jnp.float32)
    out = stem_conv(x, params["stem_w"], params["stem_b"])
    for i in range(len(deconv_dim)):
        out = conv_transpose2x_bn_relu(
            out,
            params[f"deconv{i}_w"],
            params[f"bn{i}_gamma"],
            params[f"bn{i}_beta"],
            params[f"bn{i}_mean"],
            params[f"bn{i}_var"],
        )
    H, W = heatmap_size
    hm, norm_hm, hm_x, hm_y, pred_jts, maxvals = heatmap_head(
        out, params["final_w"], params["final_b"], num_joints, H, W)
    return dict(heatmap=hm, norm_heatmap=norm_hm, hm_x=hm_x, hm_y=hm_y,
                pred_jts=pred_jts, maxvals=maxvals)


if __name__ == "__main__":
    key = jax.random.PRNGKey(0)
    kx, kp = jax.random.split(key)

    # small config: NUM_JOINTS=4, HEATMAP_SIZE=[16,16], NUM_DECONV_FILTERS=[32,32],
    # stand-in feature_channel=64, input image NCHW (2, 3, 32, 32)
    x = jax.random.normal(kx, (2, 3, 32, 32), jnp.float32)
    params = init_params(kp, feature_channel=64, deconv_dim=(32, 32), num_joints=4)

    fwd = jax.jit(lambda inp: simple_landmark_forward(inp, params))
    out = fwd(x)
    jax.block_until_ready(out)

    assert out["heatmap"].shape == (2, 4, 16, 16)
    assert out["norm_heatmap"].shape == (2, 4, 16, 16)
    assert out["hm_x"].shape == (2, 4, 16)
    assert out["hm_y"].shape == (2, 4, 16)
    assert out["pred_jts"].shape == (2, 4, 2)
    assert out["maxvals"].shape == (2, 4, 1)
    sums = jnp.sum(out["norm_heatmap"].reshape(2, 4, -1), axis=-1)
    assert bool(jnp.allclose(sums, 1.0, atol=2e-3))            # approx-recip tolerance
    assert bool(jnp.all(jnp.isfinite(out["pred_jts"])))
    assert bool(jnp.all(out["maxvals"] > 0.0))

    print("KERNEL_OK")
</pallas_src>

<mosaic_0001>
module attributes {stable_mosaic.version = 11 : i64} {
  func.func @_gemm_bias_relu_kernel(%arg0: i32, %arg1: i32, %arg2: memref<1x32x192xbf16, #tpu.memory_space<vmem>>, %arg3: memref<1x192x128xbf16, #tpu.memory_space<vmem>>, %arg4: memref<1x128xf32, #tpu.memory_space<vmem>>, %arg5: memref<1x32x128xbf16, #tpu.memory_space<vmem>>) attributes {dimension_semantics = [#tpu.dimension_semantics<parallel>, #tpu.dimension_semantics<parallel>], iteration_bounds = array<i64: 1, 1>, scalar_prefetch = 0 : i64, scratch_operands = 0 : i64, tpu.core_type = #tpu.core_type<tc>, window_params = [{transform_indices = @transform_0, window_bounds = array<i64: 1, 32, 192>}, {transform_indices = @transform_1, window_bounds = array<i64: 1, 192, 128>}, {pipeline_mode = #tpu.pipeline_mode<synchronous>, transform_indices = @transform_2, window_bounds = array<i64: 1, 128>}, {transform_indices = @transform_3, window_bounds = array<i64: 1, 32, 128>}]} {
    %c0 = arith.constant 0 : index
    %c0_0 = arith.constant 0 : index
    %c0_1 = arith.constant 0 : index
    %0 = vector.load %arg2[%c0, %c0_0, %c0_1] : memref<1x32x192xbf16, #tpu.memory_space<vmem>>, vector<1x32x192xbf16>
    %1 = vector.shape_cast %0 : vector<1x32x192xbf16> to vector<32x192xbf16>
    %c0_2 = arith.constant 0 : index
    %c0_3 = arith.constant 0 : index
    %c0_4 = arith.constant 0 : index
    %2 = vector.load %arg3[%c0_2, %c0_3, %c0_4] : memref<1x192x128xbf16, #tpu.memory_space<vmem>>, vector<1x192x128xbf16>
    %3 = vector.shape_cast %2 : vector<1x192x128xbf16> to vector<192x128xbf16>
    %cst = arith.constant dense<0.000000e+00> : vector<32x128xf32>
    %4 = tpu.matmul %1, %3, %cst {dimension_numbers = #tpu.dot_dimension_numbers<[1], [0], [0], [1], [0, 0, 1, 1], [], []>} : vector<32x192xbf16>, vector<192x128xbf16>, vector<32x128xf32> -> vector<32x128xf32>
    %c0_5 = arith.constant 0 : index
    %c0_6 = arith.constant 0 : index
    %5 = vector.load %arg4[%c0_5, %c0_6] : memref<1x128xf32, #tpu.memory_space<vmem>>, vector<1x128xf32>
    %6 = vector.broadcast %5 : vector<1x128xf32> to vector<32x128xf32>
    %7 = arith.addf %4, %6 : vector<32x128xf32>
    %cst_7 = arith.constant 0.000000e+00 : f32
    %8 = vector.broadcast %cst_7 : f32 to vector<32x128xf32>
    %9 = arith.maximumf %7, %8 : vector<32x128xf32>
    %10 = arith.truncf %9 : vector<32x128xf32> to vector<32x128xbf16>
    %c0_8 = arith.constant 0 : index
    %c0_9 = arith.constant 0 : index
    %c0_10 = arith.constant 0 : index
    %11 = vector.load %arg5[%c0_8, %c0_9, %c0_10] : memref<1x32x128xbf16, #tpu.memory_space<vmem>>, vector<1x32x128xbf16>
    %12 = vector.shape_cast %11 : vector<1x32x128xbf16> to vector<32x128xbf16>
    %13 = vector.shape_cast %10 : vector<32x128xbf16> to vector<1x32x128xbf16>
    tpu.vector_store %arg5[%c0_8, %c0_9, %c0_10], %13 {strides = array<i32>} : memref<1x32x128xbf16, #tpu.memory_space<vmem>>, vector<1x32x128xbf16>,
    return
  }
  func.func @transform_0(%arg0: i32, %arg1: i32) -> (i32, i32, i32) {
    %c0_i32 = arith.constant 0 : i32
    %c0_i32_0 = arith.constant 0 : i32
    return %arg0, %arg1, %c0_i32 : i32, i32, i32
  }
  func.func @transform_1(%arg0: i32, %arg1: i32) -> (i32, i32, i32) {
    %c0_i32 = arith.constant 0 : i32
    %c0_i32_0 = arith.constant 0 : i32
    %c0_i32_1 = arith.constant 0 : i32
    return %arg0, %c0_i32, %c0_i32_0 : i32, i32, i32
  }
  func.func @transform_2(%arg0: i32, %arg1: i32) -> (i32, i32) {
    %c0_i32 = arith.constant 0 : i32
    %c0_i32_0 = arith.constant 0 : i32
    %c0_i32_1 = arith.constant 0 : i32
    return %c0_i32, %c0_i32_0 : i32, i32
  }
  func.func @transform_3(%arg0: i32, %arg1: i32) -> (i32, i32, i32) {
    %c0_i32 = arith.constant 0 : i32
    %c0_i32_0 = arith.constant 0 : i32
    return %arg0, %arg1, %c0_i32 : i32, i32, i32
  }
}

module attributes {stable_mosaic.version = 11 : i64} {
  func.func @_gemm_bias_relu_kernel(%arg0: i32, %arg1: i32, %arg2: memref<1x32x512xbf16, #tpu.memory_space<vmem>>, %arg3: memref<1x512x128xbf16, #tpu.memory_space<vmem>>, %arg4: memref<1x128xf32, #tpu.memory_space<vmem>>, %arg5: memref<1x32x128xbf16, #tpu.memory_space<vmem>>) attributes {dimension_semantics = [#tpu.dimension_semantics<parallel>, #tpu.dimension_semantics<parallel>], iteration_bounds = array<i64: 4, 1>, scalar_prefetch = 0 : i64, scratch_operands = 0 : i64, tpu.core_type = #tpu.core_type<tc>, window_params = [{transform_indices = @transform_0, window_bounds = array<i64: 1, 32, 512>}, {transform_indices = @transform_1, window_bounds = array<i64: 1, 512, 128>}, {pipeline_mode = #tpu.pipeline_mode<synchronous>, transform_indices = @transform_2, window_bounds = array<i64: 1, 128>}, {transform_indices = @transform_3, window_bounds = array<i64: 1, 32, 128>}]} {
    %c0 = arith.constant 0 : index
    %c0_0 = arith.constant 0 : index
    %c0_1 = arith.constant 0 : index
    %0 = vector.load %arg2[%c0, %c0_0, %c0_1] : memref<1x32x512xbf16, #tpu.memory_space<vmem>>, vector<1x32x512xbf16>
    %1 = vector.shape_cast %0 : vector<1x32x512xbf16> to vector<32x512xbf16>
    %c0_2 = arith.constant 0 : index
    %c0_3 = arith.constant 0 : index
    %c0_4 = arith.constant 0 : index
    %2 = vector.load %arg3[%c0_2, %c0_3, %c0_4] : memref<1x512x128xbf16, #tpu.memory_space<vmem>>, vector<1x512x128xbf16>
    %3 = vector.shape_cast %2 : vector<1x512x128xbf16> to vector<512x128xbf16>
    %cst = arith.constant dense<0.000000e+00> : vector<32x128xf32>
    %4 = tpu.matmul %1, %3, %cst {dimension_numbers = #tpu.dot_dimension_numbers<[1], [0], [0], [1], [0, 0, 1, 1], [], []>} : vector<32x512xbf16>, vector<512x128xbf16>, vector<32x128xf32> -> vector<32x128xf32>
    %c0_5 = arith.constant 0 : index
    %c0_6 = arith.constant 0 : index
    %5 = vector.load %arg4[%c0_5, %c0_6] : memref<1x128xf32, #tpu.memory_space<vmem>>, vector<1x128xf32>
    %6 = vector.broadcast %5 : vector<1x128xf32> to vector<32x128xf32>
    %7 = arith.addf %4, %6 : vector<32x128xf32>
    %cst_7 = arith.constant 0.000000e+00 : f32
    %8 = vector.broadcast %cst_7 : f32 to vector<32x128xf32>
    %9 = arith.maximumf %7, %8 : vector<32x128xf32>
    %10 = arith.truncf %9 : vector<32x128xf32> to vector<32x128xbf16>
    %c0_8 = arith.constant 0 : index
    %c0_9 = arith.constant 0 : index
    %c0_10 = arith.constant 0 : index
    %11 = vector.load %arg5[%c0_8, %c0_9, %c0_10] : memref<1x32x128xbf16, #tpu.memory_space<vmem>>, vector<1x32x128xbf16>
    %12 = vector.shape_cast %11 : vector<1x32x128xbf16> to vector<32x128xbf16>
    %13 = vector.shape_cast %10 : vector<32x128xbf16> to vector<1x32x128xbf16>
    tpu.vector_store %arg5[%c0_8, %c0_9, %c0_10], %13 {strides = array<i32>} : memref<1x32x128xbf16, #tpu.memory_space<vmem>>, vector<1x32x128xbf16>,
    return
  }
  func.func @transform_0(%arg0: i32, %arg1: i32) -> (i32, i32, i32) {
    %c0_i32 = arith.constant 0 : i32
    %c0_i32_0 = arith.constant 0 : i32
    return %arg0, %arg1, %c0_i32 : i32, i32, i32
  }
  func.func @transform_1(%arg0: i32, %arg1: i32) -> (i32, i32, i32) {
    %c0_i32 = arith.constant 0 : i32
    %c0_i32_0 = arith.constant 0 : i32
    %c0_i32_1 = arith.constant 0 : i32
    return %arg0, %c0_i32, %c0_i32_0 : i32, i32, i32
  }
  func.func @transform_2(%arg0: i32, %arg1: i32) -> (i32, i32) {
    %c0_i32 = arith.constant 0 : i32
    %c0_i32_0 = arith.constant 0 : i32
    %c0_i32_1 = arith.constant 0 : i32
    return %c0_i32, %c0_i32_0 : i32, i32
  }
  func.func @transform_3(%arg0: i32, %arg1: i32) -> (i32, i32, i32) {
    %c0_i32 = arith.constant 0 : i32
    %c0_i32_0 = arith.constant 0 : i32
    return %arg0, %arg1, %c0_i32 : i32, i32, i32
  }
}

module attributes {stable_mosaic.version = 11 : i64} {
  func.func @_gemm_bias_relu_kernel(%arg0: i32, %arg1: i32, %arg2: memref<1x128x512xbf16, #tpu.memory_space<vmem>>, %arg3: memref<1x512x128xbf16, #tpu.memory_space<vmem>>, %arg4: memref<1x128xf32, #tpu.memory_space<vmem>>, %arg5: memref<1x128x128xbf16, #tpu.memory_space<vmem>>) attributes {dimension_semantics = [#tpu.dimension_semantics<parallel>, #tpu.dimension_semantics<parallel>], iteration_bounds = array<i64: 4, 1>, scalar_prefetch = 0 : i64, scratch_operands = 0 : i64, tpu.core_type = #tpu.core_type<tc>, window_params = [{transform_indices = @transform_0, window_bounds = array<i64: 1, 128, 512>}, {transform_indices = @transform_1, window_bounds = array<i64: 1, 512, 128>}, {pipeline_mode = #tpu.pipeline_mode<synchronous>, transform_indices = @transform_2, window_bounds = array<i64: 1, 128>}, {transform_indices = @transform_3, window_bounds = array<i64: 1, 128, 128>}]} {
    %c0 = arith.constant 0 : index
    %c0_0 = arith.constant 0 : index
    %c0_1 = arith.constant 0 : index
    %0 = vector.load %arg2[%c0, %c0_0, %c0_1] : memref<1x128x512xbf16, #tpu.memory_space<vmem>>, vector<1x128x512xbf16>
    %1 = vector.shape_cast %0 : vector<1x128x512xbf16> to vector<128x512xbf16>
    %c0_2 = arith.constant 0 : index
    %c0_3 = arith.constant 0 : index
    %c0_4 = arith.constant 0 : index
    %2 = vector.load %arg3[%c0_2, %c0_3, %c0_4] : memref<1x512x128xbf16, #tpu.memory_space<vmem>>, vector<1x512x128xbf16>
    %3 = vector.shape_cast %2 : vector<1x512x128xbf16> to vector<512x128xbf16>
    %cst = arith.constant dense<0.000000e+00> : vector<128x128xf32>
    %4 = tpu.matmul %1, %3, %cst {dimension_numbers = #tpu.dot_dimension_numbers<[1], [0], [0], [1], [0, 0, 1, 1], [], []>} : vector<128x512xbf16>, vector<512x128xbf16>, vector<128x128xf32> -> vector<128x128xf32>
    %c0_5 = arith.constant 0 : index
    %c0_6 = arith.constant 0 : index
    %5 = vector.load %arg4[%c0_5, %c0_6] : memref<1x128xf32, #tpu.memory_space<vmem>>, vector<1x128xf32>
    %6 = vector.broadcast %5 : vector<1x128xf32> to vector<128x128xf32>
    %7 = arith.addf %4, %6 : vector<128x128xf32>
    %cst_7 = arith.constant 0.000000e+00 : f32
    %8 = vector.broadcast %cst_7 : f32 to vector<128x128xf32>
    %9 = arith.maximumf %7, %8 : vector<128x128xf32>
    %10 = arith.truncf %9 : vector<128x128xf32> to vector<128x128xbf16>
    %c0_8 = arith.constant 0 : index
    %c0_9 = arith.constant 0 : index
    %c0_10 = arith.constant 0 : index
    %11 = vector.load %arg5[%c0_8, %c0_9, %c0_10] : memref<1x128x128xbf16, #tpu.memory_space<vmem>>, vector<1x128x128xbf16>
    %12 = vector.shape_cast %11 : vector<1x128x128xbf16> to vector<128x128xbf16>
    %13 = vector.shape_cast %10 : vector<128x128xbf16> to vector<1x128x128xbf16>
    tpu.vector_store %arg5[%c0_8, %c0_9, %c0_10], %13 {strides = array<i32>} : memref<1x128x128xbf16, #tpu.memory_space<vmem>>, vector<1x128x128xbf16>,
    return
  }
  func.func @transform_0(%arg0: i32, %arg1: i32) -> (i32, i32, i32) {
    %c0_i32 = arith.constant 0 : i32
    %c0_i32_0 = arith.constant 0 : i32
    return %arg0, %arg1, %c0_i32 : i32, i32, i32
  }
  func.func @transform_1(%arg0: i32, %arg1: i32) -> (i32, i32, i32) {
    %c0_i32 = arith.constant 0 : i32
    %c0_i32_0 = arith.constant 0 : i32
    %c0_i32_1 = arith.constant 0 : i32
    return %arg0, %c0_i32, %c0_i32_0 : i32, i32, i32
  }
  func.func @transform_2(%arg0: i32, %arg1: i32) -> (i32, i32) {
    %c0_i32 = arith.constant 0 : i32
    %c0_i32_0 = arith.constant 0 : i32
    %c0_i32_1 = arith.constant 0 : i32
    return %c0_i32, %c0_i32_0 : i32, i32
  }
  func.func @transform_3(%arg0: i32, %arg1: i32) -> (i32, i32, i32) {
    %c0_i32 = arith.constant 0 : i32
    %c0_i32_0 = arith.constant 0 : i32
    return %arg0, %arg1, %c0_i32 : i32, i32, i32
  }
}

module attributes {stable_mosaic.version = 11 : i64} {
  func.func @_head_kernel(%arg0: i32, %arg1: memref<1x256x128xbf16, #tpu.memory_space<vmem>>, %arg2: memref<8x128xbf16, #tpu.memory_space<vmem>>, %arg3: memref<8x1xf32, #tpu.memory_space<vmem>>, %arg4: memref<256x16xf32, #tpu.memory_space<vmem>>, %arg5: memref<256x16xf32, #tpu.memory_space<vmem>>, %arg6: memref<1x4x256xf32, #tpu.memory_space<vmem>>, %arg7: memref<1x4x256xf32, #tpu.memory_space<vmem>>, %arg8: memref<1x4x16xf32, #tpu.memory_space<vmem>>, %arg9: memref<1x4x16xf32, #tpu.memory_space<vmem>>, %arg10: memref<1x4x2xf32, #tpu.memory_space<vmem>>, %arg11: memref<1x4x1xf32, #tpu.memory_space<vmem>>) attributes {dimension_semantics = [#tpu.dimension_semantics<parallel>], iteration_bounds = array<i64: 2>, scalar_prefetch = 0 : i64, scratch_operands = 0 : i64, tpu.core_type = #tpu.core_type<tc>, window_params = [{transform_indices = @transform_0, window_bounds = array<i64: 1, 256, 128>}, {pipeline_mode = #tpu.pipeline_mode<synchronous>, transform_indices = @transform_1, window_bounds = array<i64: 8, 128>}, {pipeline_mode = #tpu.pipeline_mode<synchronous>, transform_indices = @transform_2, window_bounds = array<i64: 8, 1>}, {pipeline_mode = #tpu.pipeline_mode<synchronous>, transform_indices = @transform_3, window_bounds = array<i64: 256, 16>}, {pipeline_mode = #tpu.pipeline_mode<synchronous>, transform_indices = @transform_4, window_bounds = array<i64: 256, 16>}, {transform_indices = @transform_5, window_bounds = array<i64: 1, 4, 256>}, {transform_indices = @transform_6, window_bounds = array<i64: 1, 4, 256>}, {transform_indices = @transform_7, window_bounds = array<i64: 1, 4, 16>}, {transform_indices = @transform_8, window_bounds = array<i64: 1, 4, 16>}, {transform_indices = @transform_9, window_bounds = array<i64: 1, 4, 2>}, {transform_indices = @transform_10, window_bounds = array<i64: 1, 4, 1>}]} {
    %c0 = arith.constant 0 : index
    %c0_0 = arith.constant 0 : index
    %c0_1 = arith.constant 0 : index
    %0 = vector.load %arg1[%c0, %c0_0, %c0_1] : memref<1x256x128xbf16, #tpu.memory_space<vmem>>, vector<1x256x128xbf16>
    %1 = vector.shape_cast %0 : vector<1x256x128xbf16> to vector<256x128xbf16>
    %c0_2 = arith.constant 0 : index
    %c0_3 = arith.constant 0 : index
    %2 = vector.load %arg2[%c0_2, %c0_3] : memref<8x128xbf16, #tpu.memory_space<vmem>>, vector<8x128xbf16>
    %cst = arith.constant dense<0.000000e+00> : vector<8x256xf32>
    %3 = tpu.matmul %2, %1, %cst {dimension_numbers = #tpu.dot_dimension_numbers<[1], [1], [0], [0], [0, 0, 1, 0], [], []>} : vector<8x128xbf16>, vector<256x128xbf16>, vector<8x256xf32> -> vector<8x256xf32>
    %c0_4 = arith.constant 0 : index
    %c0_5 = arith.constant 0 : index
    %4 = vector.load %arg3[%c0_4, %c0_5] : memref<8x1xf32, #tpu.memory_space<vmem>>, vector<8x1xf32>
    %5 = vector.broadcast %4 : vector<8x1xf32> to vector<8x256xf32>
    %6 = arith.addf %3, %5 : vector<8x256xf32>
    %7 = vector.extract_strided_slice %6 {offsets = [0, 0], sizes = [4, 256], strides = [1, 1]} : vector<8x256xf32> to vector<4x256xf32>
    %c0_6 = arith.constant 0 : index
    %c0_7 = arith.constant 0 : index
    %c0_8 = arith.constant 0 : index
    %8 = vector.load %arg6[%c0_6, %c0_7, %c0_8] : memref<1x4x256xf32, #tpu.memory_space<vmem>>, vector<1x4x256xf32>
    %9 = vector.shape_cast %8 : vector<1x4x256xf32> to vector<4x256xf32>
    %10 = vector.shape_cast %7 : vector<4x256xf32> to vector<1x4x256xf32>
    tpu.vector_store %arg6[%c0_6, %c0_7, %c0_8], %10 {strides = array<i32>} : memref<1x4x256xf32, #tpu.memory_space<vmem>>, vector<1x4x256xf32>,
    %cst_9 = arith.constant dense<0xFF800000> : vector<8xf32>
    %11 = vector.multi_reduction <maximumf>, %6, %cst_9 [1] : vector<8x256xf32> to vector<8xf32>
    %12 = vector.shape_cast %11 : vector<8xf32> to vector<8x1xf32>
    %13 = vector.broadcast %12 : vector<8x1xf32> to vector<8x256xf32>
    %14 = arith.subf %6, %13 : vector<8x256xf32>
    %15 = math.exp %14 : vector<8x256xf32>
    %cst_10 = arith.constant dense<0.000000e+00> : vector<8xf32>
    %16 = vector.multi_reduction <add>, %15, %cst_10 [1] : vector<8x256xf32> to vector<8xf32>
    %17 = vector.shape_cast %16 : vector<8xf32> to vector<8x1xf32>
    %18 = tpu.reciprocal %17 {approx = true} : vector<8x1xf32> -> vector<8x1xf32>
    %19 = vector.broadcast %18 : vector<8x1xf32> to vector<8x256xf32>
    %20 = arith.mulf %15, %19 : vector<8x256xf32>
    %cst_11 = arith.constant dense<0xFF800000> : vector<8xf32>
    %21 = vector.multi_reduction <maximumf>, %20, %cst_11 [1] : vector<8x256xf32> to vector<8xf32>
    %22 = vector.shape_cast %21 : vector<8xf32> to vector<8x1xf32>
    %cst_12 = arith.constant dense<0.000000e+00> : vector<8xf32>
    %23 = vector.multi_reduction <add>, %20, %cst_12 [1] : vector<8x256xf32> to vector<8xf32>
    %24 = vector.shape_cast %23 : vector<8xf32> to vector<8x1xf32>
    %25 = tpu.reciprocal %24 {approx = true} : vector<8x1xf32> -> vector<8x1xf32>
    %26 = vector.broadcast %25 : vector<8x1xf32> to vector<8x256xf32>
    %27 = arith.mulf %20, %26 : vector<8x256xf32>
    %28 = vector.extract_strided_slice %27 {offsets = [0, 0], sizes = [4, 256], strides = [1, 1]} : vector<8x256xf32> to vector<4x256xf32>
    %c0_13 = arith.constant 0 : index
    %c0_14 = arith.constant 0 : index
    %c0_15 = arith.constant 0 : index
    %29 = vector.load %arg7[%c0_13, %c0_14, %c0_15] : memref<1x4x256xf32, #tpu.memory_space<vmem>>, vector<1x4x256xf32>
    %30 = vector.shape_cast %29 : vector<1x4x256xf32> to vector<4x256xf32>
    %31 = vector.shape_cast %28 : vector<4x256xf32> to vector<1x4x256xf32>
    tpu.vector_store %arg7[%c0_13, %c0_14, %c0_15], %31 {strides = array<i32>} : memref<1x4x256xf32, #tpu.memory_space<vmem>>, vector<1x4x256xf32>,
    %c0_16 = arith.constant 0 : index
    %c0_17 = arith.constant 0 : index
    %32 = vector.load %arg4[%c0_16, %c0_17] : memref<256x16xf32, #tpu.memory_space<vmem>>, vector<256x16xf32>
    %cst_18 = arith.constant dense<0.000000e+00> : vector<8x16xf32>
    %33 = tpu.matmul %27, %32, %cst_18 {dimension_numbers = #tpu.dot_dimension_numbers<[1], [0], [0], [1], [0, 0, 1, 1], [], []>} : vector<8x256xf32>, vector<256x16xf32>, vector<8x16xf32> -> vector<8x16xf32>
    %c0_19 = arith.constant 0 : index
    %c0_20 = arith.constant 0 : index
    %34 = vector.load %arg5[%c0_19, %c0_20] : memref<256x16xf32, #tpu.memory_space<vmem>>, vector<256x16xf32>
    %cst_21 = arith.constant dense<0.000000e+00> : vector<8x16xf32>
    %35 = tpu.matmul %27, %34, %cst_21 {dimension_numbers = #tpu.dot_dimension_numbers<[1], [0], [0], [1], [0, 0, 1, 1], [], []>} : vector<8x256xf32>, vector<256x16xf32>, vector<8x16xf32> -> vector<8x16xf32>
    %36 = vector.extract_strided_slice %33 {offsets = [0, 0], sizes = [4, 16], strides = [1, 1]} : vector<8x16xf32> to vector<4x16xf32>
    %c0_22 = arith.constant 0 : index
    %c0_23 = arith.constant 0 : index
    %c0_24 = arith.constant 0 : index
    %37 = vector.load %arg8[%c0_22, %c0_23, %c0_24] : memref<1x4x16xf32, #tpu.memory_space<vmem>>, vector<1x4x16xf32>
    %38 = vector.shape_cast %37 : vector<1x4x16xf32> to vector<4x16xf32>
    %39 = vector.shape_cast %36 : vector<4x16xf32> to vector<1x4x16xf32>
    tpu.vector_store %arg8[%c0_22, %c0_23, %c0_24], %39 {strides = array<i32>} : memref<1x4x16xf32, #tpu.memory_space<vmem>>, vector<1x4x16xf32>,
    %40 = vector.extract_strided_slice %35 {offsets = [0, 0], sizes = [4, 16], strides = [1, 1]} : vector<8x16xf32> to vector<4x16xf32>
    %c0_25 = arith.constant 0 : index
    %c0_26 = arith.constant 0 : index
    %c0_27 = arith.constant 0 : index
    %41 = vector.load %arg9[%c0_25, %c0_26, %c0_27] : memref<1x4x16xf32, #tpu.memory_space<vmem>>, vector<1x4x16xf32>
    %42 = vector.shape_cast %41 : vector<1x4x16xf32> to vector<4x16xf32>
    %43 = vector.shape_cast %40 : vector<4x16xf32> to vector<1x4x16xf32>
    tpu.vector_store %arg9[%c0_25, %c0_26, %c0_27], %43 {strides = array<i32>} : memref<1x4x16xf32, #tpu.memory_space<vmem>>, vector<1x4x16xf32>,
    %44 = tpu.iota {dimensions = array<i32: 1>} : vector<8x16xi32>
    %45 = arith.sitofp %44 : vector<8x16xi32> to vector<8x16xf32>
    %cst_28 = arith.constant 6.250000e-02 : f32
    %46 = vector.broadcast %cst_28 : f32 to vector<8x16xf32>
    %47 = arith.mulf %45, %46 : vector<8x16xf32>
    %48 = tpu.iota {dimensions = array<i32: 1>} : vector<8x16xi32>
    %49 = arith.sitofp %48 : vector<8x16xi32> to vector<8x16xf32>
    %cst_29 = arith.constant 6.250000e-02 : f32
    %50 = vector.broadcast %cst_29 : f32 to vector<8x16xf32>
    %51 = arith.mulf %49, %50 : vector<8x16xf32>
    %52 = arith.mulf %33, %47 : vector<8x16xf32>
    %cst_30 = arith.constant dense<0.000000e+00> : vector<8xf32>
    %53 = vector.multi_reduction <add>, %52, %cst_30 [1] : vector<8x16xf32> to vector<8xf32>
    %54 = vector.shape_cast %53 : vector<8xf32> to vector<8x1xf32>
    %cst_31 = arith.constant 5.000000e-01 : f32
    %55 = vector.broadcast %cst_31 : f32 to vector<8x1xf32>
    %56 = arith.subf %54, %55 : vector<8x1xf32>
    %57 = arith.mulf %35, %51 : vector<8x16xf32>
    %cst_32 = arith.constant dense<0.000000e+00> : vector<8xf32>
    %58 = vector.multi_reduction <add>, %57, %cst_32 [1] : vector<8x16xf32> to vector<8xf32>
    %59 = vector.shape_cast %58 : vector<8xf32> to vector<8x1xf32>
    %cst_33 = arith.constant 5.000000e-01 : f32
    %60 = vector.broadcast %cst_33 : f32 to vector<8x1xf32>
    %61 = arith.subf %59, %60 : vector<8x1xf32>
    %62 = tpu.concatenate %56, %61 in 1 : vector<8x1xf32>, vector<8x1xf32> -> vector<8x2xf32>
    %63 = vector.extract_strided_slice %62 {offsets = [0, 0], sizes = [4, 2], strides = [1, 1]} : vector<8x2xf32> to vector<4x2xf32>
    %c0_34 = arith.constant 0 : index
    %c0_35 = arith.constant 0 : index
    %c0_36 = arith.constant 0 : index
    %64 = vector.load %arg10[%c0_34, %c0_35, %c0_36] : memref<1x4x2xf32, #tpu.memory_space<vmem>>, vector<1x4x2xf32>
    %65 = vector.shape_cast %64 : vector<1x4x2xf32> to vector<4x2xf32>
    %66 = vector.shape_cast %63 : vector<4x2xf32> to vector<1x4x2xf32>
    tpu.vector_store %arg10[%c0_34, %c0_35, %c0_36], %66 {strides = array<i32>} : memref<1x4x2xf32, #tpu.memory_space<vmem>>, vector<1x4x2xf32>,
    %67 = vector.extract_strided_slice %22 {offsets = [0, 0], sizes = [4, 1], strides = [1, 1]} : vector<8x1xf32> to vector<4x1xf32>
    %c0_37 = arith.constant 0 : index
    %c0_38 = arith.constant 0 : index
    %c0_39 = arith.constant 0 : index
    %68 = vector.load %arg11[%c0_37, %c0_38, %c0_39] : memref<1x4x1xf32, #tpu.memory_space<vmem>>, vector<1x4x1xf32>
    %69 = vector.shape_cast %68 : vector<1x4x1xf32> to vector<4x1xf32>
    %70 = vector.shape_cast %67 : vector<4x1xf32> to vector<1x4x1xf32>
    tpu.vector_store %arg11[%c0_37, %c0_38, %c0_39], %70 {strides = array<i32>} : memref<1x4x1xf32, #tpu.memory_space<vmem>>, vector<1x4x1xf32>,
    return
  }
  func.func @transform_0(%arg0: i32) -> (i32, i32, i32) {
    %c0_i32 = arith.constant 0 : i32
    %c0_i32_0 = arith.constant 0 : i32
    %c0_i32_1 = arith.constant 0 : i32
    return %arg0, %c0_i32, %c0_i32_0 : i32, i32, i32
  }
  func.func @transform_1(%arg0: i32) -> (i32, i32) {
    %c0_i32 = arith.constant 0 : i32
    %c0_i32_0 = arith.constant 0 : i32
    %c0_i32_1 = arith.constant 0 : i32
    return %c0_i32, %c0_i32_0 : i32, i32
  }
  func.func @transform_2(%arg0: i32) -> (i32, i32) {
    %c0_i32 = arith.constant 0 : i32
    %c0_i32_0 = arith.constant 0 : i32
    %c0_i32_1 = arith.constant 0 : i32
    return %c0_i32, %c0_i32_0 : i32, i32
  }
  func.func @transform_3(%arg0: i32) -> (i32, i32) {
    %c0_i32 = arith.constant 0 : i32
    %c0_i32_0 = arith.constant 0 : i32
    %c0_i32_1 = arith.constant 0 : i32
    return %c0_i32, %c0_i32_0 : i32, i32
  }
  func.func @transform_4(%arg0: i32) -> (i32, i32) {
    %c0_i32 = arith.constant 0 : i32
    %c0_i32_0 = arith.constant 0 : i32
    %c0_i32_1 = arith.constant 0 : i32
    return %c0_i32, %c0_i32_0 : i32, i32
  }
  func.func @transform_5(%arg0: i32) -> (i32, i32, i32) {
    %c0_i32 = arith.constant 0 : i32
    %c0_i32_0 = arith.constant 0 : i32
    %c0_i32_1 = arith.constant 0 : i32
    return %arg0, %c0_i32, %c0_i32_0 : i32, i32, i32
  }
  func.func @transform_6(%arg0: i32) -> (i32, i32, i32) {
    %c0_i32 = arith.constant 0 : i32
    %c0_i32_0 = arith.constant 0 : i32
    %c0_i32_1 = arith.constant 0 : i32
    return %arg0, %c0_i32, %c0_i32_0 : i32, i32, i32
  }
  func.func @transform_7(%arg0: i32) -> (i32, i32, i32) {
    %c0_i32 = arith.constant 0 : i32
    %c0_i32_0 = arith.constant 0 : i32
    %c0_i32_1 = arith.constant 0 : i32
    return %arg0, %c0_i32, %c0_i32_0 : i32, i32, i32
  }
  func.func @transform_8(%arg0: i32) -> (i32, i32, i32) {
    %c0_i32 = arith.constant 0 : i32
    %c0_i32_0 = arith.constant 0 : i32
    %c0_i32_1 = arith.constant 0 : i32
    return %arg0, %c0_i32, %c0_i32_0 : i32, i32, i32
  }
  func.func @transform_9(%arg0: i32) -> (i32, i32, i32) {
    %c0_i32 = arith.constant 0 : i32
    %c0_i32_0 = arith.constant 0 : i32
    %c0_i32_1 = arith.constant 0 : i32
    return %arg0, %c0_i32, %c0_i32_0 : i32, i32, i32
  }
  func.func @transform_10(%arg0: i32) -> (i32, i32, i32) {
    %c0_i32 = arith.constant 0 : i32
    %c0_i32_0 = arith.constant 0 : i32
    %c0_i32_1 = arith.constant 0 : i32
    return %arg0, %c0_i32, %c0_i32_0 : i32, i32, i32
  }
}

</mosaic_0001>

<llo_original>
// kernel: _lambda_.4
$region0: #{_lambda_.4}
  #allocation0 [shape = 'u32[]', space=smem, size = 0x4, offset = 0x4, fixed_abs, tag = 'smem constant byte address 0x4 - core index']
  #allocation1 [shape = 'u32[144,128]{1,0:T(1,128)}', space=vmem, size = 0x12000, scoped, tag = 'internal scratch']
  %s0 = inlined_call_operand.vmem [shape: bf16[1,32,192], index: 0, kind: input, shape index: {}]
  %s1 = inlined_call_operand.vmem [shape: bf16[1,192,128], index: 1, kind: input, shape index: {}]
  %s2 = inlined_call_operand.vmem [shape: f32[1,128], index: 2, kind: input, shape index: {}]
  %s3 = inlined_call_operand.vmem [shape: bf16[1,32,128], index: 3, kind: output, shape index: {}]
  %s4 = sld [smem:[#allocation0]]
  $region22: #{_lambda_.4} parent=0
    _
  %s6 = ssub.s32 1, %s4
  %s7 = scalar_select 0, %s6, %s4
  // Predicated region
  $region2: #{_lambda_.4} parent=0 // pred_check
    _
  $region3: #{_lambda_.4} parent=0 // pred_check_branch
    %9 = sbr.rel (0) target = $region5
  $region4: #{_lambda_.4} parent=0 // pred_region
    _
  $region5: #{_lambda_.4} parent=0 // pred_fallthru
    _
  // Predicated region
  $region6: #{_lambda_.4} parent=0 // pred_check
    _
  $region7: #{_lambda_.4} parent=0 // pred_check_branch
    %11 = sbr.rel (0) target = $region9
  $region8: #{_lambda_.4} parent=0 // pred_region
    _
  $region9: #{_lambda_.4} parent=0 // pred_fallthru
    _
  // Predicated region
  $region10: #{_lambda_.4} parent=0 // pred_check
    _
  $region11: #{_lambda_.4} parent=0 // pred_check_branch
    %13 = sbr.rel (0) target = $region13
  $region12: #{_lambda_.4} parent=0 // pred_region
    _
  $region13: #{_lambda_.4} parent=0 // pred_fallthru
    _
  %v15 = vld [vmem:[%s0] sm:$0xff]
  %v16 = vld [vmem:[%s0 + $0x8] sm:$0xff]
  %v17 = vld [vmem:[%s0 + $0x10] sm:$0xff]
  %v18 = vld [vmem:[%s0 + $0x18] sm:$0xff]
  %v19 = vld [vmem:[%s1] sm:$0xf]
  %v20 = vld [vmem:[%s1 + $0x4] sm:$0xf]
  %v21 = vld [vmem:[%s1 + $0x8] sm:$0xf]
  %v22 = vld [vmem:[%s1 + $0xc] sm:$0xf]
  %v23 = vld [vmem:[%s1 + $0x10] sm:$0xf]
  %v24 = vld [vmem:[%s1 + $0x14] sm:$0xf]
  %v25 = vld [vmem:[%s1 + $0x18] sm:$0xf]
  %v26 = vld [vmem:[%s1 + $0x1c] sm:$0xf]
  %v27 = vld [vmem:[%s1 + $0x20] sm:$0xf]
  %v28 = vld [vmem:[%s1 + $0x24] sm:$0xf]
  %v29 = vld [vmem:[%s1 + $0x28] sm:$0xf]
  %v30 = vld [vmem:[%s1 + $0x2c] sm:$0xf]
  %v31 = vld [vmem:[%s1 + $0x30] sm:$0xf]
  %v32 = vld [vmem:[%s1 + $0x34] sm:$0xf]
  %v33 = vld [vmem:[%s1 + $0x38] sm:$0xf]
  %v34 = vld [vmem:[%s1 + $0x3c] sm:$0xf]
  %v35 = vld [vmem:[%s1 + $0x40] sm:$0xf]
  %v36 = vld [vmem:[%s1 + $0x44] sm:$0xf]
  %v37 = vld [vmem:[%s1 + $0x48] sm:$0xf]
  %v38 = vld [vmem:[%s1 + $0x4c] sm:$0xf]
  %v39 = vld [vmem:[%s1 + $0x50] sm:$0xf]
  %v40 = vld [vmem:[%s1 + $0x54] sm:$0xf]
  %v41 = vld [vmem:[%s1 + $0x58] sm:$0xf]
  %v42 = vld [vmem:[%s1 + $0x5c] sm:$0xf]
  %v43 = vld [vmem:[%s2] sm:$0x1]
  %v45 = vlaneseq
  %v46 = vshrl.u32 %v45, 7
  %v47 = vsub.s32 0, %v46
  %v48 = vrot.slane %v43, %v47
  %v54 = vunpack.c.l.b16 %v15
  %v55 = vunpack.c.h.b16 %v15
  %v56 = vunpack.c.l.b16 %v16
  %v57 = vunpack.c.h.b16 %v16
  %v58 = vunpack.c.l.b16 %v17
  %v59 = vunpack.c.h.b16 %v17
  %v60 = vunpack.c.l.b16 %v18
  %v61 = vunpack.c.h.b16 %v18
  %v62 = vpack.c.b16 %v56, %v54
  %v63 = vpack.c.b16 %v57, %v55
  %v64 = vpack.c.b16 %v60, %v58
  %v65 = vpack.c.b16 %v61, %v59
  %v92 = vunpack.c.l.b16 %v19
  %v93 = vunpack.c.l.b16 %v20
  %v94 = vunpack.c.l.b16 %v21
  %v95 = vunpack.c.l.b16 %v22
  %v96 = vunpack.c.l.b16 %v23
  %v97 = vunpack.c.l.b16 %v24
  %v98 = vunpack.c.l.b16 %v25
  %v99 = vunpack.c.l.b16 %v26
  %v100 = vunpack.c.l.b16 %v27
  %v101 = vunpack.c.l.b16 %v28
  %v102 = vunpack.c.l.b16 %v29
  %v103 = vunpack.c.l.b16 %v30
  %v104 = vunpack.c.l.b16 %v31
  %v105 = vunpack.c.l.b16 %v32
  %v106 = vunpack.c.l.b16 %v33
  %v107 = vunpack.c.l.b16 %v34
  %v108 = vunpack.c.l.b16 %v35
  %v109 = vunpack.c.l.b16 %v36
  %v110 = vunpack.c.l.b16 %v37
  %v111 = vunpack.c.l.b16 %v38
  %v112 = vunpack.c.l.b16 %v39
  %v113 = vunpack.c.l.b16 %v40
  %v114 = vunpack.c.l.b16 %v41
  %v115 = vunpack.c.l.b16 %v42
  %v116 = vpack.c.b16 %v93, %v92
  %v117 = vpack.c.b16 %v95, %v94
  %v118 = vpack.c.b16 %v97, %v96
  %v119 = vpack.c.b16 %v99, %v98
  %v120 = vpack.c.b16 %v101, %v100
  %v121 = vpack.c.b16 %v103, %v102
  %v122 = vpack.c.b16 %v105, %v104
  %v123 = vpack.c.b16 %v107, %v106
  %v124 = vpack.c.b16 %v109, %v108
  %v125 = vpack.c.b16 %v111, %v110
  %v126 = vpack.c.b16 %v113, %v112
  %v127 = vpack.c.b16 %v115, %v114
  %vm140 = vcmask 523264
  %v142 = vsel %vm140, %v63, 0
  %v145 = vsel %vm140, %v65, 0
  %147 = vmatprep.subr.bf16.mxu0 0
  %148 = vmatpush1.bf16.msra.mxu0 %v123
  %149 = vmatprep.subr.bf16.mxu0 0
  %150 = vmatpush1.bf16.msra.mxu0 %v122
  %151 = vmatprep.subr.bf16.mxu0 0
  %152 = vmatpush1.bf16.msra.mxu0 %v121
  %153 = vmatprep.subr.bf16.mxu0 0
  %154 = vmatpush1.bf16.msra.mxu0 %v120
  %155 = vmatprep.subr.bf16.mxu0 0
  %156 = vmatpush1.bf16.msra.mxu0 %v119
  %157 = vmatprep.subr.bf16.mxu0 0
  %158 = vmatpush1.bf16.msra.mxu0 %v118
  %159 = vmatprep.subr.bf16.mxu0 0
  %160 = vmatpush1.bf16.msra.mxu0 %v117
  %161 = vmatprep.subr.bf16.mxu0 0
  %162 = vmatpush1.bf16.msra.mxu0 %v116
  %163 = vmatprep.subr.bf16.mxu0 0
  %164 = vmatpush2.bf16.msra.mxu0 0
  %165 = vmatprep.subr.bf16.mxu0 0
  %166 = vmatpush2.bf16.msra.mxu0 0
  %167 = vmatprep.subr.bf16.mxu0 0
  %168 = vmatpush2.bf16.msra.mxu0 0
  %169 = vmatprep.subr.bf16.mxu0 0
  %170 = vmatpush2.bf16.msra.mxu0 0
  %171 = vmatprep.subr.bf16.mxu0 0
  %172 = vmatpush2.bf16.msra.mxu0 %v127
  %173 = vmatprep.subr.bf16.mxu0 0
  %174 = vmatpush2.bf16.msra.mxu0 %v126
  %175 = vmatprep.subr.bf16.mxu0 0
  %176 = vmatpush2.bf16.msra.mxu0 %v125
  %177 = vmatprep.subr.bf16.mxu0 0
  %178 = vmatpush2.bf16.msra.mxu0 %v124
  %179 = vmatprep.mubr.bf16.mxu0 %v142
  %180 = vmatmul.mubr.bf16.gmra.mxu0 %v62
  %v181 = vpop.f32.mrf.mxu0
  %v182 = vadd.f32 %v48, %v181
  %v183 = vpop.f32.mrf.mxu0
  %v184 = vpop.f32.mrf.mxu0
  %v185 = vadd.f32 %v48, %v184
  %v186 = vpop.f32.mrf.mxu0
  %187 = vmatprep.mubr.bf16.mxu0 %v145
  %188 = vmatmul.mubr.bf16.gmra.mxu0 %v64
  %v189 = vpop.f32.mrf.mxu0
  %v190 = vadd.f32 %v48, %v189
  %v191 = vpop.f32.mrf.mxu0
  %v192 = vpop.f32.mrf.mxu0
  %v193 = vadd.f32 %v48, %v192
  %v194 = vpop.f32.mrf.mxu0
  %195 = vdwg.mxu0
  %v196 = vmax.f32 %v182, 0.0
  %v197 = vmax.f32 %v185, 0.0
  %v198 = vmax.f32 %v190, 0.0
  %v199 = vmax.f32 %v193, 0.0
  %v200 = vpack.c.bf16 %v197, %v196
  %v201 = vpack.c.bf16 %v199, %v198
  %v204 = vunpack.c.l.b16 %v200
  %v205 = vunpack.c.h.b16 %v200
  %v206 = vunpack.c.l.b16 %v201
  %v207 = vunpack.c.h.b16 %v201
  %v208 = vpack.c.b16 %v204, %v204
  %v209 = vpack.c.b16 %v205, %v205
  %v210 = vpack.c.b16 %v206, %v206
  %v211 = vpack.c.b16 %v207, %v207
  %216 = vst [vmem:[%s3] sm:$0xf] %v208
  %217 = vst [vmem:[%s3 + $0x4] sm:$0xf] %v209
  %218 = vst [vmem:[%s3 + $0x8] sm:$0xf] %v210
  %219 = vst [vmem:[%s3 + $0xc] sm:$0xf] %v211
  // Predicated region
  $region14: #{_lambda_.4} parent=0 // pred_check
    _
  $region15: #{_lambda_.4} parent=0 // pred_check_branch
    %221 = sbr.rel (0) target = $region17
  $region16: #{_lambda_.4} parent=0 // pred_region
    _
  $region17: #{_lambda_.4} parent=0 // pred_fallthru
    _
  // Predicated region
  $region18: #{_lambda_.4} parent=0 // pred_check
    _
  $region19: #{_lambda_.4} parent=0 // pred_check_branch
    %223 = sbr.rel (0) target = $region21
  $region20: #{_lambda_.4} parent=0 // pred_region
    _
  $region21: #{_lambda_.4} parent=0 // pred_fallthru
    _

// kernel: _lambda_.5
$region0: #{_lambda_.5}
  #allocation0 [shape = 'u32[]', space=smem, size = 0x4, offset = 0x4, fixed_abs, tag = 'smem constant byte address 0x4 - core index']
  #allocation1 [shape = 'u32[144,128]{1,0:T(1,128)}', space=vmem, size = 0x12000, scoped, tag = 'internal scratch']
  %s0 = inlined_call_operand.vmem [shape: bf16[4,32,512], index: 0, kind: input, shape index: {}]
  %s1 = inlined_call_operand.vmem [shape: bf16[4,512,128], index: 1, kind: input, shape index: {}]
  %s2 = inlined_call_operand.vmem [shape: f32[1,128], index: 2, kind: input, shape index: {}]
  %s3 = inlined_call_operand.vmem [shape: bf16[4,32,128], index: 3, kind: output, shape index: {}]
  %s4 = sld [smem:[#allocation0]]
  $region45: #{_lambda_.5} parent=0
    _
  %s6 = ssub.s32 1, %s4
  %s7 = scalar_select 0, %s6, %s4
  loop: start=0, step=1, limit=6
  $region2: #{_lambda_.5} parent=0 // loop_pre_header
    _
  $region3: #{_lambda_.5} parent=0 // loop_header
    %s9 = sphi 0, %s13
    %p10 = scmp.ge.s32.totalorder %s9, 6
    %s16 = sphi 0, %s28
    %s17 = sphi 0, %s24
    %s18 = sphi 0, %s16
    %s19 = sphi 0, %s17
    %s20 = sphi 0, %s18
    %s21 = sphi 0, %s19
    %s33 = sphi 0, %s35
    %s36 = sphi 0, %s33
    %s37 = sphi 0, %s36
    %s53 = sphi 0, %s37
    %s59 = sphi 0, %s61
    %s62 = sphi 0, %s59
    %s63 = sphi 0, %s62
    %s79 = sphi 0, %s63
    %s83 = sphi 0, %s83
    %s85 = sphi 0, %s83
    %s86 = sphi 0, %s85
    %s100 = sphi 0, %s86
    %s108 = sphi 0, %s110
    %s111 = sphi 0, %s108
    %s112 = sphi 0, %s111
    %s128 = sphi 0, %s112
  $region4: #{_lambda_.5} parent=0 // loop_header_branch
    %12 = sbr.rel (%p10) target = $region8
  $region5: #{_lambda_.5} parent=0 // loop_body
    %s14 = ssub.s32 %s9, 1
    %s15 = ssub.s32 %s9, 2
    %s22 = sadd.s32 1, %s17
    %p23 = scmp.ge.s32.totalorder %s22, 1
    %s24 = scalar_select %p23, 0, %s22
    %s25 = sadd.s32 1, %s16
    %s26 = scalar_select %p23, %s25, %s16
    %p27 = scmp.ge.s32.totalorder %s26, 4
    %s28 = scalar_select %p27, 0, %s26
    %s29 = ssub.s32 %s16, %s28
    %s30 = ssub.s32 %s17, %s24
    %s31 = sor.u32 %s29, %s30
    %p32 = scmp.eq.s32.totalorder %s31, 0
    %s34 = sadd.s32 %s33, 1
    %s35 = scalar_select %p32, %s33, %s34
    %p38 = pneg %p32
    %p39 = scmp.eq.s32.totalorder %s9, 3
    %p40 = por %p38, %p39
    %p41 = scmp.ne.s32.totalorder %s33, %s36
    %p42 = scmp.eq.s32.totalorder %s9, 0
    %p43 = por %p41, %p42
    %p44 = scmp.ne.s32.totalorder %s33, %s36
    %p45 = scmp.eq.s32.totalorder %s14, 3
    %p46 = por %p44, %p45
    %p47 = scmp.ne.s32.totalorder %s36, %s37
    %p48 = scmp.eq.s32.totalorder %s14, 0
    %p49 = por %p47, %p48
    %p50 = scmp.ne.s32.totalorder %s36, %s37
    %p51 = scmp.eq.s32.totalorder %s15, 3
    %p52 = por %p50, %p51
    %p54 = scmp.ne.s32.totalorder %s37, %s53
    %p55 = scmp.eq.s32.totalorder %s15, 0
    %p56 = por %p54, %p55
    %s57 = ssub.s32 %s16, %s28
    %p58 = scmp.eq.s32.totalorder %s57, 0
    %s60 = sadd.s32 %s59, 1
    %s61 = scalar_select %p58, %s59, %s60
    %p64 = pneg %p58
    %p65 = scmp.eq.s32.totalorder %s9, 3
    %p66 = por %p64, %p65
    %p67 = scmp.ne.s32.totalorder %s59, %s62
    %p68 = scmp.eq.s32.totalorder %s9, 0
    %p69 = por %p67, %p68
    %p70 = scmp.ne.s32.totalorder %s59, %s62
    %p71 = scmp.eq.s32.totalorder %s14, 3
    %p72 = por %p70, %p71
    %p73 = scmp.ne.s32.totalorder %s62, %s63
    %p74 = scmp.eq.s32.totalorder %s14, 0
    %p75 = por %p73, %p74
    %p76 = scmp.ne.s32.totalorder %s62, %s63
    %p77 = scmp.eq.s32.totalorder %s15, 3
    %p78 = por %p76, %p77
    %p80 = scmp.ne.s32.totalorder %s63, %s79
    %p81 = scmp.eq.s32.totalorder %s15, 0
    %p82 = por %p80, %p81
    %s84 = sadd.s32 %s83, 1
    %p87 = scmp.eq.s32.totalorder %s9, 3
    %p88 = scmp.ne.s32.totalorder %s83, %s85
    %p89 = scmp.eq.s32.totalorder %s9, 0
    %p90 = por %p88, %p89
    %p91 = scmp.ne.s32.totalorder %s83, %s85
    %p92 = scmp.eq.s32.totalorder %s14, 3
    %p93 = por %p91, %p92
    %p94 = scmp.ne.s32.totalorder %s85, %s86
    %p95 = scmp.eq.s32.totalorder %s14, 0
    %p96 = por %p94, %p95
    %p97 = scmp.ne.s32.totalorder %s85, %s86
    %p98 = scmp.eq.s32.totalorder %s15, 3
    %p99 = por %p97, %p98
    %p101 = scmp.ne.s32.totalorder %s86, %s100
    %p102 = scmp.eq.s32.totalorder %s15, 0
    %p103 = por %p101, %p102
    %s104 = ssub.s32 %s16, %s28
    %s105 = ssub.s32 %s17, %s24
    %s106 = sor.u32 %s104, %s105
    %p107 = scmp.eq.s32.totalorder %s106, 0
    %s109 = sadd.s32 %s108, 1
    %s110 = scalar_select %p107, %s108, %s109
    %p113 = pneg %p107
    %p114 = scmp.eq.s32.totalorder %s9, 3
    %p115 = por %p113, %p114
    %p116 = scmp.ne.s32.totalorder %s108, %s111
    %p117 = scmp.eq.s32.totalorder %s9, 0
    %p118 = por %p116, %p117
    %p119 = scmp.ne.s32.totalorder %s108, %s111
    %p120 = scmp.eq.s32.totalorder %s14, 3
    %p121 = por %p119, %p120
    %p122 = scmp.ne.s32.totalorder %s111, %s112
    %p123 = scmp.eq.s32.totalorder %s14, 0
    %p124 = por %p122, %p123
    %p125 = scmp.ne.s32.totalorder %s111, %s112
    %p126 = scmp.eq.s32.totalorder %s15, 3
    %p127 = por %p125, %p126
    %p129 = scmp.ne.s32.totalorder %s112, %s128
    %p130 = scmp.eq.s32.totalorder %s15, 0
    %p131 = por %p129, %p130
    %p132 = scmp.le.s32.totalorder 1, %s9
    %p133 = scmp.lt.s32.totalorder %s9, 5
    %p134 = pnand %p132, %p133
    %p135 = pneg %p134
    // Predicated region
    $region9: #{_lambda_.5} parent=5 // pred_check
      _
    $region10: #{_lambda_.5} parent=5 // pred_check_branch
      %137 = sbr.rel (%p134) target = $region12
    $region11: #{_lambda_.5} parent=5 // pred_region
      %s138 = ssub.s32 %s9, 1
      // Predicated region
      $region13: #{_lambda_.5} parent=11 // pred_check
        %p139 = pneg %p96
      $region14: #{_lambda_.5} parent=11 // pred_check_branch
        %141 = sbr.rel (%p139) target = $region16
      $region15: #{_lambda_.5} parent=11 // pred_region
        _
      $region16: #{_lambda_.5} parent=11 // pred_fallthru
        _
    $region12: #{_lambda_.5} parent=5 // pred_fallthru
      _
    %p142 = scmp.lt.s32.totalorder %s9, 4
    // Predicated region
    $region17: #{_lambda_.5} parent=5 // pred_check
      %p143 = pneg %p142
    $region18: #{_lambda_.5} parent=5 // pred_check_branch
      %145 = sbr.rel (%p143) target = $region20
    $region19: #{_lambda_.5} parent=5 // pred_region
      // Predicated region
      $region21: #{_lambda_.5} parent=19 // pred_check
        %p146 = pneg %p43
      $region22: #{_lambda_.5} parent=19 // pred_check_branch
        %148 = sbr.rel (%p146) target = $region24
      $region23: #{_lambda_.5} parent=19 // pred_region
        %s149 = smul.u32 4, %s17
        %p150 = scmp.lt.s32.totalorder %s16, 3
        %s151 = scalar_select %p150, %s16, 3
        %p152 = scmp.lt.s32.totalorder %s149, 3
        %s153 = scalar_select %p152, %s149, 3
        %s154 = smul.addr %s153, 4
        %s155 = smul.addr %s151, 16
        %s156 = sadd.s32 %s154, %s155
        %s157 = smul.addr %s156, 4
        %s158 = scalar_lea.vmem %s0, %s157
        %s159 = smul.u32 4, %s17
      $region24: #{_lambda_.5} parent=19 // pred_fallthru
        _
      // Predicated region
      $region25: #{_lambda_.5} parent=19 // pred_check
        %p160 = pneg %p69
      $region26: #{_lambda_.5} parent=19 // pred_check_branch
        %162 = sbr.rel (%p160) target = $region28
      $region27: #{_lambda_.5} parent=19 // pred_region
        %p163 = scmp.lt.s32.totalorder %s16, 3
        %s164 = scalar_select %p163, %s16, 3
        %s165 = smul.addr %s164, 64
        %s166 = smul.addr %s165, 4
        %s167 = scalar_lea.vmem %s1, %s166
      $region28: #{_lambda_.5} parent=19 // pred_fallthru
        _
    $region20: #{_lambda_.5} parent=5 // pred_fallthru
      _
    %p168 = scmp.le.s32.totalorder 1, %s9
    %p169 = scmp.lt.s32.totalorder %s9, 5
    %p170 = pnand %p168, %p169
    %p171 = pneg %p170
    // Predicated region
    $region29: #{_lambda_.5} parent=5 // pred_check
      _
    $region30: #{_lambda_.5} parent=5 // pred_check_branch
      %173 = sbr.rel (%p170) target = $region32
    $region31: #{_lambda_.5} parent=5 // pred_region
      %s174 = ssub.s32 %s9, 1
      %s175 = smul.u32 4, %s19
      %p176 = scmp.lt.s32.totalorder %s18, 3
      %s177 = scalar_select %p176, %s18, 3
      %p178 = scmp.lt.s32.totalorder %s175, 3
      %s179 = scalar_select %p178, %s175, 3
      %s180 = smul.addr %s179, 4
      %s181 = smul.addr %s177, 16
      %s182 = sadd.s32 %s180, %s181
      %s183 = smul.addr %s182, 4
      %s184 = scalar_lea.vmem %s0, %s183
      %p185 = pneg %p49
      %p186 = pneg %p46
      %p187 = scmp.lt.s32.totalorder %s18, 3
      %s188 = scalar_select %p187, %s18, 3
      %s189 = smul.addr %s188, 64
      %s190 = smul.addr %s189, 4
      %s191 = scalar_lea.vmem %s1, %s190
      %p192 = pneg %p75
      %p193 = pneg %p72
      %p194 = pneg %p96
      %p195 = pneg %p93
      %p196 = pneg %p124
      %p197 = pneg %p121
      %s198 = smul.u32 4, %s19
      %p199 = scmp.lt.s32.totalorder %s18, 3
      %s200 = scalar_select %p199, %s18, 3
      %p201 = scmp.lt.s32.totalorder %s198, 3
      %s202 = scalar_select %p201, %s198, 3
      %s203 = smul.addr %s200, 4
      %s204 = sadd.s32 %s202, %s203
      %s205 = smul.addr %s204, 4
      %s206 = scalar_lea.vmem %s3, %s205
      %s207 = smul.u32 4, %s19
      %p208 = scmp.lt.s32.totalorder %s18, 3
      %s209 = scalar_select %p208, %s18, 3
      %p210 = scmp.lt.s32.totalorder %s207, 3
      %s211 = scalar_select %p210, %s207, 3
      %s212 = smul.addr %s211, 4
      %s213 = smul.addr %s209, 16
      %s214 = sadd.s32 %s212, %s213
      %s215 = smul.addr %s214, 4
      %s216 = scalar_lea.vmem %s0, %s215
      %s217 = smul.u32 4, %s19
      %p218 = scmp.lt.s32.totalorder %s18, 3
      %s219 = scalar_select %p218, %s18, 3
      %s220 = smul.addr %s219, 64
      %s221 = smul.addr %s220, 4
      %s222 = scalar_lea.vmem %s1, %s221
      %s223 = smul.u32 4, %s19
      %p224 = scmp.lt.s32.totalorder %s18, 3
      %s225 = scalar_select %p224, %s18, 3
      %p226 = scmp.lt.s32.totalorder %s223, 3
      %s227 = scalar_select %p226, %s223, 3
      %s228 = smul.addr %s225, 4
      %s229 = sadd.s32 %s227, %s228
      %s230 = smul.addr %s229, 4
      %s231 = scalar_lea.vmem %s3, %s230
      %s232 = smul.u32 4, %s19
      %v234 = vld [vmem:[%s216] sm:$0xff]
      %v235 = vld [vmem:[%s216 + $0x8] sm:$0xff]
      %v236 = vld [vmem:[%s216 + $0x10] sm:$0xff]
      %v237 = vld [vmem:[%s216 + $0x18] sm:$0xff]
      %v238 = vld [vmem:[%s216 + $0x20] sm:$0xff]
      %v239 = vld [vmem:[%s216 + $0x28] sm:$0xff]
      %v240 = vld [vmem:[%s216 + $0x30] sm:$0xff]
      %v241 = vld [vmem:[%s216 + $0x38] sm:$0xff]
      %v242 = vld [vmem:[%s222] sm:$0xf]
      %v243 = vld [vmem:[%s222 + $0x4] sm:$0xf]
      %v244 = vld [vmem:[%s222 + $0x8] sm:$0xf]
      %v245 = vld [vmem:[%s222 + $0xc] sm:$0xf]
      %v246 = vld [vmem:[%s222 + $0x10] sm:$0xf]
      %v247 = vld [vmem:[%s222 + $0x14] sm:$0xf]
      %v248 = vld [vmem:[%s222 + $0x18] sm:$0xf]
      %v249 = vld [vmem:[%s222 + $0x1c] sm:$0xf]
      %v250 = vld [vmem:[%s222 + $0x20] sm:$0xf]
      %v251 = vld [vmem:[%s222 + $0x24] sm:$0xf]
      %v252 = vld [vmem:[%s222 + $0x28] sm:$0xf]
      %v253 = vld [vmem:[%s222 + $0x2c] sm:$0xf]
      %v254 = vld [vmem:[%s222 + $0x30] sm:$0xf]
      %v255 = vld [vmem:[%s222 + $0x34] sm:$0xf]
      %v256 = vld [vmem:[%s222 + $0x38] sm:$0xf]
      %v257 = vld [vmem:[%s222 + $0x3c] sm:$0xf]
      %v258 = vld [vmem:[%s222 + $0x40] sm:$0xf]
      %v259 = vld [vmem:[%s222 + $0x44] sm:$0xf]
      %v260 = vld [vmem:[%s222 + $0x48] sm:$0xf]
      %v261 = vld [vmem:[%s222 + $0x4c] sm:$0xf]
      %v262 = vld [vmem:[%s222 + $0x50] sm:$0xf]
      %v263 = vld [vmem:[%s222 + $0x54] sm:$0xf]
      %v264 = vld [vmem:[%s222 + $0x58] sm:$0xf]
      %v265 = vld [vmem:[%s222 + $0x5c] sm:$0xf]
      %v266 = vld [vmem:[%s222 + $0x60] sm:$0xf]
      %v267 = vld [vmem:[%s222 + $0x64] sm:$0xf]
      %v268 = vld [vmem:[%s222 + $0x68] sm:$0xf]
      %v269 = vld [vmem:[%s222 + $0x6c] sm:$0xf]
      %v270 = vld [vmem:[%s222 + $0x70] sm:$0xf]
      %v271 = vld [vmem:[%s222 + $0x74] sm:$0xf]
      %v272 = vld [vmem:[%s222 + $0x78] sm:$0xf]
      %v273 = vld [vmem:[%s222 + $0x7c] sm:$0xf]
      %v274 = vld [vmem:[%s222 + $0x80] sm:$0xf]
      %v275 = vld [vmem:[%s222 + $0x84] sm:$0xf]
      %v276 = vld [vmem:[%s222 + $0x88] sm:$0xf]
      %v277 = vld [vmem:[%s222 + $0x8c] sm:$0xf]
      %v278 = vld [vmem:[%s222 + $0x90] sm:$0xf]
      %v279 = vld [vmem:[%s222 + $0x94] sm:$0xf]
      %v280 = vld [vmem:[%s222 + $0x98] sm:$0xf]
      %v281 = vld [vmem:[%s222 + $0x9c] sm:$0xf]
      %v282 = vld [vmem:[%s222 + $0xa0] sm:$0xf]
      %v283 = vld [vmem:[%s222 + $0xa4] sm:$0xf]
      %v284 = vld [vmem:[%s222 + $0xa8] sm:$0xf]
      %v285 = vld [vmem:[%s222 + $0xac] sm:$0xf]
      %v286 = vld [vmem:[%s222 + $0xb0] sm:$0xf]
      %v287 = vld [vmem:[%s222 + $0xb4] sm:$0xf]
      %v288 = vld [vmem:[%s222 + $0xb8] sm:$0xf]
      %v289 = vld [vmem:[%s222 + $0xbc] sm:$0xf]
      %v290 = vld [vmem:[%s222 + $0xc0] sm:$0xf]
      %v291 = vld [vmem:[%s222 + $0xc4] sm:$0xf]
      %v292 = vld [vmem:[%s222 + $0xc8] sm:$0xf]
      %v293 = vld [vmem:[%s222 + $0xcc] sm:$0xf]
      %v294 = vld [vmem:[%s222 + $0xd0] sm:$0xf]
      %v295 = vld [vmem:[%s222 + $0xd4] sm:$0xf]
      %v296 = vld [vmem:[%s222 + $0xd8] sm:$0xf]
      %v297 = vld [vmem:[%s222 + $0xdc] sm:$0xf]
      %v298 = vld [vmem:[%s222 + $0xe0] sm:$0xf]
      %v299 = vld [vmem:[%s222 + $0xe4] sm:$0xf]
      %v300 = vld [vmem:[%s222 + $0xe8] sm:$0xf]
      %v301 = vld [vmem:[%s222 + $0xec] sm:$0xf]
      %v302 = vld [vmem:[%s222 + $0xf0] sm:$0xf]
      %v303 = vld [vmem:[%s222 + $0xf4] sm:$0xf]
      %v304 = vld [vmem:[%s222 + $0xf8] sm:$0xf]
      %v305 = vld [vmem:[%s222 + $0xfc] sm:$0xf]
      %v306 = vld [vmem:[%s2] sm:$0x1]
      %v308 = vlaneseq
      %v309 = vshrl.u32 %v308, 7
      %v310 = vsub.s32 0, %v309
      %v311 = vrot.slane %v306, %v310
      %v321 = vunpack.c.l.b16 %v234
      %v322 = vunpack.c.h.b16 %v234
      %v323 = vunpack.c.l.b16 %v235
      %v324 = vunpack.c.h.b16 %v235
      %v325 = vunpack.c.l.b16 %v236
      %v326 = vunpack.c.h.b16 %v236
      %v327 = vunpack.c.l.b16 %v237
      %v328 = vunpack.c.h.b16 %v237
      %v329 = vunpack.c.l.b16 %v238
      %v330 = vunpack.c.h.b16 %v238
      %v331 = vunpack.c.l.b16 %v239
      %v332 = vunpack.c.h.b16 %v239
      %v333 = vunpack.c.l.b16 %v240
      %v334 = vunpack.c.h.b16 %v240
      %v335 = vunpack.c.l.b16 %v241
      %v336 = vunpack.c.h.b16 %v241
      %v337 = vpack.c.b16 %v325, %v321
      %v338 = vpack.c.b16 %v326, %v322
      %v339 = vpack.c.b16 %v327, %v323
      %v340 = vpack.c.b16 %v328, %v324
      %v341 = vpack.c.b16 %v333, %v329
      %v342 = vpack.c.b16 %v334, %v330
      %v343 = vpack.c.b16 %v335, %v331
      %v344 = vpack.c.b16 %v336, %v332
      %v417 = vunpack.c.l.b16 %v242
      %v418 = vunpack.c.l.b16 %v243
      %v419 = vunpack.c.l.b16 %v244
      %v420 = vunpack.c.l.b16 %v245
      %v421 = vunpack.c.l.b16 %v246
      %v422 = vunpack.c.l.b16 %v247
      %v423 = vunpack.c.l.b16 %v248
      %v424 = vunpack.c.l.b16 %v249
      %v425 = vunpack.c.l.b16 %v250
      %v426 = vunpack.c.l.b16 %v251
      %v427 = vunpack.c.l.b16 %v252
      %v428 = vunpack.c.l.b16 %v253
      %v429 = vunpack.c.l.b16 %v254
      %v430 = vunpack.c.l.b16 %v255
      %v431 = vunpack.c.l.b16 %v256
      %v432 = vunpack.c.l.b16 %v257
      %v433 = vunpack.c.l.b16 %v258
      %v434 = vunpack.c.l.b16 %v259
      %v435 = vunpack.c.l.b16 %v260
      %v436 = vunpack.c.l.b16 %v261
      %v437 = vunpack.c.l.b16 %v262
      %v438 = vunpack.c.l.b16 %v263
      %v439 = vunpack.c.l.b16 %v264
      %v440 = vunpack.c.l.b16 %v265
      %v441 = vunpack.c.l.b16 %v266
      %v442 = vunpack.c.l.b16 %v267
      %v443 = vunpack.c.l.b16 %v268
      %v444 = vunpack.c.l.b16 %v269
      %v445 = vunpack.c.l.b16 %v270
      %v446 = vunpack.c.l.b16 %v271
      %v447 = vunpack.c.l.b16 %v272
      %v448 = vunpack.c.l.b16 %v273
      %v449 = vunpack.c.l.b16 %v274
      %v450 = vunpack.c.l.b16 %v275
      %v451 = vunpack.c.l.b16 %v276
      %v452 = vunpack.c.l.b16 %v277
      %v453 = vunpack.c.l.b16 %v278
      %v454 = vunpack.c.l.b16 %v279
      %v455 = vunpack.c.l.b16 %v280
      %v456 = vunpack.c.l.b16 %v281
      %v457 = vunpack.c.l.b16 %v282
      %v458 = vunpack.c.l.b16 %v283
      %v459 = vunpack.c.l.b16 %v284
      %v460 = vunpack.c.l.b16 %v285
      %v461 = vunpack.c.l.b16 %v286
      %v462 = vunpack.c.l.b16 %v287
      %v463 = vunpack.c.l.b16 %v288
      %v464 = vunpack.c.l.b16 %v289
      %v465 = vunpack.c.l.b16 %v290
      %v466 = vunpack.c.l.b16 %v291
      %v467 = vunpack.c.l.b16 %v292
      %v468 = vunpack.c.l.b16 %v293
      %v469 = vunpack.c.l.b16 %v294
      %v470 = vunpack.c.l.b16 %v295
      %v471 = vunpack.c.l.b16 %v296
      %v472 = vunpack.c.l.b16 %v297
      %v473 = vunpack.c.l.b16 %v298
      %v474 = vunpack.c.l.b16 %v299
      %v475 = vunpack.c.l.b16 %v300
      %v476 = vunpack.c.l.b16 %v301
      %v477 = vunpack.c.l.b16 %v302
      %v478 = vunpack.c.l.b16 %v303
      %v479 = vunpack.c.l.b16 %v304
      %v480 = vunpack.c.l.b16 %v305
      %v481 = vpack.c.b16 %v418, %v417
      %v482 = vpack.c.b16 %v420, %v419
      %v483 = vpack.c.b16 %v422, %v421
      %v484 = vpack.c.b16 %v424, %v423
      %v485 = vpack.c.b16 %v426, %v425
      %v486 = vpack.c.b16 %v428, %v427
      %v487 = vpack.c.b16 %v430, %v429
      %v488 = vpack.c.b16 %v432, %v431
      %v489 = vpack.c.b16 %v434, %v433
      %v490 = vpack.c.b16 %v436, %v435
      %v491 = vpack.c.b16 %v438, %v437
      %v492 = vpack.c.b16 %v440, %v439
      %v493 = vpack.c.b16 %v442, %v441
      %v494 = vpack.c.b16 %v444, %v443
      %v495 = vpack.c.b16 %v446, %v445
      %v496 = vpack.c.b16 %v448, %v447
      %v497 = vpack.c.b16 %v450, %v449
      %v498 = vpack.c.b16 %v452, %v451
      %v499 = vpack.c.b16 %v454, %v453
      %v500 = vpack.c.b16 %v456, %v455
      %v501 = vpack.c.b16 %v458, %v457
      %v502 = vpack.c.b16 %v460, %v459
      %v503 = vpack.c.b16 %v462, %v461
      %v504 = vpack.c.b16 %v464, %v463
      %v505 = vpack.c.b16 %v466, %v465
      %v506 = vpack.c.b16 %v468, %v467
      %v507 = vpack.c.b16 %v470, %v469
      %v508 = vpack.c.b16 %v472, %v471
      %v509 = vpack.c.b16 %v474, %v473
      %v510 = vpack.c.b16 %v476, %v475
      %v511 = vpack.c.b16 %v478, %v477
      %v512 = vpack.c.b16 %v480, %v479
      %545 = vmatprep.subr.bf16.mxu0 0
      %546 = vmatpush1.bf16.msra.mxu0 %v488
      %547 = vmatprep.subr.bf16.mxu0 0
      %548 = vmatpush1.bf16.msra.mxu0 %v487
      %549 = vmatprep.subr.bf16.mxu0 0
      %550 = vmatpush1.bf16.msra.mxu0 %v486
      %551 = vmatprep.subr.bf16.mxu0 0
      %552 = vmatpush1.bf16.msra.mxu0 %v485
      %553 = vmatprep.subr.bf16.mxu0 0
      %554 = vmatpush1.bf16.msra.mxu0 %v484
      %555 = vmatprep.subr.bf16.mxu0 0
      %556 = vmatpush1.bf16.msra.mxu0 %v483
      %557 = vmatprep.subr.bf16.mxu0 0
      %558 = vmatpush1.bf16.msra.mxu0 %v482
      %559 = vmatprep.subr.bf16.mxu0 0
      %560 = vmatpush1.bf16.msra.mxu0 %v481
      %561 = vmatprep.subr.bf16.mxu0 0
      %562 = vmatpush2.bf16.msra.mxu0 %v496
      %563 = vmatprep.subr.bf16.mxu0 0
      %564 = vmatpush2.bf16.msra.mxu0 %v495
      %565 = vmatprep.subr.bf16.mxu0 0
      %566 = vmatpush2.bf16.msra.mxu0 %v494
      %567 = vmatprep.subr.bf16.mxu0 0
      %568 = vmatpush2.bf16.msra.mxu0 %v493
      %569 = vmatprep.subr.bf16.mxu0 0
      %570 = vmatpush2.bf16.msra.mxu0 %v492
      %571 = vmatprep.subr.bf16.mxu0 0
      %572 = vmatpush2.bf16.msra.mxu0 %v491
      %573 = vmatprep.subr.bf16.mxu0 0
      %574 = vmatpush2.bf16.msra.mxu0 %v490
      %575 = vmatprep.subr.bf16.mxu0 0
      %576 = vmatpush2.bf16.msra.mxu0 %v489
      %577 = vmatprep.mubr.bf16.mxu0 %v338
      %578 = vmatmul.mubr.bf16.gmra.mxu0 %v337
      %v579 = vpop.f32.mrf.mxu0
      %v580 = vadd.f32 %v311, %v579
      %v581 = vpop.f32.mrf.mxu0
      %v582 = vpop.f32.mrf.mxu0
      %v583 = vadd.f32 %v311, %v582
      %v584 = vpop.f32.mrf.mxu0
      %585 = vmatprep.mubr.bf16.mxu0 %v342
      %586 = vmatmul.mubr.bf16.gmra.mxu0 %v341
      %v587 = vpop.f32.mrf.mxu0
      %v588 = vadd.f32 %v311, %v587
      %v589 = vpop.f32.mrf.mxu0
      %v590 = vpop.f32.mrf.mxu0
      %v591 = vadd.f32 %v311, %v590
      %v592 = vpop.f32.mrf.mxu0
      %593 = vdwg.mxu0
      %594 = vmatprep.subr.bf16.mxu0 0
      %595 = vmatpush1.bf16.msra.mxu0 %v504
      %596 = vmatprep.subr.bf16.mxu0 0
      %597 = vmatpush1.bf16.msra.mxu0 %v503
      %598 = vmatprep.subr.bf16.mxu0 0
      %599 = vmatpush1.bf16.msra.mxu0 %v502
      %600 = vmatprep.subr.bf16.mxu0 0
      %601 = vmatpush1.bf16.msra.mxu0 %v501
      %602 = vmatprep.subr.bf16.mxu0 0
      %603 = vmatpush1.bf16.msra.mxu0 %v500
      %604 = vmatprep.subr.bf16.mxu0 0
      %605 = vmatpush1.bf16.msra.mxu0 %v499
      %606 = vmatprep.subr.bf16.mxu0 0
      %607 = vmatpush1.bf16.msra.mxu0 %v498
      %608 = vmatprep.subr.bf16.mxu0 0
      %609 = vmatpush1.bf16.msra.mxu0 %v497
      %610 = vmatprep.subr.bf16.mxu0 0
      %611 = vmatpush2.bf16.msra.mxu0 %v512
      %612 = vmatprep.subr.bf16.mxu0 0
      %613 = vmatpush2.bf16.msra.mxu0 %v511
      %614 = vmatprep.subr.bf16.mxu0 0
      %615 = vmatpush2.bf16.msra.mxu0 %v510
      %616 = vmatprep.subr.bf16.mxu0 0
      %617 = vmatpush2.bf16.msra.mxu0 %v509
      %618 = vmatprep.subr.bf16.mxu0 0
      %619 = vmatpush2.bf16.msra.mxu0 %v508
      %620 = vmatprep.subr.bf16.mxu0 0
      %621 = vmatpush2.bf16.msra.mxu0 %v507
      %622 = vmatprep.subr.bf16.mxu0 0
      %623 = vmatpush2.bf16.msra.mxu0 %v506
      %624 = vmatprep.subr.bf16.mxu0 0
      %625 = vmatpush2.bf16.msra.mxu0 %v505
      %626 = vmatprep.mubr.bf16.mxu0 %v340
      %627 = vmatmul.mubr.bf16.gmra.mxu0 %v339
      %v628 = vpop.f32.mrf.mxu0
      %v629 = vadd.f32 %v580, %v628
      %v630 = vpop.f32.mrf.mxu0
      %v631 = vpop.f32.mrf.mxu0
      %v632 = vadd.f32 %v583, %v631
      %v633 = vpop.f32.mrf.mxu0
      %634 = vmatprep.mubr.bf16.mxu0 %v344
      %635 = vmatmul.mubr.bf16.gmra.mxu0 %v343
      %v636 = vpop.f32.mrf.mxu0
      %v637 = vadd.f32 %v588, %v636
      %v638 = vpop.f32.mrf.mxu0
      %v639 = vpop.f32.mrf.mxu0
      %v640 = vadd.f32 %v591, %v639
      %v641 = vpop.f32.mrf.mxu0
      %642 = vdwg.mxu0
      %v643 = vmax.f32 %v629, 0.0
      %v644 = vmax.f32 %v632, 0.0
      %v645 = vmax.f32 %v637, 0.0
      %v646 = vmax.f32 %v640, 0.0
      %v647 = vpack.c.bf16 %v644, %v643
      %v648 = vpack.c.bf16 %v646, %v645
      %v651 = vunpack.c.l.b16 %v647
      %v652 = vunpack.c.h.b16 %v647
      %v653 = vunpack.c.l.b16 %v648
      %v654 = vunpack.c.h.b16 %v648
      %v655 = vpack.c.b16 %v651, %v651
      %v656 = vpack.c.b16 %v652, %v652
      %v657 = vpack.c.b16 %v653, %v653
      %v658 = vpack.c.b16 %v654, %v654
      %663 = vst [vmem:[%s231] sm:$0xf] %v655
      %664 = vst [vmem:[%s231 + $0x4] sm:$0xf] %v656
      %665 = vst [vmem:[%s231 + $0x8] sm:$0xf] %v657
      %666 = vst [vmem:[%s231 + $0xc] sm:$0xf] %v658
      %s667 = smul.u32 4, %s19
      %p668 = scmp.lt.s32.totalorder %s18, 3
      %s669 = scalar_select %p668, %s18, 3
      %p670 = scmp.lt.s32.totalorder %s667, 3
      %s671 = scalar_select %p670, %s667, 3
      %s672 = smul.addr %s669, 4
      %s673 = sadd.s32 %s671, %s672
      %s674 = smul.addr %s673, 4
      %s675 = scalar_lea.vmem %s3, %s674
      // Predicated region
      $region33: #{_lambda_.5} parent=31 // pred_check
        %p676 = pneg %p121
      $region34: #{_lambda_.5} parent=31 // pred_check_branch
        %678 = sbr.rel (%p676) target = $region36
      $region35: #{_lambda_.5} parent=31 // pred_region
        %s679 = smul.u32 4, %s19
      $region36: #{_lambda_.5} parent=31 // pred_fallthru
        _
    $region32: #{_lambda_.5} parent=5 // pred_fallthru
      _
    %p680 = scmp.le.s32.totalorder 2, %s9
    // Predicated region
    $region37: #{_lambda_.5} parent=5 // pred_check
      %p681 = pneg %p680
    $region38: #{_lambda_.5} parent=5 // pred_check_branch
      %683 = sbr.rel (%p681) target = $region40
    $region39: #{_lambda_.5} parent=5 // pred_region
      %s684 = ssub.s32 %s9, 2
      // Predicated region
      $region41: #{_lambda_.5} parent=39 // pred_check
        %p685 = pneg %p127
      $region42: #{_lambda_.5} parent=39 // pred_check_branch
        %687 = sbr.rel (%p685) target = $region44
      $region43: #{_lambda_.5} parent=39 // pred_region
        %s688 = smul.u32 4, %s21
        %p689 = scmp.lt.s32.totalorder %s20, 3
        %s690 = scalar_select %p689, %s20, 3
        %p691 = scmp.lt.s32.totalorder %s688, 3
        %s692 = scalar_select %p691, %s688, 3
        %s693 = smul.addr %s690, 4
        %s694 = sadd.s32 %s692, %s693
        %s695 = smul.addr %s694, 4
        %s696 = scalar_lea.vmem %s3, %s695
      $region44: #{_lambda_.5} parent=39 // pred_fallthru
        _
    $region40: #{_lambda_.5} parent=5 // pred_fallthru
      _
  $region6: #{_lambda_.5} parent=0 // loop_footer
    %s13 = sadd.s32 1, %s9
  $region7: #{_lambda_.5} parent=0 // loop_footer_branch
    %8 = sbr.rel target = $region3
  $region8: #{_lambda_.5} parent=0 // loop_exit
    _

// kernel: _lambda_.6
$region0: #{_lambda_.6}
  #allocation0 [shape = 'u32[]', space=smem, size = 0x4, offset = 0x4, fixed_abs, tag = 'smem constant byte address 0x4 - core index']
  #allocation1 [shape = 'u32[144,128]{1,0:T(1,128)}', space=vmem, size = 0x12000, scoped, tag = 'internal scratch']
  %s0 = inlined_call_operand.vmem [shape: bf16[4,128,512], index: 0, kind: input, shape index: {}]
  %s1 = inlined_call_operand.vmem [shape: bf16[4,512,128], index: 1, kind: input, shape index: {}]
  %s2 = inlined_call_operand.vmem [shape: f32[1,128], index: 2, kind: input, shape index: {}]
  %s3 = inlined_call_operand.vmem [shape: bf16[4,128,128], index: 3, kind: output, shape index: {}]
  %s4 = sld [smem:[#allocation0]]
  $region45: #{_lambda_.6} parent=0
    _
  %s6 = ssub.s32 1, %s4
  %s7 = scalar_select 0, %s6, %s4
  loop: start=0, step=1, limit=6
  $region2: #{_lambda_.6} parent=0 // loop_pre_header
    _
  $region3: #{_lambda_.6} parent=0 // loop_header
    %s9 = sphi 0, %s13
    %p10 = scmp.ge.s32.totalorder %s9, 6
    %s16 = sphi 0, %s28
    %s17 = sphi 0, %s24
    %s18 = sphi 0, %s16
    %s19 = sphi 0, %s17
    %s20 = sphi 0, %s18
    %s21 = sphi 0, %s19
    %s33 = sphi 0, %s35
    %s36 = sphi 0, %s33
    %s37 = sphi 0, %s36
    %s53 = sphi 0, %s37
    %s59 = sphi 0, %s61
    %s62 = sphi 0, %s59
    %s63 = sphi 0, %s62
    %s79 = sphi 0, %s63
    %s83 = sphi 0, %s83
    %s85 = sphi 0, %s83
    %s86 = sphi 0, %s85
    %s100 = sphi 0, %s86
    %s108 = sphi 0, %s110
    %s111 = sphi 0, %s108
    %s112 = sphi 0, %s111
    %s128 = sphi 0, %s112
  $region4: #{_lambda_.6} parent=0 // loop_header_branch
    %12 = sbr.rel (%p10) target = $region8
  $region5: #{_lambda_.6} parent=0 // loop_body
    %s14 = ssub.s32 %s9, 1
    %s15 = ssub.s32 %s9, 2
    %s22 = sadd.s32 1, %s17
    %p23 = scmp.ge.s32.totalorder %s22, 1
    %s24 = scalar_select %p23, 0, %s22
    %s25 = sadd.s32 1, %s16
    %s26 = scalar_select %p23, %s25, %s16
    %p27 = scmp.ge.s32.totalorder %s26, 4
    %s28 = scalar_select %p27, 0, %s26
    %s29 = ssub.s32 %s16, %s28
    %s30 = ssub.s32 %s17, %s24
    %s31 = sor.u32 %s29, %s30
    %p32 = scmp.eq.s32.totalorder %s31, 0
    %s34 = sadd.s32 %s33, 1
    %s35 = scalar_select %p32, %s33, %s34
    %p38 = pneg %p32
    %p39 = scmp.eq.s32.totalorder %s9, 3
    %p40 = por %p38, %p39
    %p41 = scmp.ne.s32.totalorder %s33, %s36
    %p42 = scmp.eq.s32.totalorder %s9, 0
    %p43 = por %p41, %p42
    %p44 = scmp.ne.s32.totalorder %s33, %s36
    %p45 = scmp.eq.s32.totalorder %s14, 3
    %p46 = por %p44, %p45
    %p47 = scmp.ne.s32.totalorder %s36, %s37
    %p48 = scmp.eq.s32.totalorder %s14, 0
    %p49 = por %p47, %p48
    %p50 = scmp.ne.s32.totalorder %s36, %s37
    %p51 = scmp.eq.s32.totalorder %s15, 3
    %p52 = por %p50, %p51
    %p54 = scmp.ne.s32.totalorder %s37, %s53
    %p55 = scmp.eq.s32.totalorder %s15, 0
    %p56 = por %p54, %p55
    %s57 = ssub.s32 %s16, %s28
    %p58 = scmp.eq.s32.totalorder %s57, 0
    %s60 = sadd.s32 %s59, 1
    %s61 = scalar_select %p58, %s59, %s60
    %p64 = pneg %p58
    %p65 = scmp.eq.s32.totalorder %s9, 3
    %p66 = por %p64, %p65
    %p67 = scmp.ne.s32.totalorder %s59, %s62
    %p68 = scmp.eq.s32.totalorder %s9, 0
    %p69 = por %p67, %p68
    %p70 = scmp.ne.s32.totalorder %s59, %s62
    %p71 = scmp.eq.s32.totalorder %s14, 3
    %p72 = por %p70, %p71
    %p73 = scmp.ne.s32.totalorder %s62, %s63
    %p74 = scmp.eq.s32.totalorder %s14, 0
    %p75 = por %p73, %p74
    %p76 = scmp.ne.s32.totalorder %s62, %s63
    %p77 = scmp.eq.s32.totalorder %s15, 3
    %p78 = por %p76, %p77
    %p80 = scmp.ne.s32.totalorder %s63, %s79
    %p81 = scmp.eq.s32.totalorder %s15, 0
    %p82 = por %p80, %p81
    %s84 = sadd.s32 %s83, 1
    %p87 = scmp.eq.s32.totalorder %s9, 3
    %p88 = scmp.ne.s32.totalorder %s83, %s85
    %p89 = scmp.eq.s32.totalorder %s9, 0
    %p90 = por %p88, %p89
    %p91 = scmp.ne.s32.totalorder %s83, %s85
    %p92 = scmp.eq.s32.totalorder %s14, 3
    %p93 = por %p91, %p92
    %p94 = scmp.ne.s32.totalorder %s85, %s86
    %p95 = scmp.eq.s32.totalorder %s14, 0
    %p96 = por %p94, %p95
    %p97 = scmp.ne.s32.totalorder %s85, %s86
    %p98 = scmp.eq.s32.totalorder %s15, 3
    %p99 = por %p97, %p98
    %p101 = scmp.ne.s32.totalorder %s86, %s100
    %p102 = scmp.eq.s32.totalorder %s15, 0
    %p103 = por %p101, %p102
    %s104 = ssub.s32 %s16, %s28
    %s105 = ssub.s32 %s17, %s24
    %s106 = sor.u32 %s104, %s105
    %p107 = scmp.eq.s32.totalorder %s106, 0
    %s109 = sadd.s32 %s108, 1
    %s110 = scalar_select %p107, %s108, %s109
    %p113 = pneg %p107
    %p114 = scmp.eq.s32.totalorder %s9, 3
    %p115 = por %p113, %p114
    %p116 = scmp.ne.s32.totalorder %s108, %s111
    %p117 = scmp.eq.s32.totalorder %s9, 0
    %p118 = por %p116, %p117
    %p119 = scmp.ne.s32.totalorder %s108, %s111
    %p120 = scmp.eq.s32.totalorder %s14, 3
    %p121 = por %p119, %p120
    %p122 = scmp.ne.s32.totalorder %s111, %s112
    %p123 = scmp.eq.s32.totalorder %s14, 0
    %p124 = por %p122, %p123
    %p125 = scmp.ne.s32.totalorder %s111, %s112
    %p126 = scmp.eq.s32.totalorder %s15, 3
    %p127 = por %p125, %p126
    %p129 = scmp.ne.s32.totalorder %s112, %s128
    %p130 = scmp.eq.s32.totalorder %s15, 0
    %p131 = por %p129, %p130
    %p132 = scmp.le.s32.totalorder 1, %s9
    %p133 = scmp.lt.s32.totalorder %s9, 5
    %p134 = pnand %p132, %p133
    %p135 = pneg %p134
    // Predicated region
    $region9: #{_lambda_.6} parent=5 // pred_check
      _
    $region10: #{_lambda_.6} parent=5 // pred_check_branch
      %137 = sbr.rel (%p134) target = $region12
    $region11: #{_lambda_.6} parent=5 // pred_region
      %s138 = ssub.s32 %s9, 1
      // Predicated region
      $region13: #{_lambda_.6} parent=11 // pred_check
        %p139 = pneg %p96
      $region14: #{_lambda_.6} parent=11 // pred_check_branch
        %141 = sbr.rel (%p139) target = $region16
      $region15: #{_lambda_.6} parent=11 // pred_region
        _
      $region16: #{_lambda_.6} parent=11 // pred_fallthru
        _
    $region12: #{_lambda_.6} parent=5 // pred_fallthru
      _
    %p142 = scmp.lt.s32.totalorder %s9, 4
    // Predicated region
    $region17: #{_lambda_.6} parent=5 // pred_check
      %p143 = pneg %p142
    $region18: #{_lambda_.6} parent=5 // pred_check_branch
      %145 = sbr.rel (%p143) target = $region20
    $region19: #{_lambda_.6} parent=5 // pred_region
      // Predicated region
      $region21: #{_lambda_.6} parent=19 // pred_check
        %p146 = pneg %p43
      $region22: #{_lambda_.6} parent=19 // pred_check_branch
        %148 = sbr.rel (%p146) target = $region24
      $region23: #{_lambda_.6} parent=19 // pred_region
        %s149 = smul.u32 16, %s17
        %p150 = scmp.lt.s32.totalorder %s16, 3
        %s151 = scalar_select %p150, %s16, 3
        %p152 = scmp.lt.s32.totalorder %s149, 15
        %s153 = scalar_select %p152, %s149, 15
        %s154 = smul.addr %s153, 4
        %s155 = smul.addr %s151, 64
        %s156 = sadd.s32 %s154, %s155
        %s157 = smul.addr %s156, 4
        %s158 = scalar_lea.vmem %s0, %s157
        %s159 = smul.u32 16, %s17
      $region24: #{_lambda_.6} parent=19 // pred_fallthru
        _
      // Predicated region
      $region25: #{_lambda_.6} parent=19 // pred_check
        %p160 = pneg %p69
      $region26: #{_lambda_.6} parent=19 // pred_check_branch
        %162 = sbr.rel (%p160) target = $region28
      $region27: #{_lambda_.6} parent=19 // pred_region
        %p163 = scmp.lt.s32.totalorder %s16, 3
        %s164 = scalar_select %p163, %s16, 3
        %s165 = smul.addr %s164, 64
        %s166 = smul.addr %s165, 4
        %s167 = scalar_lea.vmem %s1, %s166
      $region28: #{_lambda_.6} parent=19 // pred_fallthru
        _
    $region20: #{_lambda_.6} parent=5 // pred_fallthru
      _
    %p168 = scmp.le.s32.totalorder 1, %s9
    %p169 = scmp.lt.s32.totalorder %s9, 5
    %p170 = pnand %p168, %p169
    %p171 = pneg %p170
    // Predicated region
    $region29: #{_lambda_.6} parent=5 // pred_check
      _
    $region30: #{_lambda_.6} parent=5 // pred_check_branch
      %173 = sbr.rel (%p170) target = $region32
    $region31: #{_lambda_.6} parent=5 // pred_region
      %s174 = ssub.s32 %s9, 1
      %s175 = smul.u32 16, %s19
      %p176 = scmp.lt.s32.totalorder %s18, 3
      %s177 = scalar_select %p176, %s18, 3
      %p178 = scmp.lt.s32.totalorder %s175, 15
      %s179 = scalar_select %p178, %s175, 15
      %s180 = smul.addr %s179, 4
      %s181 = smul.addr %s177, 64
      %s182 = sadd.s32 %s180, %s181
      %s183 = smul.addr %s182, 4
      %s184 = scalar_lea.vmem %s0, %s183
      %p185 = pneg %p49
      %p186 = pneg %p46
      %p187 = scmp.lt.s32.totalorder %s18, 3
      %s188 = scalar_select %p187, %s18, 3
      %s189 = smul.addr %s188, 64
      %s190 = smul.addr %s189, 4
      %s191 = scalar_lea.vmem %s1, %s190
      %p192 = pneg %p75
      %p193 = pneg %p72
      %p194 = pneg %p96
      %p195 = pneg %p93
      %p196 = pneg %p124
      %p197 = pneg %p121
      %s198 = smul.u32 16, %s19
      %p199 = scmp.lt.s32.totalorder %s18, 3
      %s200 = scalar_select %p199, %s18, 3
      %p201 = scmp.lt.s32.totalorder %s198, 15
      %s202 = scalar_select %p201, %s198, 15
      %s203 = smul.addr %s200, 16
      %s204 = sadd.s32 %s202, %s203
      %s205 = smul.addr %s204, 4
      %s206 = scalar_lea.vmem %s3, %s205
      %s207 = smul.u32 16, %s19
      %p208 = scmp.lt.s32.totalorder %s18, 3
      %s209 = scalar_select %p208, %s18, 3
      %p210 = scmp.lt.s32.totalorder %s207, 15
      %s211 = scalar_select %p210, %s207, 15
      %s212 = smul.addr %s211, 4
      %s213 = smul.addr %s209, 64
      %s214 = sadd.s32 %s212, %s213
      %s215 = smul.addr %s214, 4
      %s216 = scalar_lea.vmem %s0, %s215
      %s217 = smul.u32 16, %s19
      %p218 = scmp.lt.s32.totalorder %s18, 3
      %s219 = scalar_select %p218, %s18, 3
      %s220 = smul.addr %s219, 64
      %s221 = smul.addr %s220, 4
      %s222 = scalar_lea.vmem %s1, %s221
      %s223 = smul.u32 16, %s19
      %p224 = scmp.lt.s32.totalorder %s18, 3
      %s225 = scalar_select %p224, %s18, 3
      %p226 = scmp.lt.s32.totalorder %s223, 15
      %s227 = scalar_select %p226, %s223, 15
      %s228 = smul.addr %s225, 16
      %s229 = sadd.s32 %s227, %s228
      %s230 = smul.addr %s229, 4
      %s231 = scalar_lea.vmem %s3, %s230
      %s232 = smul.u32 16, %s19
      %v234 = vld [vmem:[%s216] sm:$0xff]
      %v235 = vld [vmem:[%s216 + $0x8] sm:$0xff]
      %v236 = vld [vmem:[%s216 + $0x10] sm:$0xff]
      %v237 = vld [vmem:[%s216 + $0x18] sm:$0xff]
      %v238 = vld [vmem:[%s216 + $0x20] sm:$0xff]
      %v239 = vld [vmem:[%s216 + $0x28] sm:$0xff]
      %v240 = vld [vmem:[%s216 + $0x30] sm:$0xff]
      %v241 = vld [vmem:[%s216 + $0x38] sm:$0xff]
      %v242 = vld [vmem:[%s216 + $0x40] sm:$0xff]
      %v243 = vld [vmem:[%s216 + $0x48] sm:$0xff]
      %v244 = vld [vmem:[%s216 + $0x50] sm:$0xff]
      %v245 = vld [vmem:[%s216 + $0x58] sm:$0xff]
      %v246 = vld [vmem:[%s216 + $0x60] sm:$0xff]
      %v247 = vld [vmem:[%s216 + $0x68] sm:$0xff]
      %v248 = vld [vmem:[%s216 + $0x70] sm:$0xff]
      %v249 = vld [vmem:[%s216 + $0x78] sm:$0xff]
      %v250 = vld [vmem:[%s216 + $0x80] sm:$0xff]
      %v251 = vld [vmem:[%s216 + $0x88] sm:$0xff]
      %v252 = vld [vmem:[%s216 + $0x90] sm:$0xff]
      %v253 = vld [vmem:[%s216 + $0x98] sm:$0xff]
      %v254 = vld [vmem:[%s216 + $0xa0] sm:$0xff]
      %v255 = vld [vmem:[%s216 + $0xa8] sm:$0xff]
      %v256 = vld [vmem:[%s216 + $0xb0] sm:$0xff]
      %v257 = vld [vmem:[%s216 + $0xb8] sm:$0xff]
      %v258 = vld [vmem:[%s216 + $0xc0] sm:$0xff]
      %v259 = vld [vmem:[%s216 + $0xc8] sm:$0xff]
      %v260 = vld [vmem:[%s216 + $0xd0] sm:$0xff]
      %v261 = vld [vmem:[%s216 + $0xd8] sm:$0xff]
      %v262 = vld [vmem:[%s216 + $0xe0] sm:$0xff]
      %v263 = vld [vmem:[%s216 + $0xe8] sm:$0xff]
      %v264 = vld [vmem:[%s216 + $0xf0] sm:$0xff]
      %v265 = vld [vmem:[%s216 + $0xf8] sm:$0xff]
      %v266 = vld [vmem:[%s222] sm:$0xf]
      %v267 = vld [vmem:[%s222 + $0x4] sm:$0xf]
      %v268 = vld [vmem:[%s222 + $0x8] sm:$0xf]
      %v269 = vld [vmem:[%s222 + $0xc] sm:$0xf]
      %v270 = vld [vmem:[%s222 + $0x10] sm:$0xf]
      %v271 = vld [vmem:[%s222 + $0x14] sm:$0xf]
      %v272 = vld [vmem:[%s222 + $0x18] sm:$0xf]
      %v273 = vld [vmem:[%s222 + $0x1c] sm:$0xf]
      %v274 = vld [vmem:[%s222 + $0x20] sm:$0xf]
      %v275 = vld [vmem:[%s222 + $0x24] sm:$0xf]
      %v276 = vld [vmem:[%s222 + $0x28] sm:$0xf]
      %v277 = vld [vmem:[%s222 + $0x2c] sm:$0xf]
      %v278 = vld [vmem:[%s222 + $0x30] sm:$0xf]
      %v279 = vld [vmem:[%s222 + $0x34] sm:$0xf]
      %v280 = vld [vmem:[%s222 + $0x38] sm:$0xf]
      %v281 = vld [vmem:[%s222 + $0x3c] sm:$0xf]
      %v282 = vld [vmem:[%s222 + $0x40] sm:$0xf]
      %v283 = vld [vmem:[%s222 + $0x44] sm:$0xf]
      %v284 = vld [vmem:[%s222 + $0x48] sm:$0xf]
      %v285 = vld [vmem:[%s222 + $0x4c] sm:$0xf]
      %v286 = vld [vmem:[%s222 + $0x50] sm:$0xf]
      %v287 = vld [vmem:[%s222 + $0x54] sm:$0xf]
      %v288 = vld [vmem:[%s222 + $0x58] sm:$0xf]
      %v289 = vld [vmem:[%s222 + $0x5c] sm:$0xf]
      %v290 = vld [vmem:[%s222 + $0x60] sm:$0xf]
      %v291 = vld [vmem:[%s222 + $0x64] sm:$0xf]
      %v292 = vld [vmem:[%s222 + $0x68] sm:$0xf]
      %v293 = vld [vmem:[%s222 + $0x6c] sm:$0xf]
      %v294 = vld [vmem:[%s222 + $0x70] sm:$0xf]
      %v295 = vld [vmem:[%s222 + $0x74] sm:$0xf]
      %v296 = vld [vmem:[%s222 + $0x78] sm:$0xf]
      %v297 = vld [vmem:[%s222 + $0x7c] sm:$0xf]
      %v298 = vld [vmem:[%s222 + $0x80] sm:$0xf]
      %v299 = vld [vmem:[%s222 + $0x84] sm:$0xf]
      %v300 = vld [vmem:[%s222 + $0x88] sm:$0xf]
      %v301 = vld [vmem:[%s222 + $0x8c] sm:$0xf]
      %v302 = vld [vmem:[%s222 + $0x90] sm:$0xf]
      %v303 = vld [vmem:[%s222 + $0x94] sm:$0xf]
      %v304 = vld [vmem:[%s222 + $0x98] sm:$0xf]
      %v305 = vld [vmem:[%s222 + $0x9c] sm:$0xf]
      %v306 = vld [vmem:[%s222 + $0xa0] sm:$0xf]
      %v307 = vld [vmem:[%s222 + $0xa4] sm:$0xf]
      %v308 = vld [vmem:[%s222 + $0xa8] sm:$0xf]
      %v309 = vld [vmem:[%s222 + $0xac] sm:$0xf]
      %v310 = vld [vmem:[%s222 + $0xb0] sm:$0xf]
      %v311 = vld [vmem:[%s222 + $0xb4] sm:$0xf]
      %v312 = vld [vmem:[%s222 + $0xb8] sm:$0xf]
      %v313 = vld [vmem:[%s222 + $0xbc] sm:$0xf]
      %v314 = vld [vmem:[%s222 + $0xc0] sm:$0xf]
      %v315 = vld [vmem:[%s222 + $0xc4] sm:$0xf]
      %v316 = vld [vmem:[%s222 + $0xc8] sm:$0xf]
      %v317 = vld [vmem:[%s222 + $0xcc] sm:$0xf]
      %v318 = vld [vmem:[%s222 + $0xd0] sm:$0xf]
      %v319 = vld [vmem:[%s222 + $0xd4] sm:$0xf]
      %v320 = vld [vmem:[%s222 + $0xd8] sm:$0xf]
      %v321 = vld [vmem:[%s222 + $0xdc] sm:$0xf]
      %v322 = vld [vmem:[%s222 + $0xe0] sm:$0xf]
      %v323 = vld [vmem:[%s222 + $0xe4] sm:$0xf]
      %v324 = vld [vmem:[%s222 + $0xe8] sm:$0xf]
      %v325 = vld [vmem:[%s222 + $0xec] sm:$0xf]
      %v326 = vld [vmem:[%s222 + $0xf0] sm:$0xf]
      %v327 = vld [vmem:[%s222 + $0xf4] sm:$0xf]
      %v328 = vld [vmem:[%s222 + $0xf8] sm:$0xf]
      %v329 = vld [vmem:[%s222 + $0xfc] sm:$0xf]
      %v330 = vld [vmem:[%s2] sm:$0x1]
      %v332 = vlaneseq
      %v333 = vshrl.u32 %v332, 7
      %v334 = vsub.s32 0, %v333
      %v335 = vrot.slane %v330, %v334
      %v369 = vunpack.c.l.b16 %v234
      %v370 = vunpack.c.h.b16 %v234
      %v371 = vunpack.c.l.b16 %v235
      %v372 = vunpack.c.h.b16 %v235
      %v373 = vunpack.c.l.b16 %v236
      %v374 = vunpack.c.h.b16 %v236
      %v375 = vunpack.c.l.b16 %v237
      %v376 = vunpack.c.h.b16 %v237
      %v377 = vunpack.c.l.b16 %v238
      %v378 = vunpack.c.h.b16 %v238
      %v379 = vunpack.c.l.b16 %v239
      %v380 = vunpack.c.h.b16 %v239
      %v381 = vunpack.c.l.b16 %v240
      %v382 = vunpack.c.h.b16 %v240
      %v383 = vunpack.c.l.b16 %v241
      %v384 = vunpack.c.h.b16 %v241
      %v385 = vunpack.c.l.b16 %v242
      %v386 = vunpack.c.h.b16 %v242
      %v387 = vunpack.c.l.b16 %v243
      %v388 = vunpack.c.h.b16 %v243
      %v389 = vunpack.c.l.b16 %v244
      %v390 = vunpack.c.h.b16 %v244
      %v391 = vunpack.c.l.b16 %v245
      %v392 = vunpack.c.h.b16 %v245
      %v393 = vunpack.c.l.b16 %v246
      %v394 = vunpack.c.h.b16 %v246
      %v395 = vunpack.c.l.b16 %v247
      %v396 = vunpack.c.h.b16 %v247
      %v397 = vunpack.c.l.b16 %v248
      %v398 = vunpack.c.h.b16 %v248
      %v399 = vunpack.c.l.b16 %v249
      %v400 = vunpack.c.h.b16 %v249
      %v401 = vunpack.c.l.b16 %v250
      %v402 = vunpack.c.h.b16 %v250
      %v403 = vunpack.c.l.b16 %v251
      %v404 = vunpack.c.h.b16 %v251
      %v405 = vunpack.c.l.b16 %v252
      %v406 = vunpack.c.h.b16 %v252
      %v407 = vunpack.c.l.b16 %v253
      %v408 = vunpack.c.h.b16 %v253
      %v409 = vunpack.c.l.b16 %v254
      %v410 = vunpack.c.h.b16 %v254
      %v411 = vunpack.c.l.b16 %v255
      %v412 = vunpack.c.h.b16 %v255
      %v413 = vunpack.c.l.b16 %v256
      %v414 = vunpack.c.h.b16 %v256
      %v415 = vunpack.c.l.b16 %v257
      %v416 = vunpack.c.h.b16 %v257
      %v417 = vunpack.c.l.b16 %v258
      %v418 = vunpack.c.h.b16 %v258
      %v419 = vunpack.c.l.b16 %v259
      %v420 = vunpack.c.h.b16 %v259
      %v421 = vunpack.c.l.b16 %v260
      %v422 = vunpack.c.h.b16 %v260
      %v423 = vunpack.c.l.b16 %v261
      %v424 = vunpack.c.h.b16 %v261
      %v425 = vunpack.c.l.b16 %v262
      %v426 = vunpack.c.h.b16 %v262
      %v427 = vunpack.c.l.b16 %v263
      %v428 = vunpack.c.h.b16 %v263
      %v429 = vunpack.c.l.b16 %v264
      %v430 = vunpack.c.h.b16 %v264
      %v431 = vunpack.c.l.b16 %v265
      %v432 = vunpack.c.h.b16 %v265
      %v433 = vpack.c.b16 %v373, %v369
      %v434 = vpack.c.b16 %v374, %v370
      %v435 = vpack.c.b16 %v375, %v371
      %v436 = vpack.c.b16 %v376, %v372
      %v437 = vpack.c.b16 %v381, %v377
      %v438 = vpack.c.b16 %v382, %v378
      %v439 = vpack.c.b16 %v383, %v379
      %v440 = vpack.c.b16 %v384, %v380
      %v441 = vpack.c.b16 %v389, %v385
      %v442 = vpack.c.b16 %v390, %v386
      %v443 = vpack.c.b16 %v391, %v387
      %v444 = vpack.c.b16 %v392, %v388
      %v445 = vpack.c.b16 %v397, %v393
      %v446 = vpack.c.b16 %v398, %v394
      %v447 = vpack.c.b16 %v399, %v395
      %v448 = vpack.c.b16 %v400, %v396
      %v449 = vpack.c.b16 %v405, %v401
      %v450 = vpack.c.b16 %v406, %v402
      %v451 = vpack.c.b16 %v407, %v403
      %v452 = vpack.c.b16 %v408, %v404
      %v453 = vpack.c.b16 %v413, %v409
      %v454 = vpack.c.b16 %v414, %v410
      %v455 = vpack.c.b16 %v415, %v411
      %v456 = vpack.c.b16 %v416, %v412
      %v457 = vpack.c.b16 %v421, %v417
      %v458 = vpack.c.b16 %v422, %v418
      %v459 = vpack.c.b16 %v423, %v419
      %v460 = vpack.c.b16 %v424, %v420
      %v461 = vpack.c.b16 %v429, %v425
      %v462 = vpack.c.b16 %v430, %v426
      %v463 = vpack.c.b16 %v431, %v427
      %v464 = vpack.c.b16 %v432, %v428
      %v561 = vunpack.c.l.b16 %v266
      %v562 = vunpack.c.l.b16 %v267
      %v563 = vunpack.c.l.b16 %v268
      %v564 = vunpack.c.l.b16 %v269
      %v565 = vunpack.c.l.b16 %v270
      %v566 = vunpack.c.l.b16 %v271
      %v567 = vunpack.c.l.b16 %v272
      %v568 = vunpack.c.l.b16 %v273
      %v569 = vunpack.c.l.b16 %v274
      %v570 = vunpack.c.l.b16 %v275
      %v571 = vunpack.c.l.b16 %v276
      %v572 = vunpack.c.l.b16 %v277
      %v573 = vunpack.c.l.b16 %v278
      %v574 = vunpack.c.l.b16 %v279
      %v575 = vunpack.c.l.b16 %v280
      %v576 = vunpack.c.l.b16 %v281
      %v577 = vunpack.c.l.b16 %v282
      %v578 = vunpack.c.l.b16 %v283
      %v579 = vunpack.c.l.b16 %v284
      %v580 = vunpack.c.l.b16 %v285
      %v581 = vunpack.c.l.b16 %v286
      %v582 = vunpack.c.l.b16 %v287
      %v583 = vunpack.c.l.b16 %v288
      %v584 = vunpack.c.l.b16 %v289
      %v585 = vunpack.c.l.b16 %v290
      %v586 = vunpack.c.l.b16 %v291
      %v587 = vunpack.c.l.b16 %v292
      %v588 = vunpack.c.l.b16 %v293
      %v589 = vunpack.c.l.b16 %v294
      %v590 = vunpack.c.l.b16 %v295
      %v591 = vunpack.c.l.b16 %v296
      %v592 = vunpack.c.l.b16 %v297
      %v593 = vunpack.c.l.b16 %v298
      %v594 = vunpack.c.l.b16 %v299
      %v595 = vunpack.c.l.b16 %v300
      %v596 = vunpack.c.l.b16 %v301
      %v597 = vunpack.c.l.b16 %v302
      %v598 = vunpack.c.l.b16 %v303
      %v599 = vunpack.c.l.b16 %v304
      %v600 = vunpack.c.l.b16 %v305
      %v601 = vunpack.c.l.b16 %v306
      %v602 = vunpack.c.l.b16 %v307
      %v603 = vunpack.c.l.b16 %v308
      %v604 = vunpack.c.l.b16 %v309
      %v605 = vunpack.c.l.b16 %v310
      %v606 = vunpack.c.l.b16 %v311
      %v607 = vunpack.c.l.b16 %v312
      %v608 = vunpack.c.l.b16 %v313
      %v609 = vunpack.c.l.b16 %v314
      %v610 = vunpack.c.l.b16 %v315
      %v611 = vunpack.c.l.b16 %v316
      %v612 = vunpack.c.l.b16 %v317
      %v613 = vunpack.c.l.b16 %v318
      %v614 = vunpack.c.l.b16 %v319
      %v615 = vunpack.c.l.b16 %v320
      %v616 = vunpack.c.l.b16 %v321
      %v617 = vunpack.c.l.b16 %v322
      %v618 = vunpack.c.l.b16 %v323
      %v619 = vunpack.c.l.b16 %v324
      %v620 = vunpack.c.l.b16 %v325
      %v621 = vunpack.c.l.b16 %v326
      %v622 = vunpack.c.l.b16 %v327
      %v623 = vunpack.c.l.b16 %v328
      %v624 = vunpack.c.l.b16 %v329
      %v625 = vpack.c.b16 %v562, %v561
      %v626 = vpack.c.b16 %v564, %v563
      %v627 = vpack.c.b16 %v566, %v565
      %v628 = vpack.c.b16 %v568, %v567
      %v629 = vpack.c.b16 %v570, %v569
      %v630 = vpack.c.b16 %v572, %v571
      %v631 = vpack.c.b16 %v574, %v573
      %v632 = vpack.c.b16 %v576, %v575
      %v633 = vpack.c.b16 %v578, %v577
      %v634 = vpack.c.b16 %v580, %v579
      %v635 = vpack.c.b16 %v582, %v581
      %v636 = vpack.c.b16 %v584, %v583
      %v637 = vpack.c.b16 %v586, %v585
      %v638 = vpack.c.b16 %v588, %v587
      %v639 = vpack.c.b16 %v590, %v589
      %v640 = vpack.c.b16 %v592, %v591
      %v641 = vpack.c.b16 %v594, %v593
      %v642 = vpack.c.b16 %v596, %v595
      %v643 = vpack.c.b16 %v598, %v597
      %v644 = vpack.c.b16 %v600, %v599
      %v645 = vpack.c.b16 %v602, %v601
      %v646 = vpack.c.b16 %v604, %v603
      %v647 = vpack.c.b16 %v606, %v605
      %v648 = vpack.c.b16 %v608, %v607
      %v649 = vpack.c.b16 %v610, %v609
      %v650 = vpack.c.b16 %v612, %v611
      %v651 = vpack.c.b16 %v614, %v613
      %v652 = vpack.c.b16 %v616, %v615
      %v653 = vpack.c.b16 %v618, %v617
      %v654 = vpack.c.b16 %v620, %v619
      %v655 = vpack.c.b16 %v622, %v621
      %v656 = vpack.c.b16 %v624, %v623
      %689 = vmatprep.subr.bf16.mxu0 0
      %690 = vmatpush1.bf16.msra.mxu0 %v632
      %691 = vmatprep.subr.bf16.mxu0 0
      %692 = vmatpush1.bf16.msra.mxu0 %v631
      %693 = vmatprep.subr.bf16.mxu0 0
      %694 = vmatpush1.bf16.msra.mxu0 %v630
      %695 = vmatprep.subr.bf16.mxu0 0
      %696 = vmatpush1.bf16.msra.mxu0 %v629
      %697 = vmatprep.subr.bf16.mxu0 0
      %698 = vmatpush1.bf16.msra.mxu0 %v628
      %699 = vmatprep.subr.bf16.mxu0 0
      %700 = vmatpush1.bf16.msra.mxu0 %v627
      %701 = vmatprep.subr.bf16.mxu0 0
      %702 = vmatpush1.bf16.msra.mxu0 %v626
      %703 = vmatprep.subr.bf16.mxu0 0
      %704 = vmatpush1.bf16.msra.mxu0 %v625
      %705 = vmatprep.subr.bf16.mxu0 0
      %706 = vmatpush2.bf16.msra.mxu0 %v640
      %707 = vmatprep.subr.bf16.mxu0 0
      %708 = vmatpush2.bf16.msra.mxu0 %v639
      %709 = vmatprep.subr.bf16.mxu0 0
      %710 = vmatpush2.bf16.msra.mxu0 %v638
      %711 = vmatprep.subr.bf16.mxu0 0
      %712 = vmatpush2.bf16.msra.mxu0 %v637
      %713 = vmatprep.subr.bf16.mxu0 0
      %714 = vmatpush2.bf16.msra.mxu0 %v636
      %715 = vmatprep.subr.bf16.mxu0 0
      %716 = vmatpush2.bf16.msra.mxu0 %v635
      %717 = vmatprep.subr.bf16.mxu0 0
      %718 = vmatpush2.bf16.msra.mxu0 %v634
      %719 = vmatprep.subr.bf16.mxu0 0
      %720 = vmatpush2.bf16.msra.mxu0 %v633
      %721 = vmatprep.mubr.bf16.mxu0 %v434
      %722 = vmatmul.mubr.bf16.gmra.mxu0 %v433
      %v723 = vpop.f32.mrf.mxu0
      %v724 = vadd.f32 %v335, %v723
      %v725 = vpop.f32.mrf.mxu0
      %v726 = vpop.f32.mrf.mxu0
      %v727 = vadd.f32 %v335, %v726
      %v728 = vpop.f32.mrf.mxu0
      %729 = vmatprep.mubr.bf16.mxu0 %v438
      %730 = vmatmul.mubr.bf16.gmra.mxu0 %v437
      %v731 = vpop.f32.mrf.mxu0
      %v732 = vadd.f32 %v335, %v731
      %v733 = vpop.f32.mrf.mxu0
      %v734 = vpop.f32.mrf.mxu0
      %v735 = vadd.f32 %v335, %v734
      %v736 = vpop.f32.mrf.mxu0
      %737 = vmatprep.mubr.bf16.mxu0 %v442
      %738 = vmatmul.mubr.bf16.gmra.mxu0 %v441
      %v739 = vpop.f32.mrf.mxu0
      %v740 = vadd.f32 %v335, %v739
      %v741 = vpop.f32.mrf.mxu0
      %v742 = vpop.f32.mrf.mxu0
      %v743 = vadd.f32 %v335, %v742
      %v744 = vpop.f32.mrf.mxu0
      %745 = vmatprep.mubr.bf16.mxu0 %v446
      %746 = vmatmul.mubr.bf16.gmra.mxu0 %v445
      %v747 = vpop.f32.mrf.mxu0
      %v748 = vadd.f32 %v335, %v747
      %v749 = vpop.f32.mrf.mxu0
      %v750 = vpop.f32.mrf.mxu0
      %v751 = vadd.f32 %v335, %v750
      %v752 = vpop.f32.mrf.mxu0
      %753 = vmatprep.mubr.bf16.mxu0 %v450
      %754 = vmatmul.mubr.bf16.gmra.mxu0 %v449
      %v755 = vpop.f32.mrf.mxu0
      %v756 = vadd.f32 %v335, %v755
      %v757 = vpop.f32.mrf.mxu0
      %v758 = vpop.f32.mrf.mxu0
      %v759 = vadd.f32 %v335, %v758
      %v760 = vpop.f32.mrf.mxu0
      %761 = vmatprep.mubr.bf16.mxu0 %v454
      %762 = vmatmul.mubr.bf16.gmra.mxu0 %v453
      %v763 = vpop.f32.mrf.mxu0
      %v764 = vadd.f32 %v335, %v763
      %v765 = vpop.f32.mrf.mxu0
      %v766 = vpop.f32.mrf.mxu0
      %v767 = vadd.f32 %v335, %v766
      %v768 = vpop.f32.mrf.mxu0
      %769 = vmatprep.mubr.bf16.mxu0 %v458
      %770 = vmatmul.mubr.bf16.gmra.mxu0 %v457
      %v771 = vpop.f32.mrf.mxu0
      %v772 = vadd.f32 %v335, %v771
      %v773 = vpop.f32.mrf.mxu0
      %v774 = vpop.f32.mrf.mxu0
      %v775 = vadd.f32 %v335, %v774
      %v776 = vpop.f32.mrf.mxu0
      %777 = vmatprep.mubr.bf16.mxu0 %v462
      %778 = vmatmul.mubr.bf16.gmra.mxu0 %v461
      %v779 = vpop.f32.mrf.mxu0
      %v780 = vadd.f32 %v335, %v779
      %v781 = vpop.f32.mrf.mxu0
      %v782 = vpop.f32.mrf.mxu0
      %v783 = vadd.f32 %v335, %v782
      %v784 = vpop.f32.mrf.mxu0
      %785 = vdwg.mxu0
      %786 = vmatprep.subr.bf16.mxu0 0
      %787 = vmatpush1.bf16.msra.mxu0 %v648
      %788 = vmatprep.subr.bf16.mxu0 0
      %789 = vmatpush1.bf16.msra.mxu0 %v647
      %790 = vmatprep.subr.bf16.mxu0 0
      %791 = vmatpush1.bf16.msra.mxu0 %v646
      %792 = vmatprep.subr.bf16.mxu0 0
      %793 = vmatpush1.bf16.msra.mxu0 %v645
      %794 = vmatprep.subr.bf16.mxu0 0
      %795 = vmatpush1.bf16.msra.mxu0 %v644
      %796 = vmatprep.subr.bf16.mxu0 0
      %797 = vmatpush1.bf16.msra.mxu0 %v643
      %798 = vmatprep.subr.bf16.mxu0 0
      %799 = vmatpush1.bf16.msra.mxu0 %v642
      %800 = vmatprep.subr.bf16.mxu0 0
      %801 = vmatpush1.bf16.msra.mxu0 %v641
      %802 = vmatprep.subr.bf16.mxu0 0
      %803 = vmatpush2.bf16.msra.mxu0 %v656
      %804 = vmatprep.subr.bf16.mxu0 0
      %805 = vmatpush2.bf16.msra.mxu0 %v655
      %806 = vmatprep.subr.bf16.mxu0 0
      %807 = vmatpush2.bf16.msra.mxu0 %v654
      %808 = vmatprep.subr.bf16.mxu0 0
      %809 = vmatpush2.bf16.msra.mxu0 %v653
      %810 = vmatprep.subr.bf16.mxu0 0
      %811 = vmatpush2.bf16.msra.mxu0 %v652
      %812 = vmatprep.subr.bf16.mxu0 0
      %813 = vmatpush2.bf16.msra.mxu0 %v651
      %814 = vmatprep.subr.bf16.mxu0 0
      %815 = vmatpush2.bf16.msra.mxu0 %v650
      %816 = vmatprep.subr.bf16.mxu0 0
      %817 = vmatpush2.bf16.msra.mxu0 %v649
      %818 = vmatprep.mubr.bf16.mxu0 %v436
      %819 = vmatmul.mubr.bf16.gmra.mxu0 %v435
      %v820 = vpop.f32.mrf.mxu0
      %v821 = vadd.f32 %v724, %v820
      %v822 = vpop.f32.mrf.mxu0
      %v823 = vpop.f32.mrf.mxu0
      %v824 = vadd.f32 %v727, %v823
      %v825 = vpop.f32.mrf.mxu0
      %826 = vmatprep.mubr.bf16.mxu0 %v440
      %827 = vmatmul.mubr.bf16.gmra.mxu0 %v439
      %v828 = vpop.f32.mrf.mxu0
      %v829 = vadd.f32 %v732, %v828
      %v830 = vpop.f32.mrf.mxu0
      %v831 = vpop.f32.mrf.mxu0
      %v832 = vadd.f32 %v735, %v831
      %v833 = vpop.f32.mrf.mxu0
      %834 = vmatprep.mubr.bf16.mxu0 %v444
      %835 = vmatmul.mubr.bf16.gmra.mxu0 %v443
      %v836 = vpop.f32.mrf.mxu0
      %v837 = vadd.f32 %v740, %v836
      %v838 = vpop.f32.mrf.mxu0
      %v839 = vpop.f32.mrf.mxu0
      %v840 = vadd.f32 %v743, %v839
      %v841 = vpop.f32.mrf.mxu0
      %842 = vmatprep.mubr.bf16.mxu0 %v448
      %843 = vmatmul.mubr.bf16.gmra.mxu0 %v447
      %v844 = vpop.f32.mrf.mxu0
      %v845 = vadd.f32 %v748, %v844
      %v846 = vpop.f32.mrf.mxu0
      %v847 = vpop.f32.mrf.mxu0
      %v848 = vadd.f32 %v751, %v847
      %v849 = vpop.f32.mrf.mxu0
      %850 = vmatprep.mubr.bf16.mxu0 %v452
      %851 = vmatmul.mubr.bf16.gmra.mxu0 %v451
      %v852 = vpop.f32.mrf.mxu0
      %v853 = vadd.f32 %v756, %v852
      %v854 = vpop.f32.mrf.mxu0
      %v855 = vpop.f32.mrf.mxu0
      %v856 = vadd.f32 %v759, %v855
      %v857 = vpop.f32.mrf.mxu0
      %858 = vmatprep.mubr.bf16.mxu0 %v456
      %859 = vmatmul.mubr.bf16.gmra.mxu0 %v455
      %v860 = vpop.f32.mrf.mxu0
      %v861 = vadd.f32 %v764, %v860
      %v862 = vpop.f32.mrf.mxu0
      %v863 = vpop.f32.mrf.mxu0
      %v864 = vadd.f32 %v767, %v863
      %v865 = vpop.f32.mrf.mxu0
      %866 = vmatprep.mubr.bf16.mxu0 %v460
      %867 = vmatmul.mubr.bf16.gmra.mxu0 %v459
      %v868 = vpop.f32.mrf.mxu0
      %v869 = vadd.f32 %v772, %v868
      %v870 = vpop.f32.mrf.mxu0
      %v871 = vpop.f32.mrf.mxu0
      %v872 = vadd.f32 %v775, %v871
      %v873 = vpop.f32.mrf.mxu0
      %874 = vmatprep.mubr.bf16.mxu0 %v464
      %875 = vmatmul.mubr.bf16.gmra.mxu0 %v463
      %v876 = vpop.f32.mrf.mxu0
      %v877 = vadd.f32 %v780, %v876
      %v878 = vpop.f32.mrf.mxu0
      %v879 = vpop.f32.mrf.mxu0
      %v880 = vadd.f32 %v783, %v879
      %v881 = vpop.f32.mrf.mxu0
      %882 = vdwg.mxu0
      %v883 = vmax.f32 %v821, 0.0
      %v884 = vmax.f32 %v824, 0.0
      %v885 = vmax.f32 %v829, 0.0
      %v886 = vmax.f32 %v832, 0.0
      %v887 = vmax.f32 %v837, 0.0
      %v888 = vmax.f32 %v840, 0.0
      %v889 = vmax.f32 %v845, 0.0
      %v890 = vmax.f32 %v848, 0.0
      %v891 = vmax.f32 %v853, 0.0
      %v892 = vmax.f32 %v856, 0.0
      %v893 = vmax.f32 %v861, 0.0
      %v894 = vmax.f32 %v864, 0.0
      %v895 = vmax.f32 %v869, 0.0
      %v896 = vmax.f32 %v872, 0.0
      %v897 = vmax.f32 %v877, 0.0
      %v898 = vmax.f32 %v880, 0.0
      %v899 = vpack.c.bf16 %v884, %v883
      %v900 = vpack.c.bf16 %v886, %v885
      %v901 = vpack.c.bf16 %v888, %v887
      %v902 = vpack.c.bf16 %v890, %v889
      %v903 = vpack.c.bf16 %v892, %v891
      %v904 = vpack.c.bf16 %v894, %v893
      %v905 = vpack.c.bf16 %v896, %v895
      %v906 = vpack.c.bf16 %v898, %v897
      %v915 = vunpack.c.l.b16 %v899
      %v916 = vunpack.c.h.b16 %v899
      %v917 = vunpack.c.l.b16 %v900
      %v918 = vunpack.c.h.b16 %v900
      %v919 = vunpack.c.l.b16 %v901
      %v920 = vunpack.c.h.b16 %v901
      %v921 = vunpack.c.l.b16 %v902
      %v922 = vunpack.c.h.b16 %v902
      %v923 = vunpack.c.l.b16 %v903
      %v924 = vunpack.c.h.b16 %v903
      %v925 = vunpack.c.l.b16 %v904
      %v926 = vunpack.c.h.b16 %v904
      %v927 = vunpack.c.l.b16 %v905
      %v928 = vunpack.c.h.b16 %v905
      %v929 = vunpack.c.l.b16 %v906
      %v930 = vunpack.c.h.b16 %v906
      %v931 = vpack.c.b16 %v915, %v915
      %v932 = vpack.c.b16 %v916, %v916
      %v933 = vpack.c.b16 %v917, %v917
      %v934 = vpack.c.b16 %v918, %v918
      %v935 = vpack.c.b16 %v919, %v919
      %v936 = vpack.c.b16 %v920, %v920
      %v937 = vpack.c.b16 %v921, %v921
      %v938 = vpack.c.b16 %v922, %v922
      %v939 = vpack.c.b16 %v923, %v923
      %v940 = vpack.c.b16 %v924, %v924
      %v941 = vpack.c.b16 %v925, %v925
      %v942 = vpack.c.b16 %v926, %v926
      %v943 = vpack.c.b16 %v927, %v927
      %v944 = vpack.c.b16 %v928, %v928
      %v945 = vpack.c.b16 %v929, %v929
      %v946 = vpack.c.b16 %v930, %v930
      %963 = vst [vmem:[%s231] sm:$0xf] %v931
      %964 = vst [vmem:[%s231 + $0x4] sm:$0xf] %v932
      %965 = vst [vmem:[%s231 + $0x8] sm:$0xf] %v933
      %966 = vst [vmem:[%s231 + $0xc] sm:$0xf] %v934
      %967 = vst [vmem:[%s231 + $0x10] sm:$0xf] %v935
      %968 = vst [vmem:[%s231 + $0x14] sm:$0xf] %v936
      %969 = vst [vmem:[%s231 + $0x18] sm:$0xf] %v937
      %970 = vst [vmem:[%s231 + $0x1c] sm:$0xf] %v938
      %971 = vst [vmem:[%s231 + $0x20] sm:$0xf] %v939
      %972 = vst [vmem:[%s231 + $0x24] sm:$0xf] %v940
      %973 = vst [vmem:[%s231 + $0x28] sm:$0xf] %v941
      %974 = vst [vmem:[%s231 + $0x2c] sm:$0xf] %v942
      %975 = vst [vmem:[%s231 + $0x30] sm:$0xf] %v943
      %976 = vst [vmem:[%s231 + $0x34] sm:$0xf] %v944
      %977 = vst [vmem:[%s231 + $0x38] sm:$0xf] %v945
      %978 = vst [vmem:[%s231 + $0x3c] sm:$0xf] %v946
      %s979 = smul.u32 16, %s19
      %p980 = scmp.lt.s32.totalorder %s18, 3
      %s981 = scalar_select %p980, %s18, 3
      %p982 = scmp.lt.s32.totalorder %s979, 15
      %s983 = scalar_select %p982, %s979, 15
      %s984 = smul.addr %s981, 16
      %s985 = sadd.s32 %s983, %s984
      %s986 = smul.addr %s985, 4
      %s987 = scalar_lea.vmem %s3, %s986
      // Predicated region
      $region33: #{_lambda_.6} parent=31 // pred_check
        %p988 = pneg %p121
      $region34: #{_lambda_.6} parent=31 // pred_check_branch
        %990 = sbr.rel (%p988) target = $region36
      $region35: #{_lambda_.6} parent=31 // pred_region
        %s991 = smul.u32 16, %s19
      $region36: #{_lambda_.6} parent=31 // pred_fallthru
        _
    $region32: #{_lambda_.6} parent=5 // pred_fallthru
      _
    %p992 = scmp.le.s32.totalorder 2, %s9
    // Predicated region
    $region37: #{_lambda_.6} parent=5 // pred_check
      %p993 = pneg %p992
    $region38: #{_lambda_.6} parent=5 // pred_check_branch
      %995 = sbr.rel (%p993) target = $region40
    $region39: #{_lambda_.6} parent=5 // pred_region
      %s996 = ssub.s32 %s9, 2
      // Predicated region
      $region41: #{_lambda_.6} parent=39 // pred_check
        %p997 = pneg %p127
      $region42: #{_lambda_.6} parent=39 // pred_check_branch
        %999 = sbr.rel (%p997) target = $region44
      $region43: #{_lambda_.6} parent=39 // pred_region
        %s1000 = smul.u32 16, %s21
        %p1001 = scmp.lt.s32.totalorder %s20, 3
        %s1002 = scalar_select %p1001, %s20, 3
        %p1003 = scmp.lt.s32.totalorder %s1000, 15
        %s1004 = scalar_select %p1003, %s1000, 15
        %s1005 = smul.addr %s1002, 16
        %s1006 = sadd.s32 %s1004, %s1005
        %s1007 = smul.addr %s1006, 4
        %s1008 = scalar_lea.vmem %s3, %s1007
      $region44: #{_lambda_.6} parent=39 // pred_fallthru
        _
    $region40: #{_lambda_.6} parent=5 // pred_fallthru
      _
  $region6: #{_lambda_.6} parent=0 // loop_footer
    %s13 = sadd.s32 1, %s9
  $region7: #{_lambda_.6} parent=0 // loop_footer_branch
    %8 = sbr.rel target = $region3
  $region8: #{_lambda_.6} parent=0 // loop_exit
    _

// kernel: _lambda_.7
$region0: #{_lambda_.7}
  #allocation0 [shape = 'u32[]', space=smem, size = 0x4, offset = 0x4, fixed_abs, tag = 'smem constant byte address 0x4 - core index']
  #allocation1 [shape = 'u32[144,128]{1,0:T(1,128)}', space=vmem, size = 0x12000, scoped, tag = 'internal scratch']
  %s0 = inlined_call_operand.vmem [shape: bf16[2,256,128], index: 0, kind: input, shape index: {}]
  %s1 = inlined_call_operand.vmem [shape: bf16[8,128], index: 1, kind: input, shape index: {}]
  %s2 = inlined_call_operand.vmem [shape: f32[8,1], index: 2, kind: input, shape index: {}]
  %s3 = inlined_call_operand.vmem [shape: f32[256,16], index: 3, kind: input, shape index: {}]
  %s4 = inlined_call_operand.vmem [shape: f32[256,16], index: 4, kind: input, shape index: {}]
  %s5 = inlined_call_operand.vmem [shape: f32[2,4,256], index: 5, kind: output, shape index: {0}]
  %s6 = inlined_call_operand.vmem [shape: f32[2,4,256], index: 6, kind: output, shape index: {1}]
  %s7 = inlined_call_operand.hbm [shape: f32[2,4,16], index: 7, kind: output, shape index: {2}]
  %s8 = inlined_call_operand.hbm [shape: f32[2,4,16], index: 8, kind: output, shape index: {3}]
  %s9 = inlined_call_operand.vmem [shape: f32[2,4,2], index: 9, kind: output, shape index: {4}]
  %s10 = inlined_call_operand.vmem [shape: f32[2,4,1], index: 10, kind: output, shape index: {5}]
  %11 = xla_tuple %s5, %s6, %s7, %s8, %s9, %s10
  %s12 = sld [smem:[#allocation0]]
  $region93: #{_lambda_.7} parent=0
    _
  %s14 = ssub.s32 1, %s12
  %s15 = scalar_select 0, %s14, %s12
  $region1: #{_lambda_.7} parent=0
    #allocation2 [shape = 'u8[4096]{0}', space=vmem, size = 0x1000, scoped, tag = 'output window, operand 2']
    #allocation3 [shape = 's32[2]{0}', space=sflag, size = 0x8, scoped, tag = 'scoped memory for _lambda_.7']
    #allocation4 [shape = 'u8[4096]{0}', space=vmem, size = 0x1000, scoped, tag = 'output window, operand 3']
    #allocation5 [shape = 's32[2]{0}', space=sflag, size = 0x8, scoped, tag = 'scoped memory for _lambda_.7']
    %16 = vsyncpa [#allocation3], 0
    %s17 = scalar_lea.sflag [#allocation3], 1
    %18 = vsyncpa %s17, 0
    %19 = vsyncpa [#allocation5], 0
    %s20 = scalar_lea.sflag [#allocation5], 1
    %21 = vsyncpa %s20, 0
    loop: start=0, step=1, limit=4
    $region2: #{_lambda_.7} parent=1 // loop_pre_header
      _
    $region3: #{_lambda_.7} parent=1 // loop_header
      %s23 = sphi 0, %s27
      %p24 = scmp.ge.s32.totalorder %s23, 4
      %s33 = sphi 0, %s35
      %s36 = sphi 0, %s33
      %s37 = sphi 0, %s36
      %s53 = sphi 0, %s37
      %s57 = sphi 0, %s57
      %s59 = sphi 0, %s57
      %s60 = sphi 0, %s59
      %s74 = sphi 0, %s60
      %s78 = sphi 0, %s78
      %s80 = sphi 0, %s78
      %s81 = sphi 0, %s80
      %s95 = sphi 0, %s81
      %s99 = sphi 0, %s99
      %s101 = sphi 0, %s99
      %s102 = sphi 0, %s101
      %s116 = sphi 0, %s102
      %s120 = sphi 0, %s120
      %s122 = sphi 0, %s120
      %s123 = sphi 0, %s122
      %s137 = sphi 0, %s123
      %s143 = sphi 0, %s145
      %s146 = sphi 0, %s143
      %s147 = sphi 0, %s146
      %s163 = sphi 0, %s147
      %s169 = sphi 0, %s171
      %s172 = sphi 0, %s169
      %s173 = sphi 0, %s172
      %s189 = sphi 0, %s173
      %s195 = sphi 0, %s197
      %s198 = sphi 0, %s195
      %s199 = sphi 0, %s198
      %s215 = sphi 0, %s199
      %s221 = sphi 0, %s223
      %s224 = sphi 0, %s221
      %s225 = sphi 0, %s224
      %s241 = sphi 0, %s225
      %s247 = sphi 0, %s249
      %s250 = sphi 0, %s247
      %s251 = sphi 0, %s250
      %s267 = sphi 0, %s251
      %s273 = sphi 0, %s275
      %s276 = sphi 0, %s273
      %s277 = sphi 0, %s276
      %s293 = sphi 0, %s277
    $region4: #{_lambda_.7} parent=1 // loop_header_branch
      %26 = sbr.rel (%p24) target = $region8
    $region5: #{_lambda_.7} parent=1 // loop_body
      %s28 = ssub.s32 %s23, 1
      %s29 = ssub.s32 %s23, 2
      %s30 = sadd.s32 %s23, 1
      %s31 = ssub.s32 %s23, %s30
      %p32 = scmp.eq.s32.totalorder %s31, 0
      %s34 = sadd.s32 %s33, 1
      %s35 = scalar_select %p32, %s33, %s34
      %p38 = pneg %p32
      %p39 = scmp.eq.s32.totalorder %s23, 1
      %p40 = por %p38, %p39
      %p41 = scmp.ne.s32.totalorder %s33, %s36
      %p42 = scmp.eq.s32.totalorder %s23, 0
      %p43 = por %p41, %p42
      %p44 = scmp.ne.s32.totalorder %s33, %s36
      %p45 = scmp.eq.s32.totalorder %s28, 1
      %p46 = por %p44, %p45
      %p47 = scmp.ne.s32.totalorder %s36, %s37
      %p48 = scmp.eq.s32.totalorder %s28, 0
      %p49 = por %p47, %p48
      %p50 = scmp.ne.s32.totalorder %s36, %s37
      %p51 = scmp.eq.s32.totalorder %s29, 1
      %p52 = por %p50, %p51
      %p54 = scmp.ne.s32.totalorder %s37, %s53
      %p55 = scmp.eq.s32.totalorder %s29, 0
      %p56 = por %p54, %p55
      %s58 = sadd.s32 %s57, 1
      %p61 = scmp.eq.s32.totalorder %s23, 1
      %p62 = scmp.ne.s32.totalorder %s57, %s59
      %p63 = scmp.eq.s32.totalorder %s23, 0
      %p64 = por %p62, %p63
      %p65 = scmp.ne.s32.totalorder %s57, %s59
      %p66 = scmp.eq.s32.totalorder %s28, 1
      %p67 = por %p65, %p66
      %p68 = scmp.ne.s32.totalorder %s59, %s60
      %p69 = scmp.eq.s32.totalorder %s28, 0
      %p70 = por %p68, %p69
      %p71 = scmp.ne.s32.totalorder %s59, %s60
      %p72 = scmp.eq.s32.totalorder %s29, 1
      %p73 = por %p71, %p72
      %p75 = scmp.ne.s32.totalorder %s60, %s74
      %p76 = scmp.eq.s32.totalorder %s29, 0
      %p77 = por %p75, %p76
      %s79 = sadd.s32 %s78, 1
      %p82 = scmp.eq.s32.totalorder %s23, 1
      %p83 = scmp.ne.s32.totalorder %s78, %s80
      %p84 = scmp.eq.s32.totalorder %s23, 0
      %p85 = por %p83, %p84
      %p86 = scmp.ne.s32.totalorder %s78, %s80
      %p87 = scmp.eq.s32.totalorder %s28, 1
      %p88 = por %p86, %p87
      %p89 = scmp.ne.s32.totalorder %s80, %s81
      %p90 = scmp.eq.s32.totalorder %s28, 0
      %p91 = por %p89, %p90
      %p92 = scmp.ne.s32.totalorder %s80, %s81
      %p93 = scmp.eq.s32.totalorder %s29, 1
      %p94 = por %p92, %p93
      %p96 = scmp.ne.s32.totalorder %s81, %s95
      %p97 = scmp.eq.s32.totalorder %s29, 0
      %p98 = por %p96, %p97
      %s100 = sadd.s32 %s99, 1
      %p103 = scmp.eq.s32.totalorder %s23, 1
      %p104 = scmp.ne.s32.totalorder %s99, %s101
      %p105 = scmp.eq.s32.totalorder %s23, 0
      %p106 = por %p104, %p105
      %p107 = scmp.ne.s32.totalorder %s99, %s101
      %p108 = scmp.eq.s32.totalorder %s28, 1
      %p109 = por %p107, %p108
      %p110 = scmp.ne.s32.totalorder %s101, %s102
      %p111 = scmp.eq.s32.totalorder %s28, 0
      %p112 = por %p110, %p111
      %p113 = scmp.ne.s32.totalorder %s101, %s102
      %p114 = scmp.eq.s32.totalorder %s29, 1
      %p115 = por %p113, %p114
      %p117 = scmp.ne.s32.totalorder %s102, %s116
      %p118 = scmp.eq.s32.totalorder %s29, 0
      %p119 = por %p117, %p118
      %s121 = sadd.s32 %s120, 1
      %p124 = scmp.eq.s32.totalorder %s23, 1
      %p125 = scmp.ne.s32.totalorder %s120, %s122
      %p126 = scmp.eq.s32.totalorder %s23, 0
      %p127 = por %p125, %p126
      %p128 = scmp.ne.s32.totalorder %s120, %s122
      %p129 = scmp.eq.s32.totalorder %s28, 1
      %p130 = por %p128, %p129
      %p131 = scmp.ne.s32.totalorder %s122, %s123
      %p132 = scmp.eq.s32.totalorder %s28, 0
      %p133 = por %p131, %p132
      %p134 = scmp.ne.s32.totalorder %s122, %s123
      %p135 = scmp.eq.s32.totalorder %s29, 1
      %p136 = por %p134, %p135
      %p138 = scmp.ne.s32.totalorder %s123, %s137
      %p139 = scmp.eq.s32.totalorder %s29, 0
      %p140 = por %p138, %p139
      %s141 = ssub.s32 %s23, %s30
      %p142 = scmp.eq.s32.totalorder %s141, 0
      %s144 = sadd.s32 %s143, 1
      %s145 = scalar_select %p142, %s143, %s144
      %p148 = pneg %p142
      %p149 = scmp.eq.s32.totalorder %s23, 1
      %p150 = por %p148, %p149
      %p151 = scmp.ne.s32.totalorder %s143, %s146
      %p152 = scmp.eq.s32.totalorder %s23, 0
      %p153 = por %p151, %p152
      %p154 = scmp.ne.s32.totalorder %s143, %s146
      %p155 = scmp.eq.s32.totalorder %s28, 1
      %p156 = por %p154, %p155
      %p157 = scmp.ne.s32.totalorder %s146, %s147
      %p158 = scmp.eq.s32.totalorder %s28, 0
      %p159 = por %p157, %p158
      %p160 = scmp.ne.s32.totalorder %s146, %s147
      %p161 = scmp.eq.s32.totalorder %s29, 1
      %p162 = por %p160, %p161
      %p164 = scmp.ne.s32.totalorder %s147, %s163
      %p165 = scmp.eq.s32.totalorder %s29, 0
      %p166 = por %p164, %p165
      %s167 = ssub.s32 %s23, %s30
      %p168 = scmp.eq.s32.totalorder %s167, 0
      %s170 = sadd.s32 %s169, 1
      %s171 = scalar_select %p168, %s169, %s170
      %p174 = pneg %p168
      %p175 = scmp.eq.s32.totalorder %s23, 1
      %p176 = por %p174, %p175
      %p177 = scmp.ne.s32.totalorder %s169, %s172
      %p178 = scmp.eq.s32.totalorder %s23, 0
      %p179 = por %p177, %p178
      %p180 = scmp.ne.s32.totalorder %s169, %s172
      %p181 = scmp.eq.s32.totalorder %s28, 1
      %p182 = por %p180, %p181
      %p183 = scmp.ne.s32.totalorder %s172, %s173
      %p184 = scmp.eq.s32.totalorder %s28, 0
      %p185 = por %p183, %p184
      %p186 = scmp.ne.s32.totalorder %s172, %s173
      %p187 = scmp.eq.s32.totalorder %s29, 1
      %p188 = por %p186, %p187
      %p190 = scmp.ne.s32.totalorder %s173, %s189
      %p191 = scmp.eq.s32.totalorder %s29, 0
      %p192 = por %p190, %p191
      %s193 = ssub.s32 %s23, %s30
      %p194 = scmp.eq.s32.totalorder %s193, 0
      %s196 = sadd.s32 %s195, 1
      %s197 = scalar_select %p194, %s195, %s196
      %p200 = pneg %p194
      %p201 = scmp.eq.s32.totalorder %s23, 1
      %p202 = por %p200, %p201
      %p203 = scmp.ne.s32.totalorder %s195, %s198
      %p204 = scmp.eq.s32.totalorder %s23, 0
      %p205 = por %p203, %p204
      %p206 = scmp.ne.s32.totalorder %s195, %s198
      %p207 = scmp.eq.s32.totalorder %s28, 1
      %p208 = por %p206, %p207
      %p209 = scmp.ne.s32.totalorder %s198, %s199
      %p210 = scmp.eq.s32.totalorder %s28, 0
      %p211 = por %p209, %p210
      %p212 = scmp.ne.s32.totalorder %s198, %s199
      %p213 = scmp.eq.s32.totalorder %s29, 1
      %p214 = por %p212, %p213
      %p216 = scmp.ne.s32.totalorder %s199, %s215
      %p217 = scmp.eq.s32.totalorder %s29, 0
      %p218 = por %p216, %p217
      %s219 = ssub.s32 %s23, %s30
      %p220 = scmp.eq.s32.totalorder %s219, 0
      %s222 = sadd.s32 %s221, 1
      %s223 = scalar_select %p220, %s221, %s222
      %p226 = pneg %p220
      %p227 = scmp.eq.s32.totalorder %s23, 1
      %p228 = por %p226, %p227
      %p229 = scmp.ne.s32.totalorder %s221, %s224
      %p230 = scmp.eq.s32.totalorder %s23, 0
      %p231 = por %p229, %p230
      %p232 = scmp.ne.s32.totalorder %s221, %s224
      %p233 = scmp.eq.s32.totalorder %s28, 1
      %p234 = por %p232, %p233
      %p235 = scmp.ne.s32.totalorder %s224, %s225
      %p236 = scmp.eq.s32.totalorder %s28, 0
      %p237 = por %p235, %p236
      %p238 = scmp.ne.s32.totalorder %s224, %s225
      %p239 = scmp.eq.s32.totalorder %s29, 1
      %p240 = por %p238, %p239
      %p242 = scmp.ne.s32.totalorder %s225, %s241
      %p243 = scmp.eq.s32.totalorder %s29, 0
      %p244 = por %p242, %p243
      %s245 = ssub.s32 %s23, %s30
      %p246 = scmp.eq.s32.totalorder %s245, 0
      %s248 = sadd.s32 %s247, 1
      %s249 = scalar_select %p246, %s247, %s248
      %p252 = pneg %p246
      %p253 = scmp.eq.s32.totalorder %s23, 1
      %p254 = por %p252, %p253
      %p255 = scmp.ne.s32.totalorder %s247, %s250
      %p256 = scmp.eq.s32.totalorder %s23, 0
      %p257 = por %p255, %p256
      %p258 = scmp.ne.s32.totalorder %s247, %s250
      %p259 = scmp.eq.s32.totalorder %s28, 1
      %p260 = por %p258, %p259
      %p261 = scmp.ne.s32.totalorder %s250, %s251
      %p262 = scmp.eq.s32.totalorder %s28, 0
      %p263 = por %p261, %p262
      %p264 = scmp.ne.s32.totalorder %s250, %s251
      %p265 = scmp.eq.s32.totalorder %s29, 1
      %p266 = por %p264, %p265
      %p268 = scmp.ne.s32.totalorder %s251, %s267
      %p269 = scmp.eq.s32.totalorder %s29, 0
      %p270 = por %p268, %p269
      %s271 = ssub.s32 %s23, %s30
      %p272 = scmp.eq.s32.totalorder %s271, 0
      %s274 = sadd.s32 %s273, 1
      %s275 = scalar_select %p272, %s273, %s274
      %p278 = pneg %p272
      %p279 = scmp.eq.s32.totalorder %s23, 1
      %p280 = por %p278, %p279
      %p281 = scmp.ne.s32.totalorder %s273, %s276
      %p282 = scmp.eq.s32.totalorder %s23, 0
      %p283 = por %p281, %p282
      %p284 = scmp.ne.s32.totalorder %s273, %s276
      %p285 = scmp.eq.s32.totalorder %s28, 1
      %p286 = por %p284, %p285
      %p287 = scmp.ne.s32.totalorder %s276, %s277
      %p288 = scmp.eq.s32.totalorder %s28, 0
      %p289 = por %p287, %p288
      %p290 = scmp.ne.s32.totalorder %s276, %s277
      %p291 = scmp.eq.s32.totalorder %s29, 1
      %p292 = por %p290, %p291
      %p294 = scmp.ne.s32.totalorder %s277, %s293
      %p295 = scmp.eq.s32.totalorder %s29, 0
      %p296 = por %p294, %p295
      %p297 = scmp.le.s32.totalorder 1, %s23
      %p298 = scmp.lt.s32.totalorder %s23, 3
      %p299 = pnand %p297, %p298
      %p300 = pneg %p299
      // Predicated region
      $region9: #{_lambda_.7} parent=5 // pred_check
        _
      $region10: #{_lambda_.7} parent=5 // pred_check_branch
        %302 = sbr.rel (%p299) target = $region12
      $region11: #{_lambda_.7} parent=5 // pred_region
        %s303 = ssub.s32 %s23, 1
        // Predicated region
        $region13: #{_lambda_.7} parent=11 // pred_check
          %p304 = pneg %p70
        $region14: #{_lambda_.7} parent=11 // pred_check_branch
          %306 = sbr.rel (%p304) target = $region16
        $region15: #{_lambda_.7} parent=11 // pred_region
          _
        $region16: #{_lambda_.7} parent=11 // pred_fallthru
          _
        // Predicated region
        $region17: #{_lambda_.7} parent=11 // pred_check
          %p307 = pneg %p91
        $region18: #{_lambda_.7} parent=11 // pred_check_branch
          %309 = sbr.rel (%p307) target = $region20
        $region19: #{_lambda_.7} parent=11 // pred_region
          _
        $region20: #{_lambda_.7} parent=11 // pred_fallthru
          _
        // Predicated region
        $region21: #{_lambda_.7} parent=11 // pred_check
          %p310 = pneg %p112
        $region22: #{_lambda_.7} parent=11 // pred_check_branch
          %312 = sbr.rel (%p310) target = $region24
        $region23: #{_lambda_.7} parent=11 // pred_region
          _
        $region24: #{_lambda_.7} parent=11 // pred_fallthru
          _
        // Predicated region
        $region25: #{_lambda_.7} parent=11 // pred_check
          %p313 = pneg %p133
        $region26: #{_lambda_.7} parent=11 // pred_check_branch
          %315 = sbr.rel (%p313) target = $region28
        $region27: #{_lambda_.7} parent=11 // pred_region
          _
        $region28: #{_lambda_.7} parent=11 // pred_fallthru
          _
      $region12: #{_lambda_.7} parent=5 // pred_fallthru
        _
      %p316 = scmp.lt.s32.totalorder %s23, 2
      // Predicated region
      $region29: #{_lambda_.7} parent=5 // pred_check
        %p317 = pneg %p316
      $region30: #{_lambda_.7} parent=5 // pred_check_branch
        %319 = sbr.rel (%p317) target = $region32
      $region31: #{_lambda_.7} parent=5 // pred_region
        // Predicated region
        $region33: #{_lambda_.7} parent=31 // pred_check
          %p320 = pneg %p43
        $region34: #{_lambda_.7} parent=31 // pred_check_branch
          %322 = sbr.rel (%p320) target = $region36
        $region35: #{_lambda_.7} parent=31 // pred_region
          %p323 = scmp.lt.s32.totalorder %s23, 1
          %s324 = scalar_select %p323, %s23, 1
          %s325 = smul.addr %s324, 32
          %s326 = smul.addr %s325, 4
          %s327 = scalar_lea.vmem %s0, %s326
        $region36: #{_lambda_.7} parent=31 // pred_fallthru
          _
      $region32: #{_lambda_.7} parent=5 // pred_fallthru
        _
      %p328 = scmp.le.s32.totalorder 1, %s23
      %p329 = scmp.lt.s32.totalorder %s23, 3
      %p330 = pnand %p328, %p329
      %p331 = pneg %p330
      // Predicated region
      $region37: #{_lambda_.7} parent=5 // pred_check
        _
      $region38: #{_lambda_.7} parent=5 // pred_check_branch
        %333 = sbr.rel (%p330) target = $region40
      $region39: #{_lambda_.7} parent=5 // pred_region
        %s334 = ssub.s32 %s23, 1
        %p335 = scmp.lt.s32.totalorder %s28, 1
        %s336 = scalar_select %p335, %s28, 1
        %s337 = smul.addr %s336, 32
        %s338 = smul.addr %s337, 4
        %s339 = scalar_lea.vmem %s0, %s338
        %p340 = pneg %p49
        %p341 = pneg %p46
        %p342 = pneg %p70
        %p343 = pneg %p67
        %p344 = pneg %p91
        %p345 = pneg %p88
        %p346 = pneg %p112
        %p347 = pneg %p109
        %p348 = pneg %p133
        %p349 = pneg %p130
        %p350 = pneg %p159
        %p351 = pneg %p156
        %p352 = scmp.lt.s32.totalorder %s28, 1
        %s353 = scalar_select %p352, %s28, 1
        %s354 = smul.addr %s353, 2
        %s355 = smul.addr %s354, 4
        %s356 = scalar_lea.vmem %s5, %s355
        %p357 = pneg %p185
        %p358 = pneg %p182
        %p359 = scmp.lt.s32.totalorder %s28, 1
        %s360 = scalar_select %p359, %s28, 1
        %s361 = smul.addr %s360, 2
        %s362 = smul.addr %s361, 4
        %s363 = scalar_lea.vmem %s6, %s362
        %p364 = pneg %p211
        %p365 = pneg %p208
        %s366 = sand.u32 %s198, 1
        %s367 = scalar_lea.sflag [#allocation3], %s366
        %s368 = sand.u32 %s198, 1
        %s369 = smul.addr %s368, 4
        %s370 = scalar_lea.vmem [#allocation2], %s369
        %p371 = pneg %p237
        %p372 = pneg %p234
        %s373 = sand.u32 %s224, 1
        %s374 = scalar_lea.sflag [#allocation5], %s373
        %s375 = sand.u32 %s224, 1
        %s376 = smul.addr %s375, 4
        %s377 = scalar_lea.vmem [#allocation4], %s376
        %p378 = pneg %p263
        %p379 = pneg %p260
        %p380 = scmp.lt.s32.totalorder %s28, 1
        %s381 = scalar_select %p380, %s28, 1
        %s382 = smul.addr %s381, 4
        %s383 = scalar_lea.vmem %s9, %s382
        %p384 = pneg %p289
        %p385 = pneg %p286
        %p386 = scmp.lt.s32.totalorder %s28, 1
        %s387 = scalar_select %p386, %s28, 1
        %s388 = smul.addr %s387, 4
        %s389 = scalar_lea.vmem %s10, %s388
        %p390 = scmp.lt.s32.totalorder %s28, 1
        %s391 = scalar_select %p390, %s28, 1
        %s392 = smul.addr %s391, 32
        %s393 = smul.addr %s392, 4
        %s394 = scalar_lea.vmem %s0, %s393
        %p395 = scmp.lt.s32.totalorder %s28, 1
        %s396 = scalar_select %p395, %s28, 1
        %s397 = smul.addr %s396, 2
        %s398 = smul.addr %s397, 4
        %s399 = scalar_lea.vmem %s5, %s398
        %p400 = scmp.lt.s32.totalorder %s28, 1
        %s401 = scalar_select %p400, %s28, 1
        %s402 = smul.addr %s401, 2
        %s403 = smul.addr %s402, 4
        %s404 = scalar_lea.vmem %s6, %s403
        %p405 = scmp.lt.s32.totalorder %s28, 1
        %s406 = scalar_select %p405, %s28, 1
        %s407 = smul.addr %s406, 4
        %s408 = scalar_lea.vmem %s9, %s407
        %p409 = scmp.lt.s32.totalorder %s28, 1
        %s410 = scalar_select %p409, %s28, 1
        %s411 = smul.addr %s410, 4
        %s412 = scalar_lea.vmem %s10, %s411
        %v414 = vld [vmem:[%s394] sm:$0xf]
        %v415 = vld [vmem:[%s394 + $0x4] sm:$0xf]
        %v416 = vld [vmem:[%s394 + $0x8] sm:$0xf]
        %v417 = vld [vmem:[%s394 + $0xc] sm:$0xf]
        %v418 = vld [vmem:[%s394 + $0x10] sm:$0xf]
        %v419 = vld [vmem:[%s394 + $0x14] sm:$0xf]
        %v420 = vld [vmem:[%s394 + $0x18] sm:$0xf]
        %v421 = vld [vmem:[%s394 + $0x1c] sm:$0xf]
        %v422 = vld [vmem:[%s394 + $0x20] sm:$0xf]
        %v423 = vld [vmem:[%s394 + $0x24] sm:$0xf]
        %v424 = vld [vmem:[%s394 + $0x28] sm:$0xf]
        %v425 = vld [vmem:[%s394 + $0x2c] sm:$0xf]
        %v426 = vld [vmem:[%s394 + $0x30] sm:$0xf]
        %v427 = vld [vmem:[%s394 + $0x34] sm:$0xf]
        %v428 = vld [vmem:[%s394 + $0x38] sm:$0xf]
        %v429 = vld [vmem:[%s394 + $0x3c] sm:$0xf]
        %v430 = vld [vmem:[%s394 + $0x40] sm:$0xf]
        %v431 = vld [vmem:[%s394 + $0x44] sm:$0xf]
        %v432 = vld [vmem:[%s394 + $0x48] sm:$0xf]
        %v433 = vld [vmem:[%s394 + $0x4c] sm:$0xf]
        %v434 = vld [vmem:[%s394 + $0x50] sm:$0xf]
        %v435 = vld [vmem:[%s394 + $0x54] sm:$0xf]
        %v436 = vld [vmem:[%s394 + $0x58] sm:$0xf]
        %v437 = vld [vmem:[%s394 + $0x5c] sm:$0xf]
        %v438 = vld [vmem:[%s394 + $0x60] sm:$0xf]
        %v439 = vld [vmem:[%s394 + $0x64] sm:$0xf]
        %v440 = vld [vmem:[%s394 + $0x68] sm:$0xf]
        %v441 = vld [vmem:[%s394 + $0x6c] sm:$0xf]
        %v442 = vld [vmem:[%s394 + $0x70] sm:$0xf]
        %v443 = vld [vmem:[%s394 + $0x74] sm:$0xf]
        %v444 = vld [vmem:[%s394 + $0x78] sm:$0xf]
        %v445 = vld [vmem:[%s394 + $0x7c] sm:$0xf]
        %v446 = vld [vmem:[%s1] sm:$0xf]
        %v447 = vld [vmem:[%s2] sm:$0xff]
        %449 = vset.pattern.permute.xlu0 0
        %450 = vperm.xlu0 %449, %v447
        %v451 = vpop.permute.xlu0 %450
        %v485 = vunpack.c.l.b16 %v414
        %v486 = vunpack.c.l.b16 %v415
        %v487 = vunpack.c.l.b16 %v416
        %v488 = vunpack.c.l.b16 %v417
        %v489 = vunpack.c.l.b16 %v418
        %v490 = vunpack.c.l.b16 %v419
        %v491 = vunpack.c.l.b16 %v420
        %v492 = vunpack.c.l.b16 %v421
        %v493 = vunpack.c.l.b16 %v422
        %v494 = vunpack.c.l.b16 %v423
        %v495 = vunpack.c.l.b16 %v424
        %v496 = vunpack.c.l.b16 %v425
        %v497 = vunpack.c.l.b16 %v426
        %v498 = vunpack.c.l.b16 %v427
        %v499 = vunpack.c.l.b16 %v428
        %v500 = vunpack.c.l.b16 %v429
        %v501 = vunpack.c.l.b16 %v430
        %v502 = vunpack.c.l.b16 %v431
        %v503 = vunpack.c.l.b16 %v432
        %v504 = vunpack.c.l.b16 %v433
        %v505 = vunpack.c.l.b16 %v434
        %v506 = vunpack.c.l.b16 %v435
        %v507 = vunpack.c.l.b16 %v436
        %v508 = vunpack.c.l.b16 %v437
        %v509 = vunpack.c.l.b16 %v438
        %v510 = vunpack.c.l.b16 %v439
        %v511 = vunpack.c.l.b16 %v440
        %v512 = vunpack.c.l.b16 %v441
        %v513 = vunpack.c.l.b16 %v442
        %v514 = vunpack.c.l.b16 %v443
        %v515 = vunpack.c.l.b16 %v444
        %v516 = vunpack.c.l.b16 %v445
        %v517 = vpack.c.b16 %v486, %v485
        %v518 = vpack.c.b16 %v488, %v487
        %v519 = vpack.c.b16 %v490, %v489
        %v520 = vpack.c.b16 %v492, %v491
        %v521 = vpack.c.b16 %v494, %v493
        %v522 = vpack.c.b16 %v496, %v495
        %v523 = vpack.c.b16 %v498, %v497
        %v524 = vpack.c.b16 %v500, %v499
        %v525 = vpack.c.b16 %v502, %v501
        %v526 = vpack.c.b16 %v504, %v503
        %v527 = vpack.c.b16 %v506, %v505
        %v528 = vpack.c.b16 %v508, %v507
        %v529 = vpack.c.b16 %v510, %v509
        %v530 = vpack.c.b16 %v512, %v511
        %v531 = vpack.c.b16 %v514, %v513
        %v532 = vpack.c.b16 %v516, %v515
        %549 = vmatprep.subr.bf16.mxu0 0
        %550 = vmatpush1.bf16.xpose.msra.mxu0 %v524
        %551 = vmatprep.subr.bf16.mxu0 0
        %552 = vmatpush1.bf16.xpose.msra.mxu0 %v523
        %553 = vmatprep.subr.bf16.mxu0 0
        %554 = vmatpush1.bf16.xpose.msra.mxu0 %v522
        %555 = vmatprep.subr.bf16.mxu0 0
        %556 = vmatpush1.bf16.xpose.msra.mxu0 %v521
        %557 = vmatprep.subr.bf16.mxu0 0
        %558 = vmatpush1.bf16.xpose.msra.mxu0 %v520
        %559 = vmatprep.subr.bf16.mxu0 0
        %560 = vmatpush1.bf16.xpose.msra.mxu0 %v519
        %561 = vmatprep.subr.bf16.mxu0 0
        %562 = vmatpush1.bf16.xpose.msra.mxu0 %v518
        %563 = vmatprep.subr.bf16.mxu0 0
        %564 = vmatpush1.bf16.xpose.msra.mxu0 %v517
        %565 = vmatprep.subr.bf16.mxu0 0
        %566 = vmatpush2.bf16.xpose.msra.mxu0 %v532
        %567 = vmatprep.subr.bf16.mxu0 0
        %568 = vmatpush2.bf16.xpose.msra.mxu0 %v531
        %569 = vmatprep.subr.bf16.mxu0 0
        %570 = vmatpush2.bf16.xpose.msra.mxu0 %v530
        %571 = vmatprep.subr.bf16.mxu0 0
        %572 = vmatpush2.bf16.xpose.msra.mxu0 %v529
        %573 = vmatprep.subr.bf16.mxu0 0
        %574 = vmatpush2.bf16.xpose.msra.mxu0 %v528
        %575 = vmatprep.subr.bf16.mxu0 0
        %576 = vmatpush2.bf16.xpose.msra.mxu0 %v527
        %577 = vmatprep.subr.bf16.mxu0 0
        %578 = vmatpush2.bf16.xpose.msra.mxu0 %v526
        %579 = vmatprep.subr.bf16.mxu0 0
        %580 = vmatpush2.bf16.xpose.msra.mxu0 %v525
        %581 = vmatprep.mubr.bf16.mxu0 0
        %582 = vmatmul.mubr.bf16.gmra.mxu0 %v446
        %v583 = vpop.f32.mrf.mxu0
        %v584 = vadd.f32 %v451, %v583
        %v585 = vpop.f32.mrf.mxu0
        %v586 = vadd.f32 %v451, %v585
        %v587 = vpop.f32.mrf.mxu0
        %v588 = vpop.f32.mrf.mxu0
        %589 = vdwg.mxu0
        %v592 = vcombine.low %v584, %v586
        %594 = vst [vmem:[%s399] sm:$0xff] %v592
        %v595 = vmax.f32 %v584, %v586
        %596 = vmax.xlane.f32.xlu0 %v595
        %v597 = vpop.xlane.xlu0 %596
        %v598 = vsub.f32 %v584, %v597
        %v599 = vsub.f32 %v586, %v597
        %v600 = vmul.f32 %v598, 1.442695
        %v601 = vpow.pop %v600
        %v602 = vmul.f32 %v599, 1.442695
        %v603 = vpow.pop %v602
        %v604 = vadd.f32 %v601, %v603
        %605 = vadd.xlane.f32.xlu0 %v604
        %v606 = vpop.xlane.xlu0 %605
        %v607 = vrcp.pop %v606
        %v608 = vmul.f32 %v601, %v607
        %v609 = vmul.f32 %v603, %v607
        %v610 = vmax.f32 %v608, %v609
        %611 = vmax.xlane.f32.xlu0 %v610
        %v612 = vpop.xlane.xlu0 %611
        %v613 = vadd.f32 %v608, %v609
        %614 = vadd.xlane.f32.xlu0 %v613
        %v615 = vpop.xlane.xlu0 %614
        %v616 = vrcp.pop %v615
        %v617 = vmul.f32 %v608, %v616
        %v618 = vmul.f32 %v609, %v616
        %v621 = vcombine.low %v617, %v618
        %623 = vst [vmem:[%s404] sm:$0xff] %v621
        %v624 = vld [vmem:[%s3] sm:$0xff]
        %v625 = vld [vmem:[%s3 + $0x8] sm:$0xff]
        %v626 = vld [vmem:[%s3 + $0x10] sm:$0xff]
        %v627 = vld [vmem:[%s3 + $0x18] sm:$0xff]
        %v628 = vld [vmem:[%s3 + $0x20] sm:$0xff]
        %v629 = vld [vmem:[%s3 + $0x28] sm:$0xff]
        %v630 = vld [vmem:[%s3 + $0x30] sm:$0xff]
        %v631 = vld [vmem:[%s3 + $0x38] sm:$0xff]
        %v632 = vld [vmem:[%s3 + $0x40] sm:$0xff]
        %v633 = vld [vmem:[%s3 + $0x48] sm:$0xff]
        %v634 = vld [vmem:[%s3 + $0x50] sm:$0xff]
        %v635 = vld [vmem:[%s3 + $0x58] sm:$0xff]
        %v636 = vld [vmem:[%s3 + $0x60] sm:$0xff]
        %v637 = vld [vmem:[%s3 + $0x68] sm:$0xff]
        %v638 = vld [vmem:[%s3 + $0x70] sm:$0xff]
        %v639 = vld [vmem:[%s3 + $0x78] sm:$0xff]
        %v640 = vld [vmem:[%s3 + $0x80] sm:$0xff]
        %v641 = vld [vmem:[%s3 + $0x88] sm:$0xff]
        %v642 = vld [vmem:[%s3 + $0x90] sm:$0xff]
        %v643 = vld [vmem:[%s3 + $0x98] sm:$0xff]
        %v644 = vld [vmem:[%s3 + $0xa0] sm:$0xff]
        %v645 = vld [vmem:[%s3 + $0xa8] sm:$0xff]
        %v646 = vld [vmem:[%s3 + $0xb0] sm:$0xff]
        %v647 = vld [vmem:[%s3 + $0xb8] sm:$0xff]
        %v648 = vld [vmem:[%s3 + $0xc0] sm:$0xff]
        %v649 = vld [vmem:[%s3 + $0xc8] sm:$0xff]
        %v650 = vld [vmem:[%s3 + $0xd0] sm:$0xff]
        %v651 = vld [vmem:[%s3 + $0xd8] sm:$0xff]
        %v652 = vld [vmem:[%s3 + $0xe0] sm:$0xff]
        %v653 = vld [vmem:[%s3 + $0xe8] sm:$0xff]
        %v654 = vld [vmem:[%s3 + $0xf0] sm:$0xff]
        %v655 = vld [vmem:[%s3 + $0xf8] sm:$0xff]
        %656 = vmatprep.subr.mxu0 0.0
        %657 = vmatpush1.msra.mxu0 %v639
        %658 = vmatprep.subr.mxu0 0.0
        %659 = vmatpush1.msra.mxu0 %v638
        %660 = vmatprep.subr.mxu0 0.0
        %661 = vmatpush1.msra.mxu0 %v637
        %662 = vmatprep.subr.mxu0 0.0
        %663 = vmatpush1.msra.mxu0 %v636
        %664 = vmatprep.subr.mxu0 0.0
        %665 = vmatpush1.msra.mxu0 %v635
        %666 = vmatprep.subr.mxu0 0.0
        %667 = vmatpush1.msra.mxu0 %v634
        %668 = vmatprep.subr.mxu0 0.0
        %669 = vmatpush1.msra.mxu0 %v633
        %670 = vmatprep.subr.mxu0 0.0
        %671 = vmatpush1.msra.mxu0 %v632
        %672 = vmatprep.subr.mxu0 0.0
        %673 = vmatpush1.msra.mxu0 %v631
        %674 = vmatprep.subr.mxu0 0.0
        %675 = vmatpush1.msra.mxu0 %v630
        %676 = vmatprep.subr.mxu0 0.0
        %677 = vmatpush1.msra.mxu0 %v629
        %678 = vmatprep.subr.mxu0 0.0
        %679 = vmatpush1.msra.mxu0 %v628
        %680 = vmatprep.subr.mxu0 0.0
        %681 = vmatpush1.msra.mxu0 %v627
        %682 = vmatprep.subr.mxu0 0.0
        %683 = vmatpush1.msra.mxu0 %v626
        %684 = vmatprep.subr.mxu0 0.0
        %685 = vmatpush1.msra.mxu0 %v625
        %686 = vmatprep.subr.mxu0 0.0
        %687 = vmatpush1.msra.mxu0 %v624
        %688 = vmatprep.subr.mxu0 0.0
        %689 = vmatpush2.msra.mxu0 %v655
        %690 = vmatprep.subr.mxu0 0.0
        %691 = vmatpush2.msra.mxu0 %v654
        %692 = vmatprep.subr.mxu0 0.0
        %693 = vmatpush2.msra.mxu0 %v653
        %694 = vmatprep.subr.mxu0 0.0
        %695 = vmatpush2.msra.mxu0 %v652
        %696 = vmatprep.subr.mxu0 0.0
        %697 = vmatpush2.msra.mxu0 %v651
        %698 = vmatprep.subr.mxu0 0.0
        %699 = vmatpush2.msra.mxu0 %v650
        %700 = vmatprep.subr.mxu0 0.0
        %701 = vmatpush2.msra.mxu0 %v649
        %702 = vmatprep.subr.mxu0 0.0
        %703 = vmatpush2.msra.mxu0 %v648
        %704 = vmatprep.subr.mxu0 0.0
        %705 = vmatpush2.msra.mxu0 %v647
        %706 = vmatprep.subr.mxu0 0.0
        %707 = vmatpush2.msra.mxu0 %v646
        %708 = vmatprep.subr.mxu0 0.0
        %709 = vmatpush2.msra.mxu0 %v645
        %710 = vmatprep.subr.mxu0 0.0
        %711 = vmatpush2.msra.mxu0 %v644
        %712 = vmatprep.subr.mxu0 0.0
        %713 = vmatpush2.msra.mxu0 %v643
        %714 = vmatprep.subr.mxu0 0.0
        %715 = vmatpush2.msra.mxu0 %v642
        %716 = vmatprep.subr.mxu0 0.0
        %717 = vmatpush2.msra.mxu0 %v641
        %718 = vmatprep.subr.mxu0 0.0
        %719 = vmatpush2.msra.mxu0 %v640
        %720 = vmatprep.mubr.f32.mxu0 %v618
        %721 = vmatmul.mubr.f32.gmra.mxu0 %v617
        %v722 = vpop.f32.mrf.mxu0
        %v723 = vadd.f32 0.0, %v722
        %v724 = vpop.f32.mrf.mxu0
        %725 = vdwg.mxu0
        %v726 = vld [vmem:[%s4] sm:$0xff]
        %v727 = vld [vmem:[%s4 + $0x8] sm:$0xff]
        %v728 = vld [vmem:[%s4 + $0x10] sm:$0xff]
        %v729 = vld [vmem:[%s4 + $0x18] sm:$0xff]
        %v730 = vld [vmem:[%s4 + $0x20] sm:$0xff]
        %v731 = vld [vmem:[%s4 + $0x28] sm:$0xff]
        %v732 = vld [vmem:[%s4 + $0x30] sm:$0xff]
        %v733 = vld [vmem:[%s4 + $0x38] sm:$0xff]
        %v734 = vld [vmem:[%s4 + $0x40] sm:$0xff]
        %v735 = vld [vmem:[%s4 + $0x48] sm:$0xff]
        %v736 = vld [vmem:[%s4 + $0x50] sm:$0xff]
        %v737 = vld [vmem:[%s4 + $0x58] sm:$0xff]
        %v738 = vld [vmem:[%s4 + $0x60] sm:$0xff]
        %v739 = vld [vmem:[%s4 + $0x68] sm:$0xff]
        %v740 = vld [vmem:[%s4 + $0x70] sm:$0xff]
        %v741 = vld [vmem:[%s4 + $0x78] sm:$0xff]
        %v742 = vld [vmem:[%s4 + $0x80] sm:$0xff]
        %v743 = vld [vmem:[%s4 + $0x88] sm:$0xff]
        %v744 = vld [vmem:[%s4 + $0x90] sm:$0xff]
        %v745 = vld [vmem:[%s4 + $0x98] sm:$0xff]
        %v746 = vld [vmem:[%s4 + $0xa0] sm:$0xff]
        %v747 = vld [vmem:[%s4 + $0xa8] sm:$0xff]
        %v748 = vld [vmem:[%s4 + $0xb0] sm:$0xff]
        %v749 = vld [vmem:[%s4 + $0xb8] sm:$0xff]
        %v750 = vld [vmem:[%s4 + $0xc0] sm:$0xff]
        %v751 = vld [vmem:[%s4 + $0xc8] sm:$0xff]
        %v752 = vld [vmem:[%s4 + $0xd0] sm:$0xff]
        %v753 = vld [vmem:[%s4 + $0xd8] sm:$0xff]
        %v754 = vld [vmem:[%s4 + $0xe0] sm:$0xff]
        %v755 = vld [vmem:[%s4 + $0xe8] sm:$0xff]
        %v756 = vld [vmem:[%s4 + $0xf0] sm:$0xff]
        %v757 = vld [vmem:[%s4 + $0xf8] sm:$0xff]
        %758 = vmatprep.subr.mxu0 0.0
        %759 = vmatpush1.msra.mxu0 %v741
        %760 = vmatprep.subr.mxu0 0.0
        %761 = vmatpush1.msra.mxu0 %v740
        %762 = vmatprep.subr.mxu0 0.0
        %763 = vmatpush1.msra.mxu0 %v739
        %764 = vmatprep.subr.mxu0 0.0
        %765 = vmatpush1.msra.mxu0 %v738
        %766 = vmatprep.subr.mxu0 0.0
        %767 = vmatpush1.msra.mxu0 %v737
        %768 = vmatprep.subr.mxu0 0.0
        %769 = vmatpush1.msra.mxu0 %v736
        %770 = vmatprep.subr.mxu0 0.0
        %771 = vmatpush1.msra.mxu0 %v735
        %772 = vmatprep.subr.mxu0 0.0
        %773 = vmatpush1.msra.mxu0 %v734
        %774 = vmatprep.subr.mxu0 0.0
        %775 = vmatpush1.msra.mxu0 %v733
        %776 = vmatprep.subr.mxu0 0.0
        %777 = vmatpush1.msra.mxu0 %v732
        %778 = vmatprep.subr.mxu0 0.0
        %779 = vmatpush1.msra.mxu0 %v731
        %780 = vmatprep.subr.mxu0 0.0
        %781 = vmatpush1.msra.mxu0 %v730
        %782 = vmatprep.subr.mxu0 0.0
        %783 = vmatpush1.msra.mxu0 %v729
        %784 = vmatprep.subr.mxu0 0.0
        %785 = vmatpush1.msra.mxu0 %v728
        %786 = vmatprep.subr.mxu0 0.0
        %787 = vmatpush1.msra.mxu0 %v727
        %788 = vmatprep.subr.mxu0 0.0
        %789 = vmatpush1.msra.mxu0 %v726
        %790 = vmatprep.subr.mxu0 0.0
        %791 = vmatpush2.msra.mxu0 %v757
        %792 = vmatprep.subr.mxu0 0.0
        %793 = vmatpush2.msra.mxu0 %v756
        %794 = vmatprep.subr.mxu0 0.0
        %795 = vmatpush2.msra.mxu0 %v755
        %796 = vmatprep.subr.mxu0 0.0
        %797 = vmatpush2.msra.mxu0 %v754
        %798 = vmatprep.subr.mxu0 0.0
        %799 = vmatpush2.msra.mxu0 %v753
        %800 = vmatprep.subr.mxu0 0.0
        %801 = vmatpush2.msra.mxu0 %v752
        %802 = vmatprep.subr.mxu0 0.0
        %803 = vmatpush2.msra.mxu0 %v751
        %804 = vmatprep.subr.mxu0 0.0
        %805 = vmatpush2.msra.mxu0 %v750
        %806 = vmatprep.subr.mxu0 0.0
        %807 = vmatpush2.msra.mxu0 %v749
        %808 = vmatprep.subr.mxu0 0.0
        %809 = vmatpush2.msra.mxu0 %v748
        %810 = vmatprep.subr.mxu0 0.0
        %811 = vmatpush2.msra.mxu0 %v747
        %812 = vmatprep.subr.mxu0 0.0
        %813 = vmatpush2.msra.mxu0 %v746
        %814 = vmatprep.subr.mxu0 0.0
        %815 = vmatpush2.msra.mxu0 %v745
        %816 = vmatprep.subr.mxu0 0.0
        %817 = vmatpush2.msra.mxu0 %v744
        %818 = vmatprep.subr.mxu0 0.0
        %819 = vmatpush2.msra.mxu0 %v743
        %820 = vmatprep.subr.mxu0 0.0
        %821 = vmatpush2.msra.mxu0 %v742
        %822 = vmatprep.mubr.f32.mxu0 %v618
        %823 = vmatmul.mubr.f32.gmra.mxu0 %v617
        %v824 = vpop.f32.mrf.mxu0
        %v825 = vadd.f32 0.0, %v824
        %v826 = vpop.f32.mrf.mxu0
        %827 = vdwg.mxu0
        %vm828 = vcmask 125952
        %829 = vst.msk [vmem:[%s370] sm:$0xf] %vm828, %v723
        %830 = vst.msk [vmem:[%s377] sm:$0xf] %vm828, %v825
        %v831 = vlaneseq
        %v832 = vand.u32 %v831, 127
        %v833 = vcvt.s32.f32 %v832
        %v834 = vmul.f32 %v833, 0.0625
        %v835 = vmul.f32 %v723, %v834
        %vm836 = vcmask 130048
        %v837 = vsel %vm836, %v835, 0.0
        %838 = vadd.xlane.f32.xlu0 %v837
        %v839 = vpop.xlane.xlu0 %838
        %v840 = vsub.f32 %v839, 0.5
        %v841 = vmul.f32 %v825, %v834
        %v842 = vsel %vm836, %v841, 0.0
        %843 = vadd.xlane.f32.xlu0 %v842
        %v844 = vpop.xlane.xlu0 %843
        %v845 = vsub.f32 %v844, 0.5
        %vm846 = vcmask 7168
        %v847 = vsel %vm846, %v840, %v845
        %vm848 = vcmask 11264
        %849 = vst.msk [vmem:[%s408] sm:$0xf] %vm848, %v847
        %vm850 = vcmask 3072
        %851 = vst.msk [vmem:[%s412] sm:$0xf] %vm850, %v612
        %p852 = scmp.lt.s32.totalorder %s28, 1
        %s853 = scalar_select %p852, %s28, 1
        %s854 = smul.addr %s853, 2
        %s855 = smul.addr %s854, 4
        %s856 = scalar_lea.vmem %s5, %s855
        %p857 = scmp.lt.s32.totalorder %s28, 1
        %s858 = scalar_select %p857, %s28, 1
        %s859 = smul.addr %s858, 2
        %s860 = smul.addr %s859, 4
        %s861 = scalar_lea.vmem %s6, %s860
        %s862 = sand.u32 %s198, 1
        %s863 = scalar_lea.sflag [#allocation3], %s862
        %s864 = sand.u32 %s198, 1
        %s865 = smul.addr %s864, 4
        %s866 = scalar_lea.vmem [#allocation2], %s865
        %s867 = sand.u32 %s224, 1
        %s868 = scalar_lea.sflag [#allocation5], %s867
        %s869 = sand.u32 %s224, 1
        %s870 = smul.addr %s869, 4
        %s871 = scalar_lea.vmem [#allocation4], %s870
        %p872 = scmp.lt.s32.totalorder %s28, 1
        %s873 = scalar_select %p872, %s28, 1
        %s874 = smul.addr %s873, 4
        %s875 = scalar_lea.vmem %s9, %s874
        %p876 = scmp.lt.s32.totalorder %s28, 1
        %s877 = scalar_select %p876, %s28, 1
        %s878 = smul.addr %s877, 4
        %s879 = scalar_lea.vmem %s10, %s878
        // Predicated region
        $region41: #{_lambda_.7} parent=39 // pred_check
          %p880 = pneg %p156
        $region42: #{_lambda_.7} parent=39 // pred_check_branch
          %882 = sbr.rel (%p880) target = $region44
        $region43: #{_lambda_.7} parent=39 // pred_region
          _
        $region44: #{_lambda_.7} parent=39 // pred_fallthru
          _
        // Predicated region
        $region45: #{_lambda_.7} parent=39 // pred_check
          %p883 = pneg %p182
        $region46: #{_lambda_.7} parent=39 // pred_check_branch
          %885 = sbr.rel (%p883) target = $region48
        $region47: #{_lambda_.7} parent=39 // pred_region
          _
        $region48: #{_lambda_.7} parent=39 // pred_fallthru
          _
        // Predicated region
        $region49: #{_lambda_.7} parent=39 // pred_check
          %p886 = pneg %p208
        $region50: #{_lambda_.7} parent=39 // pred_check_branch
          %888 = sbr.rel (%p886) target = $region52
        $region51: #{_lambda_.7} parent=39 // pred_region
          %s890 = ssub.s32 64, 64
          %891 = vsyncadd %s863, %s890
          %s892 = smul.addr %s28, 64
          %s893 = scalar_lea.hbm %s7, %s892
          %s895 = sshll.u32 %s866, 4
          %s896 = int_to_ptr.vmem [resolvable:$true] %s895
          %898 = dma.vmem_to_hbm [thread:$0]  %s896, 64, %s893, %s863
        $region52: #{_lambda_.7} parent=39 // pred_fallthru
          _
        // Predicated region
        $region53: #{_lambda_.7} parent=39 // pred_check
          %p899 = pneg %p234
        $region54: #{_lambda_.7} parent=39 // pred_check_branch
          %901 = sbr.rel (%p899) target = $region56
        $region55: #{_lambda_.7} parent=39 // pred_region
          %s903 = ssub.s32 64, 64
          %904 = vsyncadd %s868, %s903
          %s905 = smul.addr %s28, 64
          %s906 = scalar_lea.hbm %s8, %s905
          %s908 = sshll.u32 %s871, 4
          %s909 = int_to_ptr.vmem [resolvable:$true] %s908
          %911 = dma.vmem_to_hbm [thread:$0]  %s909, 64, %s906, %s868
        $region56: #{_lambda_.7} parent=39 // pred_fallthru
          _
        // Predicated region
        $region57: #{_lambda_.7} parent=39 // pred_check
          %p912 = pneg %p260
        $region58: #{_lambda_.7} parent=39 // pred_check_branch
          %914 = sbr.rel (%p912) target = $region60
        $region59: #{_lambda_.7} parent=39 // pred_region
          _
        $region60: #{_lambda_.7} parent=39 // pred_fallthru
          _
        // Predicated region
        $region61: #{_lambda_.7} parent=39 // pred_check
          %p915 = pneg %p286
        $region62: #{_lambda_.7} parent=39 // pred_check_branch
          %917 = sbr.rel (%p915) target = $region64
        $region63: #{_lambda_.7} parent=39 // pred_region
          _
        $region64: #{_lambda_.7} parent=39 // pred_fallthru
          _
      $region40: #{_lambda_.7} parent=5 // pred_fallthru
        _
      %p918 = scmp.le.s32.totalorder 2, %s23
      // Predicated region
      $region65: #{_lambda_.7} parent=5 // pred_check
        %p919 = pneg %p918
      $region66: #{_lambda_.7} parent=5 // pred_check_branch
        %921 = sbr.rel (%p919) target = $region68
      $region67: #{_lambda_.7} parent=5 // pred_region
        %s922 = ssub.s32 %s23, 2
        // Predicated region
        $region69: #{_lambda_.7} parent=67 // pred_check
          %p923 = pneg %p162
        $region70: #{_lambda_.7} parent=67 // pred_check_branch
          %925 = sbr.rel (%p923) target = $region72
        $region71: #{_lambda_.7} parent=67 // pred_region
          %p926 = scmp.lt.s32.totalorder %s29, 1
          %s927 = scalar_select %p926, %s29, 1
          %s928 = smul.addr %s927, 2
          %s929 = smul.addr %s928, 4
          %s930 = scalar_lea.vmem %s5, %s929
        $region72: #{_lambda_.7} parent=67 // pred_fallthru
          _
        // Predicated region
        $region73: #{_lambda_.7} parent=67 // pred_check
          %p931 = pneg %p188
        $region74: #{_lambda_.7} parent=67 // pred_check_branch
          %933 = sbr.rel (%p931) target = $region76
        $region75: #{_lambda_.7} parent=67 // pred_region
          %p934 = scmp.lt.s32.totalorder %s29, 1
          %s935 = scalar_select %p934, %s29, 1
          %s936 = smul.addr %s935, 2
          %s937 = smul.addr %s936, 4
          %s938 = scalar_lea.vmem %s6, %s937
        $region76: #{_lambda_.7} parent=67 // pred_fallthru
          _
        // Predicated region
        $region77: #{_lambda_.7} parent=67 // pred_check
          %p939 = pneg %p214
        $region78: #{_lambda_.7} parent=67 // pred_check_branch
          %941 = sbr.rel (%p939) target = $region80
        $region79: #{_lambda_.7} parent=67 // pred_region
          %s942 = sand.u32 %s199, 1
          %s943 = scalar_lea.sflag [#allocation3], %s942
          %s944 = sand.u32 %s199, 1
          %s945 = smul.addr %s944, 4
          %s946 = scalar_lea.vmem [#allocation2], %s945
          %947 = dma.done %s943, 64
        $region80: #{_lambda_.7} parent=67 // pred_fallthru
          _
        // Predicated region
        $region81: #{_lambda_.7} parent=67 // pred_check
          %p948 = pneg %p240
        $region82: #{_lambda_.7} parent=67 // pred_check_branch
          %950 = sbr.rel (%p948) target = $region84
        $region83: #{_lambda_.7} parent=67 // pred_region
          %s951 = sand.u32 %s225, 1
          %s952 = scalar_lea.sflag [#allocation5], %s951
          %s953 = sand.u32 %s225, 1
          %s954 = smul.addr %s953, 4
          %s955 = scalar_lea.vmem [#allocation4], %s954
          %956 = dma.done %s952, 64
        $region84: #{_lambda_.7} parent=67 // pred_fallthru
          _
        // Predicated region
        $region85: #{_lambda_.7} parent=67 // pred_check
          %p957 = pneg %p266
        $region86: #{_lambda_.7} parent=67 // pred_check_branch
          %959 = sbr.rel (%p957) target = $region88
        $region87: #{_lambda_.7} parent=67 // pred_region
          %p960 = scmp.lt.s32.totalorder %s29, 1
          %s961 = scalar_select %p960, %s29, 1
          %s962 = smul.addr %s961, 4
          %s963 = scalar_lea.vmem %s9, %s962
        $region88: #{_lambda_.7} parent=67 // pred_fallthru
          _
        // Predicated region
        $region89: #{_lambda_.7} parent=67 // pred_check
          %p964 = pneg %p292
        $region90: #{_lambda_.7} parent=67 // pred_check_branch
          %966 = sbr.rel (%p964) target = $region92
        $region91: #{_lambda_.7} parent=67 // pred_region
          %p967 = scmp.lt.s32.totalorder %s29, 1
          %s968 = scalar_select %p967, %s29, 1
          %s969 = smul.addr %s968, 4
          %s970 = scalar_lea.vmem %s10, %s969
        $region92: #{_lambda_.7} parent=67 // pred_fallthru
          _
      $region68: #{_lambda_.7} parent=5 // pred_fallthru
        _
    $region6: #{_lambda_.7} parent=1 // loop_footer
      %s27 = sadd.s32 1, %s23
    $region7: #{_lambda_.7} parent=1 // loop_footer_branch
      %22 = sbr.rel target = $region3
    $region8: #{_lambda_.7} parent=1 // loop_exit
      _
    %971 = vsyncpa [#allocation3], 1
    %s972 = scalar_lea.sflag [#allocation3], 1
    %973 = vsyncpa %s972, 1
    %974 = vsyncpa [#allocation5], 1
    %s975 = scalar_lea.sflag [#allocation5], 1
    %976 = vsyncpa %s975, 1

</llo_original>
